<compile_context>
chip_gen: v7x
topology: tpu7x:2x2x1
jax: 0.10.0
libtpu: 0.0.40
codegen_flags: <defaults>
</compile_context>

<pallas_src>
import functools
import math

import jax
import jax.numpy as jnp
from jax.experimental import pallas as pl
from jax.experimental.pallas import tpu as pltpu


_MXU_DTYPE = jnp.bfloat16          # matmul operand dtype (accumulate in f32)
_LN_EPS = 1e-5


@functools.lru_cache(maxsize=None)
def _vmem_limit_bytes():
    """Generation-aware scoped-VMEM limit: ~75% of physical, 32 MiB floor."""
    cap = 64 * 1024 * 1024
    try:
        cap = int(pltpu.get_tpu_info().vmem_capacity_bytes)
    except Exception:
        pass
    return max(32 * 1024 * 1024, (cap * 3) // 4)


def _compiler_params(dims):
    return pltpu.CompilerParams(dimension_semantics=dims,
                                vmem_limit_bytes=_vmem_limit_bytes())


def _pick_tile_m(m, target=512):
    """Largest multiple-of-8 divisor of m that is <= target, preferring >=2 grid steps."""
    cands = [c for c in range(8, min(target, m) + 1, 8) if m % c == 0]
    if not cands:
        return m                      # block == full dim (still legal)
    multi = [c for c in cands if m // c >= 2]
    return max(multi) if multi else max(cands)


def _pick_tile_f(f, target=512):
    """Largest multiple-of-128 divisor of f that is <= target (lane-aligned F blocks)."""
    cands = [c for c in range(128, min(target, f) + 1, 128) if f % c == 0]
    return max(cands) if cands else f


# ---------------------------------------------------------------------------
# Pallas kernels
# ---------------------------------------------------------------------------

def _fused_attention_kernel(xq_ref, xkv_ref, wq_ref, bq_ref, wkv_ref, bkv_ref, o_ref,
                            *, n_heads, head_dim, inv_scale, causal):
    """Q / fused-KV projection + multi-head scaled-dot-product attention.

    Per grid step (batch b, q-tile qi):
      xq:  (tq, D)  query-side rows,   xkv: (Skv, D) full key/value-side rows
      wq:  (D, D) bf16,  wkv: (D, 2D) bf16  (pre-cast once outside the kernel)
      out: (tq, D)  heads concatenated along the lane dim (single unmasked store)
    """
    d = n_heads * head_dim
    xq = xq_ref[...].astype(_MXU_DTYPE)        # (tq, D)
    xkv = xkv_ref[...].astype(_MXU_DTYPE)      # (skv, D)
    tq = xq.shape[0]
    skv = xkv.shape[0]

    # In-kernel projections: (B,S,*) activations never round-trip HBM.
    q = jnp.dot(xq, wq_ref[...], preferred_element_type=jnp.float32) + bq_ref[...]
    kv = jnp.dot(xkv, wkv_ref[...], preferred_element_type=jnp.float32) + bkv_ref[...]

    # Fold 1/sqrt(head_dim) into Q (tq*D elems) instead of the (H,tq,skv) scores;
    # cast each operand once for the whole block (vreg-dense casts).
    q3 = (q * inv_scale).astype(_MXU_DTYPE).reshape(tq, n_heads, head_dim)
    k3 = kv[:, :d].astype(_MXU_DTYPE).reshape(skv, n_heads, head_dim)
    v3 = kv[:, d:].astype(_MXU_DTYPE).reshape(skv, n_heads, head_dim)

    # Heads as a batch dim, contraction over head_dim: no K transpose, no per-head unroll.
    s = jnp.einsum('qhd,khd->hqk', q3, k3, preferred_element_type=jnp.float32)

    if causal:
        row = jax.lax.broadcasted_iota(jnp.int32, (tq, skv), 0) + pl.program_id(1) * tq
        col = jax.lax.broadcasted_iota(jnp.int32, (tq, skv), 1)
        s = s + jnp.where(col > row, -1e9, 0.0)[None, :, :]
    # TODO(synk): arbitrary (non-causal) user masks would need an extra mask input;
    #             the causal mask is generated in-kernel via iota (matches module usage).

    s = s - jnp.max(s, axis=-1, keepdims=True)
    p = jnp.exp(s)
    p = p * pl.reciprocal(jnp.sum(p, axis=-1, keepdims=True), approx=True)

    # (tq, H, head_dim) -> single lane-dense (tq, D) store (no lane-dim concatenate).
    o = jnp.einsum('hqk,khd->qhd', p.astype(_MXU_DTYPE), v3,
                   preferred_element_type=jnp.float32)
    o_ref[...] = o.reshape(tq, d).astype(o_ref.dtype)
    # TODO(synk): for long Skv, switch to online-softmax over Skv blocks (and cache K/V
    #             across q-tiles) to bound the f32 (H, tq, Skv) score matrix in VMEM.


def _proj_add_ln_kernel(x_ref, w_ref, b_ref, res_ref, g_ref, be_ref, o_ref):
    # LayerNorm((x @ w + b) + residual)   -- LN over last dim, f32 statistics.
    # w arrives pre-cast to bf16; only the per-tile activation is cast in-kernel.
    z = jnp.dot(x_ref[...].astype(_MXU_DTYPE), w_ref[...],
                preferred_element_type=jnp.float32)
    z = z + b_ref[...] + res_ref[...]
    mu = jnp.mean(z, axis=-1, keepdims=True)
    var = jnp.mean((z - mu) * (z - mu), axis=-1, keepdims=True)
    zn = (z - mu) * jax.lax.rsqrt(var + _LN_EPS)
    o_ref[...] = (zn * g_ref[...] + be_ref[...]).astype(o_ref.dtype)


def _ffn_add_ln_kernel(x_ref, w1_ref, b1_ref, w2_ref, b2_ref, g_ref, be_ref,
                       o_ref, acc_ref):
    # LayerNorm(x + relu(x @ w1 + b1) @ w2 + b2), blocked over F with an f32 VMEM
    # accumulator; w1/w2 F-blocks are bf16, so VMEM stays bounded at production D/F.
    fi = pl.program_id(1)

    @pl.when(fi == 0)
    def _():
        acc_ref[...] = jnp.zeros_like(acc_ref)

    x = x_ref[...]
    h = jnp.dot(x.astype(_MXU_DTYPE), w1_ref[...],
                preferred_element_type=jnp.float32) + b1_ref[...]
    h = jnp.maximum(h, 0.0)
    acc_ref[...] += jnp.dot(h.astype(_MXU_DTYPE), w2_ref[...],
                            preferred_element_type=jnp.float32)

    @pl.when(fi == pl.num_programs(1) - 1)
    def _():
        z = x + acc_ref[...] + b2_ref[...]
        mu = jnp.mean(z, axis=-1, keepdims=True)
        var = jnp.mean((z - mu) * (z - mu), axis=-1, keepdims=True)
        zn = (z - mu) * jax.lax.rsqrt(var + _LN_EPS)
        o_ref[...] = (zn * g_ref[...] + be_ref[...]).astype(o_ref.dtype)


# ---------------------------------------------------------------------------
# Pallas wrappers
# ---------------------------------------------------------------------------
# TODO(synk): mark the grid-constant weight/bias BlockSpecs with
#             pipeline_mode=pl.Buffered(1) (single buffer) once buffer_count=1 is
#             confirmed on the target jax version; halves weight VMEM residency.

def fused_attention(xq, xkv, wq, bq, wkv, bkv, *, n_heads, causal):
    """Multi-head attention with in-kernel Q / fused-KV projections.

    xq:  (B, Sq, D)  query-side input,  xkv: (B, Skv, D) key/value-side input.
    wq:  (D, D) bf16, wkv: (D, 2D) bf16 (K and V fused along the output dim).
    Returns (B, Sq, D) with heads concatenated along the lane dim (pre output-proj).
    """
    B, Sq, D = xq.shape
    Skv = xkv.shape[1]
    tq = _pick_tile_m(Sq)
    head_dim = D // n_heads
    kern = functools.partial(
        _fused_attention_kernel, n_heads=n_heads, head_dim=head_dim,
        inv_scale=1.0 / math.sqrt(head_dim), causal=causal)
    return pl.pallas_call(
        kern,
        out_shape=jax.ShapeDtypeStruct((B, Sq, D), xq.dtype),
        grid=(B, Sq // tq),
        in_specs=[
            pl.BlockSpec((None, tq, D), lambda b, qi: (b, qi, 0)),
            pl.BlockSpec((None, Skv, D), lambda b, qi: (b, 0, 0)),
            pl.BlockSpec((D, D), lambda b, qi: (0, 0)),       # constant: no re-fetch
            pl.BlockSpec((1, D), lambda b, qi: (0, 0)),
            pl.BlockSpec((D, 2 * D), lambda b, qi: (0, 0)),
            pl.BlockSpec((1, 2 * D), lambda b, qi: (0, 0)),
        ],
        out_specs=pl.BlockSpec((None, tq, D), lambda b, qi: (b, qi, 0)),
        compiler_params=_compiler_params(("parallel", "parallel")),
    )(xq, xkv, wq, bq.reshape(1, D), wkv, bkv.reshape(1, 2 * D))


def proj_add_layernorm(x2d, w, b, res2d, gamma, beta):
    """LayerNorm((x2d @ w + b) + res2d), tiled over M; w is bf16."""
    M, K = x2d.shape
    N = w.shape[1]
    tm = _pick_tile_m(M)
    return pl.pallas_call(
        _proj_add_ln_kernel,
        out_shape=jax.ShapeDtypeStruct((M, N), x2d.dtype),
        grid=(M // tm,),
        in_specs=[
            pl.BlockSpec((tm, K), lambda i: (i, 0)),
            pl.BlockSpec((K, N), lambda i: (0, 0)),
            pl.BlockSpec((1, N), lambda i: (0, 0)),
            pl.BlockSpec((tm, N), lambda i: (i, 0)),
            pl.BlockSpec((1, N), lambda i: (0, 0)),
            pl.BlockSpec((1, N), lambda i: (0, 0)),
        ],
        out_specs=pl.BlockSpec((tm, N), lambda i: (i, 0)),
        compiler_params=_compiler_params(("parallel",)),
    )(x2d, w, b.reshape(1, N), res2d, gamma.reshape(1, N), beta.reshape(1, N))


def ffn_add_layernorm(x2d, w1, b1, w2, b2, gamma, beta):
    """LayerNorm(x2d + relu(x2d @ w1 + b1) @ w2 + b2), tiled over M and blocked over F."""
    M, D = x2d.shape
    F = w1.shape[1]
    tm = _pick_tile_m(M)
    tf = _pick_tile_f(F)
    return pl.pallas_call(
        _ffn_add_ln_kernel,
        out_shape=jax.ShapeDtypeStruct((M, D), x2d.dtype),
        grid=(M // tm, F // tf),
        in_specs=[
            pl.BlockSpec((tm, D), lambda i, f: (i, 0)),
            pl.BlockSpec((D, tf), lambda i, f: (0, f)),
            pl.BlockSpec((1, tf), lambda i, f: (0, f)),
            pl.BlockSpec((tf, D), lambda i, f: (f, 0)),
            pl.BlockSpec((1, D), lambda i, f: (0, 0)),
            pl.BlockSpec((1, D), lambda i, f: (0, 0)),
            pl.BlockSpec((1, D), lambda i, f: (0, 0)),
        ],
        out_specs=pl.BlockSpec((tm, D), lambda i, f: (i, 0)),
        scratch_shapes=[pltpu.VMEM((tm, D), jnp.float32)],
        compiler_params=_compiler_params(("parallel", "arbitrary")),
    )(x2d, w1, b1.reshape(1, F), w2, b2.reshape(1, D),
      gamma.reshape(1, D), beta.reshape(1, D))


# ---------------------------------------------------------------------------
# DecoderLayer forward (composition)
# ---------------------------------------------------------------------------

def decoder_layer(x, enc, fp, *, n_heads):
    """at_x = LN1(selfattn(x)+x); ax = LN2(at_x+crossattn(at_x,enc)); out = LN3(ax+FFN(ax))."""
    B, S, D = x.shape
    x2d = x.reshape(B * S, D)

    # ----- self attention (causal); Q/K/V projection fused into the attention kernel -----
    attn1 = fused_attention(x, x, fp["wq_1"], fp["bq_1"], fp["w_kv_1"], fp["b_kv_1"],
                            n_heads=n_heads, causal=True)
    at_x2d = proj_add_layernorm(attn1.reshape(B * S, D), fp["wo_1"], fp["bo_1"],
                                x2d, fp["ln1_g"], fp["ln1_b"])

    # ----- cross attention (no mask); Q and fused K/V projections in-kernel -----
    at_x = at_x2d.reshape(B, S, D)
    attn2 = fused_attention(at_x, enc, fp["wq_2"], fp["bq_2"], fp["w_kv_2"], fp["b_kv_2"],
                            n_heads=n_heads, causal=False)
    ax2d = proj_add_layernorm(attn2.reshape(B * S, D), fp["wo_2"], fp["bo_2"],
                              at_x2d, fp["ln2_g"], fp["ln2_b"])

    # ----- feed-forward + residual + LN, F-blocked fused kernel -----
    out2d = ffn_add_layernorm(ax2d, fp["ffn_w1"], fp["ffn_b1"],
                              fp["ffn_w2"], fp["ffn_b2"],
                              fp["ln3_g"], fp["ln3_b"])
    return out2d.reshape(B, S, D)


# ---------------------------------------------------------------------------
# Deterministic parameter init (mirrors the torch module) + fusion / bf16 prep
# ---------------------------------------------------------------------------

def init_attn_params(key, d):
    ks = jax.random.split(key, 4)
    std = 0.02
    return {
        "wq": jax.random.normal(ks[0], (d, d), jnp.float32) * std,
        "bq": jnp.zeros((d,), jnp.float32),
        "wk": jax.random.normal(ks[1], (d, d), jnp.float32) * std,
        "bk": jnp.zeros((d,), jnp.float32),
        "wv": jax.random.normal(ks[2], (d, d), jnp.float32) * std,
        "bv": jnp.zeros((d,), jnp.float32),
        "wo": jax.random.normal(ks[3], (d, d), jnp.float32) * std,
        "bo": jnp.zeros((d,), jnp.float32),
    }


def init_params(key, d, ff_d):
    k1, k2, k3, k4 = jax.random.split(key, 4)
    return {
        "attn_1": init_attn_params(k1, d),
        "attn_2": init_attn_params(k2, d),
        "ln1_g": jnp.ones((d,), jnp.float32), "ln1_b": jnp.zeros((d,), jnp.float32),
        "ln2_g": jnp.ones((d,), jnp.float32), "ln2_b": jnp.zeros((d,), jnp.float32),
        "ln3_g": jnp.ones((d,), jnp.float32), "ln3_b": jnp.zeros((d,), jnp.float32),
        "ffn_w1": jax.random.normal(k3, (d, ff_d), jnp.float32) * 0.02,
        "ffn_b1": jnp.zeros((ff_d,), jnp.float32),
        "ffn_w2": jax.random.normal(k4, (ff_d, d), jnp.float32) * 0.02,
        "ffn_b2": jnp.zeros((d,), jnp.float32),
    }


def fuse_params(params):
    """Concatenate K/V weights and cast every matmul weight to bf16 ONCE (outside kernels).

    Halves weight HBM->VMEM traffic & VMEM residency; biases / LN params stay f32.
    """
    p1, p2 = params["attn_1"], params["attn_2"]
    bf = lambda w: w.astype(_MXU_DTYPE)
    fused = {
        "wq_1": bf(p1["wq"]), "bq_1": p1["bq"],
        "w_kv_1": bf(jnp.concatenate([p1["wk"], p1["wv"]], axis=1)),
        "b_kv_1": jnp.concatenate([p1["bk"], p1["bv"]]),
        "wo_1": bf(p1["wo"]), "bo_1": p1["bo"],
        "wq_2": bf(p2["wq"]), "bq_2": p2["bq"],
        "w_kv_2": bf(jnp.concatenate([p2["wk"], p2["wv"]], axis=1)),
        "b_kv_2": jnp.concatenate([p2["bk"], p2["bv"]]),
        "wo_2": bf(p2["wo"]), "bo_2": p2["bo"],
        "ffn_w1": bf(params["ffn_w1"]), "ffn_b1": params["ffn_b1"],
        "ffn_w2": bf(params["ffn_w2"]), "ffn_b2": params["ffn_b2"],
    }
    for k in ("ln1_g", "ln1_b", "ln2_g", "ln2_b", "ln3_g", "ln3_b"):
        fused[k] = params[k]
    return fused


# ---------------------------------------------------------------------------
# Main
# ---------------------------------------------------------------------------

if __name__ == "__main__":
    # Small shapes consistent with the module (embed divisible by n_heads).
    B, S, S_ENC = 2, 8, 8
    N_HEADS, D, FF = 4, 128, 256

    root = jax.random.PRNGKey(0)
    kx, kenc, kp = jax.random.split(root, 3)

    x = jax.random.normal(kx, (B, S, D), jnp.float32)
    enc = jax.random.normal(kenc, (B, S_ENC, D), jnp.float32)

    params = init_params(kp, D, FF)
    fused = fuse_params(params)

    decoder_fn = jax.jit(functools.partial(decoder_layer, n_heads=N_HEADS))
    out = decoder_fn(x, enc, fused)
    out = jax.block_until_ready(out)

    assert out.shape == (B, S, D)
    assert jnp.all(jnp.isfinite(out))
    print("KERNEL_OK")
</pallas_src>

<mosaic_0001>
module attributes {stable_mosaic.version = 11 : i64} {
  func.func @_fused_attention_kernel(%arg0: i32, %arg1: i32, %arg2: memref<1x8x128xf32, #tpu.memory_space<vmem>>, %arg3: memref<1x8x128xf32, #tpu.memory_space<vmem>>, %arg4: memref<128x128xbf16, #tpu.memory_space<vmem>>, %arg5: memref<1x128xf32, #tpu.memory_space<vmem>>, %arg6: memref<128x256xbf16, #tpu.memory_space<vmem>>, %arg7: memref<1x256xf32, #tpu.memory_space<vmem>>, %arg8: memref<1x8x128xf32, #tpu.memory_space<vmem>>) attributes {dimension_semantics = [#tpu.dimension_semantics<parallel>, #tpu.dimension_semantics<parallel>], iteration_bounds = array<i64: 2, 1>, scalar_prefetch = 0 : i64, scratch_operands = 0 : i64, tpu.core_type = #tpu.core_type<tc>, window_params = [{transform_indices = @transform_0, window_bounds = array<i64: 1, 8, 128>}, {transform_indices = @transform_1, window_bounds = array<i64: 1, 8, 128>}, {pipeline_mode = #tpu.pipeline_mode<synchronous>, transform_indices = @transform_2, window_bounds = array<i64: 128, 128>}, {pipeline_mode = #tpu.pipeline_mode<synchronous>, transform_indices = @transform_3, window_bounds = array<i64: 1, 128>}, {pipeline_mode = #tpu.pipeline_mode<synchronous>, transform_indices = @transform_4, window_bounds = array<i64: 128, 256>}, {pipeline_mode = #tpu.pipeline_mode<synchronous>, transform_indices = @transform_5, window_bounds = array<i64: 1, 256>}, {transform_indices = @transform_6, window_bounds = array<i64: 1, 8, 128>}]} {
    %c0 = arith.constant 0 : index
    %c0_0 = arith.constant 0 : index
    %c0_1 = arith.constant 0 : index
    %0 = vector.load %arg2[%c0, %c0_0, %c0_1] : memref<1x8x128xf32, #tpu.memory_space<vmem>>, vector<1x8x128xf32>
    %1 = vector.shape_cast %0 : vector<1x8x128xf32> to vector<8x128xf32>
    %2 = arith.truncf %1 : vector<8x128xf32> to vector<8x128xbf16>
    %c0_2 = arith.constant 0 : index
    %c0_3 = arith.constant 0 : index
    %c0_4 = arith.constant 0 : index
    %3 = vector.load %arg3[%c0_2, %c0_3, %c0_4] : memref<1x8x128xf32, #tpu.memory_space<vmem>>, vector<1x8x128xf32>
    %4 = vector.shape_cast %3 : vector<1x8x128xf32> to vector<8x128xf32>
    %5 = arith.truncf %4 : vector<8x128xf32> to vector<8x128xbf16>
    %c0_5 = arith.constant 0 : index
    %c0_6 = arith.constant 0 : index
    %6 = vector.load %arg4[%c0_5, %c0_6] : memref<128x128xbf16, #tpu.memory_space<vmem>>, vector<128x128xbf16>
    %cst = arith.constant dense<0.000000e+00> : vector<8x128xf32>
    %7 = tpu.matmul %2, %6, %cst {dimension_numbers = #tpu.dot_dimension_numbers<[1], [0], [0], [1], [0, 0, 1, 1], [], []>} : vector<8x128xbf16>, vector<128x128xbf16>, vector<8x128xf32> -> vector<8x128xf32>
    %c0_7 = arith.constant 0 : index
    %c0_8 = arith.constant 0 : index
    %8 = vector.load %arg5[%c0_7, %c0_8] : memref<1x128xf32, #tpu.memory_space<vmem>>, vector<1x128xf32>
    %9 = vector.broadcast %8 : vector<1x128xf32> to vector<8x128xf32>
    %10 = arith.addf %7, %9 : vector<8x128xf32>
    %c0_9 = arith.constant 0 : index
    %c0_10 = arith.constant 0 : index
    %11 = vector.load %arg6[%c0_9, %c0_10] : memref<128x256xbf16, #tpu.memory_space<vmem>>, vector<128x256xbf16>
    %cst_11 = arith.constant dense<0.000000e+00> : vector<8x256xf32>
    %12 = tpu.matmul %5, %11, %cst_11 {dimension_numbers = #tpu.dot_dimension_numbers<[1], [0], [0], [1], [0, 0, 1, 1], [], []>} : vector<8x128xbf16>, vector<128x256xbf16>, vector<8x256xf32> -> vector<8x256xf32>
    %c0_12 = arith.constant 0 : index
    %c0_13 = arith.constant 0 : index
    %13 = vector.load %arg7[%c0_12, %c0_13] : memref<1x256xf32, #tpu.memory_space<vmem>>, vector<1x256xf32>
    %14 = vector.broadcast %13 : vector<1x256xf32> to vector<8x256xf32>
    %15 = arith.addf %12, %14 : vector<8x256xf32>
    %cst_14 = arith.constant 0.176776692 : f32
    %16 = vector.broadcast %cst_14 : f32 to vector<8x128xf32>
    %17 = arith.mulf %10, %16 : vector<8x128xf32>
    %18 = arith.truncf %17 : vector<8x128xf32> to vector<8x128xbf16>
    %19 = vector.shape_cast %18 : vector<8x128xbf16> to vector<8x4x32xbf16>
    %20 = vector.extract_strided_slice %15 {offsets = [0, 0], sizes = [8, 128], strides = [1, 1]} : vector<8x256xf32> to vector<8x128xf32>
    %21 = arith.truncf %20 : vector<8x128xf32> to vector<8x128xbf16>
    %22 = vector.shape_cast %21 : vector<8x128xbf16> to vector<8x4x32xbf16>
    %23 = vector.extract_strided_slice %15 {offsets = [0, 128], sizes = [8, 128], strides = [1, 1]} : vector<8x256xf32> to vector<8x128xf32>
    %24 = arith.truncf %23 : vector<8x128xf32> to vector<8x128xbf16>
    %25 = vector.shape_cast %24 : vector<8x128xbf16> to vector<8x4x32xbf16>
    "tpu.trace_start"() <{level = 10 : i32, message = "qhd,khd->hqk"}> : () -> ()
    %cst_15 = arith.constant dense<0.000000e+00> : vector<4x8x8xf32>
    %26 = tpu.matmul %19, %22, %cst_15 {dimension_numbers = #tpu.dot_dimension_numbers<[2], [2], [0], [0], [0, 1, 0, 0, 1, 0], [1], [1]>} : vector<8x4x32xbf16>, vector<8x4x32xbf16>, vector<4x8x8xf32> -> vector<4x8x8xf32>
    "tpu.trace_stop"() : () -> ()
    %27 = tpu.iota {dimensions = array<i32: 0>} : vector<8x8xi32>
    %c8_i32 = arith.constant 8 : i32
    %28 = arith.muli %arg1, %c8_i32 : i32
    %29 = vector.broadcast %28 : i32 to vector<8x8xi32>
    %30 = arith.addi %27, %29 : vector<8x8xi32>
    %31 = tpu.iota {dimensions = array<i32: 1>} : vector<8x8xi32>
    %32 = arith.cmpi sgt, %31, %30 : vector<8x8xi32>
    %cst_16 = arith.constant -1.000000e+09 : f32
    %cst_17 = arith.constant 0.000000e+00 : f32
    %33 = vector.broadcast %cst_16 : f32 to vector<8x8xf32>
    %34 = vector.broadcast %cst_17 : f32 to vector<8x8xf32>
    %35 = arith.select %32, %33, %34 : vector<8x8xi1>, vector<8x8xf32>
    %36 = vector.shape_cast %35 : vector<8x8xf32> to vector<1x8x8xf32>
    %37 = vector.broadcast %36 : vector<1x8x8xf32> to vector<4x8x8xf32>
    %38 = arith.addf %26, %37 : vector<4x8x8xf32>
    %cst_18 = arith.constant dense<0xFF800000> : vector<4x8xf32>
    %39 = vector.multi_reduction <maximumf>, %38, %cst_18 [2] : vector<4x8x8xf32> to vector<4x8xf32>
    %40 = vector.shape_cast %39 : vector<4x8xf32> to vector<4x8x1xf32>
    %41 = vector.broadcast %40 : vector<4x8x1xf32> to vector<4x8x8xf32>
    %42 = arith.subf %38, %41 : vector<4x8x8xf32>
    %43 = math.exp %42 : vector<4x8x8xf32>
    %cst_19 = arith.constant dense<0.000000e+00> : vector<4x8xf32>
    %44 = vector.multi_reduction <add>, %43, %cst_19 [2] : vector<4x8x8xf32> to vector<4x8xf32>
    %45 = vector.shape_cast %44 : vector<4x8xf32> to vector<4x8x1xf32>
    %46 = tpu.reciprocal %45 {approx = true} : vector<4x8x1xf32> -> vector<4x8x1xf32>
    %47 = vector.broadcast %46 : vector<4x8x1xf32> to vector<4x8x8xf32>
    %48 = arith.mulf %43, %47 : vector<4x8x8xf32>
    %49 = arith.truncf %48 : vector<4x8x8xf32> to vector<4x8x8xbf16>
    "tpu.trace_start"() <{level = 10 : i32, message = "hqk,khd->qhd"}> : () -> ()
    %cst_20 = arith.constant dense<0.000000e+00> : vector<4x32x8xf32>
    %50 = tpu.matmul %25, %49, %cst_20 {dimension_numbers = #tpu.dot_dimension_numbers<[0], [2], [2], [1], [0, 1, 0, 2, 1, 1], [1], [0]>} : vector<8x4x32xbf16>, vector<4x8x8xbf16>, vector<4x32x8xf32> -> vector<4x32x8xf32>
    %51 = tpu.transpose %50, [2, 0, 1] : vector<4x32x8xf32> -> vector<8x4x32xf32>
    "tpu.trace_stop"() : () -> ()
    %52 = vector.shape_cast %51 : vector<8x4x32xf32> to vector<8x128xf32>
    %c0_21 = arith.constant 0 : index
    %c0_22 = arith.constant 0 : index
    %c0_23 = arith.constant 0 : index
    %53 = vector.load %arg8[%c0_21, %c0_22, %c0_23] : memref<1x8x128xf32, #tpu.memory_space<vmem>>, vector<1x8x128xf32>
    %54 = vector.shape_cast %53 : vector<1x8x128xf32> to vector<8x128xf32>
    %55 = vector.shape_cast %52 : vector<8x128xf32> to vector<1x8x128xf32>
    tpu.vector_store %arg8[%c0_21, %c0_22, %c0_23], %55 {strides = array<i32>} : memref<1x8x128xf32, #tpu.memory_space<vmem>>, vector<1x8x128xf32>,
    return
  }
  func.func @transform_0(%arg0: i32, %arg1: i32) -> (i32, i32, i32) {
    %c0_i32 = arith.constant 0 : i32
    %c0_i32_0 = arith.constant 0 : i32
    return %arg0, %arg1, %c0_i32 : i32, i32, i32
  }
  func.func @transform_1(%arg0: i32, %arg1: i32) -> (i32, i32, i32) {
    %c0_i32 = arith.constant 0 : i32
    %c0_i32_0 = arith.constant 0 : i32
    %c0_i32_1 = arith.constant 0 : i32
    return %arg0, %c0_i32, %c0_i32_0 : i32, i32, i32
  }
  func.func @transform_2(%arg0: i32, %arg1: i32) -> (i32, i32) {
    %c0_i32 = arith.constant 0 : i32
    %c0_i32_0 = arith.constant 0 : i32
    %c0_i32_1 = arith.constant 0 : i32
    return %c0_i32, %c0_i32_0 : i32, i32
  }
  func.func @transform_3(%arg0: i32, %arg1: i32) -> (i32, i32) {
    %c0_i32 = arith.constant 0 : i32
    %c0_i32_0 = arith.constant 0 : i32
    %c0_i32_1 = arith.constant 0 : i32
    return %c0_i32, %c0_i32_0 : i32, i32
  }
  func.func @transform_4(%arg0: i32, %arg1: i32) -> (i32, i32) {
    %c0_i32 = arith.constant 0 : i32
    %c0_i32_0 = arith.constant 0 : i32
    %c0_i32_1 = arith.constant 0 : i32
    return %c0_i32, %c0_i32_0 : i32, i32
  }
  func.func @transform_5(%arg0: i32, %arg1: i32) -> (i32, i32) {
    %c0_i32 = arith.constant 0 : i32
    %c0_i32_0 = arith.constant 0 : i32
    %c0_i32_1 = arith.constant 0 : i32
    return %c0_i32, %c0_i32_0 : i32, i32
  }
  func.func @transform_6(%arg0: i32, %arg1: i32) -> (i32, i32, i32) {
    %c0_i32 = arith.constant 0 : i32
    %c0_i32_0 = arith.constant 0 : i32
    return %arg0, %arg1, %c0_i32 : i32, i32, i32
  }
}

module attributes {stable_mosaic.version = 11 : i64} {
  func.func @_fused_attention_kernel(%arg0: i32, %arg1: i32, %arg2: memref<1x8x128xf32, #tpu.memory_space<vmem>>, %arg3: memref<1x8x128xf32, #tpu.memory_space<vmem>>, %arg4: memref<128x128xbf16, #tpu.memory_space<vmem>>, %arg5: memref<1x128xf32, #tpu.memory_space<vmem>>, %arg6: memref<128x256xbf16, #tpu.memory_space<vmem>>, %arg7: memref<1x256xf32, #tpu.memory_space<vmem>>, %arg8: memref<1x8x128xf32, #tpu.memory_space<vmem>>) attributes {dimension_semantics = [#tpu.dimension_semantics<parallel>, #tpu.dimension_semantics<parallel>], iteration_bounds = array<i64: 2, 1>, scalar_prefetch = 0 : i64, scratch_operands = 0 : i64, tpu.core_type = #tpu.core_type<tc>, window_params = [{transform_indices = @transform_0, window_bounds = array<i64: 1, 8, 128>}, {transform_indices = @transform_1, window_bounds = array<i64: 1, 8, 128>}, {pipeline_mode = #tpu.pipeline_mode<synchronous>, transform_indices = @transform_2, window_bounds = array<i64: 128, 128>}, {pipeline_mode = #tpu.pipeline_mode<synchronous>, transform_indices = @transform_3, window_bounds = array<i64: 1, 128>}, {pipeline_mode = #tpu.pipeline_mode<synchronous>, transform_indices = @transform_4, window_bounds = array<i64: 128, 256>}, {pipeline_mode = #tpu.pipeline_mode<synchronous>, transform_indices = @transform_5, window_bounds = array<i64: 1, 256>}, {transform_indices = @transform_6, window_bounds = array<i64: 1, 8, 128>}]} {
    %c0 = arith.constant 0 : index
    %c0_0 = arith.constant 0 : index
    %c0_1 = arith.constant 0 : index
    %0 = vector.load %arg2[%c0, %c0_0, %c0_1] : memref<1x8x128xf32, #tpu.memory_space<vmem>>, vector<1x8x128xf32>
    %1 = vector.shape_cast %0 : vector<1x8x128xf32> to vector<8x128xf32>
    %2 = arith.truncf %1 : vector<8x128xf32> to vector<8x128xbf16>
    %c0_2 = arith.constant 0 : index
    %c0_3 = arith.constant 0 : index
    %c0_4 = arith.constant 0 : index
    %3 = vector.load %arg3[%c0_2, %c0_3, %c0_4] : memref<1x8x128xf32, #tpu.memory_space<vmem>>, vector<1x8x128xf32>
    %4 = vector.shape_cast %3 : vector<1x8x128xf32> to vector<8x128xf32>
    %5 = arith.truncf %4 : vector<8x128xf32> to vector<8x128xbf16>
    %c0_5 = arith.constant 0 : index
    %c0_6 = arith.constant 0 : index
    %6 = vector.load %arg4[%c0_5, %c0_6] : memref<128x128xbf16, #tpu.memory_space<vmem>>, vector<128x128xbf16>
    %cst = arith.constant dense<0.000000e+00> : vector<8x128xf32>
    %7 = tpu.matmul %2, %6, %cst {dimension_numbers = #tpu.dot_dimension_numbers<[1], [0], [0], [1], [0, 0, 1, 1], [], []>} : vector<8x128xbf16>, vector<128x128xbf16>, vector<8x128xf32> -> vector<8x128xf32>
    %c0_7 = arith.constant 0 : index
    %c0_8 = arith.constant 0 : index
    %8 = vector.load %arg5[%c0_7, %c0_8] : memref<1x128xf32, #tpu.memory_space<vmem>>, vector<1x128xf32>
    %9 = vector.broadcast %8 : vector<1x128xf32> to vector<8x128xf32>
    %10 = arith.addf %7, %9 : vector<8x128xf32>
    %c0_9 = arith.constant 0 : index
    %c0_10 = arith.constant 0 : index
    %11 = vector.load %arg6[%c0_9, %c0_10] : memref<128x256xbf16, #tpu.memory_space<vmem>>, vector<128x256xbf16>
    %cst_11 = arith.constant dense<0.000000e+00> : vector<8x256xf32>
    %12 = tpu.matmul %5, %11, %cst_11 {dimension_numbers = #tpu.dot_dimension_numbers<[1], [0], [0], [1], [0, 0, 1, 1], [], []>} : vector<8x128xbf16>, vector<128x256xbf16>, vector<8x256xf32> -> vector<8x256xf32>
    %c0_12 = arith.constant 0 : index
    %c0_13 = arith.constant 0 : index
    %13 = vector.load %arg7[%c0_12, %c0_13] : memref<1x256xf32, #tpu.memory_space<vmem>>, vector<1x256xf32>
    %14 = vector.broadcast %13 : vector<1x256xf32> to vector<8x256xf32>
    %15 = arith.addf %12, %14 : vector<8x256xf32>
    %cst_14 = arith.constant 0.176776692 : f32
    %16 = vector.broadcast %cst_14 : f32 to vector<8x128xf32>
    %17 = arith.mulf %10, %16 : vector<8x128xf32>
    %18 = arith.truncf %17 : vector<8x128xf32> to vector<8x128xbf16>
    %19 = vector.shape_cast %18 : vector<8x128xbf16> to vector<8x4x32xbf16>
    %20 = vector.extract_strided_slice %15 {offsets = [0, 0], sizes = [8, 128], strides = [1, 1]} : vector<8x256xf32> to vector<8x128xf32>
    %21 = arith.truncf %20 : vector<8x128xf32> to vector<8x128xbf16>
    %22 = vector.shape_cast %21 : vector<8x128xbf16> to vector<8x4x32xbf16>
    %23 = vector.extract_strided_slice %15 {offsets = [0, 128], sizes = [8, 128], strides = [1, 1]} : vector<8x256xf32> to vector<8x128xf32>
    %24 = arith.truncf %23 : vector<8x128xf32> to vector<8x128xbf16>
    %25 = vector.shape_cast %24 : vector<8x128xbf16> to vector<8x4x32xbf16>
    "tpu.trace_start"() <{level = 10 : i32, message = "qhd,khd->hqk"}> : () -> ()
    %cst_15 = arith.constant dense<0.000000e+00> : vector<4x8x8xf32>
    %26 = tpu.matmul %19, %22, %cst_15 {dimension_numbers = #tpu.dot_dimension_numbers<[2], [2], [0], [0], [0, 1, 0, 0, 1, 0], [1], [1]>} : vector<8x4x32xbf16>, vector<8x4x32xbf16>, vector<4x8x8xf32> -> vector<4x8x8xf32>
    "tpu.trace_stop"() : () -> ()
    %cst_16 = arith.constant dense<0xFF800000> : vector<4x8xf32>
    %27 = vector.multi_reduction <maximumf>, %26, %cst_16 [2] : vector<4x8x8xf32> to vector<4x8xf32>
    %28 = vector.shape_cast %27 : vector<4x8xf32> to vector<4x8x1xf32>
    %29 = vector.broadcast %28 : vector<4x8x1xf32> to vector<4x8x8xf32>
    %30 = arith.subf %26, %29 : vector<4x8x8xf32>
    %31 = math.exp %30 : vector<4x8x8xf32>
    %cst_17 = arith.constant dense<0.000000e+00> : vector<4x8xf32>
    %32 = vector.multi_reduction <add>, %31, %cst_17 [2] : vector<4x8x8xf32> to vector<4x8xf32>
    %33 = vector.shape_cast %32 : vector<4x8xf32> to vector<4x8x1xf32>
    %34 = tpu.reciprocal %33 {approx = true} : vector<4x8x1xf32> -> vector<4x8x1xf32>
    %35 = vector.broadcast %34 : vector<4x8x1xf32> to vector<4x8x8xf32>
    %36 = arith.mulf %31, %35 : vector<4x8x8xf32>
    %37 = arith.truncf %36 : vector<4x8x8xf32> to vector<4x8x8xbf16>
    "tpu.trace_start"() <{level = 10 : i32, message = "hqk,khd->qhd"}> : () -> ()
    %cst_18 = arith.constant dense<0.000000e+00> : vector<4x32x8xf32>
    %38 = tpu.matmul %25, %37, %cst_18 {dimension_numbers = #tpu.dot_dimension_numbers<[0], [2], [2], [1], [0, 1, 0, 2, 1, 1], [1], [0]>} : vector<8x4x32xbf16>, vector<4x8x8xbf16>, vector<4x32x8xf32> -> vector<4x32x8xf32>
    %39 = tpu.transpose %38, [2, 0, 1] : vector<4x32x8xf32> -> vector<8x4x32xf32>
    "tpu.trace_stop"() : () -> ()
    %40 = vector.shape_cast %39 : vector<8x4x32xf32> to vector<8x128xf32>
    %c0_19 = arith.constant 0 : index
    %c0_20 = arith.constant 0 : index
    %c0_21 = arith.constant 0 : index
    %41 = vector.load %arg8[%c0_19, %c0_20, %c0_21] : memref<1x8x128xf32, #tpu.memory_space<vmem>>, vector<1x8x128xf32>
    %42 = vector.shape_cast %41 : vector<1x8x128xf32> to vector<8x128xf32>
    %43 = vector.shape_cast %40 : vector<8x128xf32> to vector<1x8x128xf32>
    tpu.vector_store %arg8[%c0_19, %c0_20, %c0_21], %43 {strides = array<i32>} : memref<1x8x128xf32, #tpu.memory_space<vmem>>, vector<1x8x128xf32>,
    return
  }
  func.func @transform_0(%arg0: i32, %arg1: i32) -> (i32, i32, i32) {
    %c0_i32 = arith.constant 0 : i32
    %c0_i32_0 = arith.constant 0 : i32
    return %arg0, %arg1, %c0_i32 : i32, i32, i32
  }
  func.func @transform_1(%arg0: i32, %arg1: i32) -> (i32, i32, i32) {
    %c0_i32 = arith.constant 0 : i32
    %c0_i32_0 = arith.constant 0 : i32
    %c0_i32_1 = arith.constant 0 : i32
    return %arg0, %c0_i32, %c0_i32_0 : i32, i32, i32
  }
  func.func @transform_2(%arg0: i32, %arg1: i32) -> (i32, i32) {
    %c0_i32 = arith.constant 0 : i32
    %c0_i32_0 = arith.constant 0 : i32
    %c0_i32_1 = arith.constant 0 : i32
    return %c0_i32, %c0_i32_0 : i32, i32
  }
  func.func @transform_3(%arg0: i32, %arg1: i32) -> (i32, i32) {
    %c0_i32 = arith.constant 0 : i32
    %c0_i32_0 = arith.constant 0 : i32
    %c0_i32_1 = arith.constant 0 : i32
    return %c0_i32, %c0_i32_0 : i32, i32
  }
  func.func @transform_4(%arg0: i32, %arg1: i32) -> (i32, i32) {
    %c0_i32 = arith.constant 0 : i32
    %c0_i32_0 = arith.constant 0 : i32
    %c0_i32_1 = arith.constant 0 : i32
    return %c0_i32, %c0_i32_0 : i32, i32
  }
  func.func @transform_5(%arg0: i32, %arg1: i32) -> (i32, i32) {
    %c0_i32 = arith.constant 0 : i32
    %c0_i32_0 = arith.constant 0 : i32
    %c0_i32_1 = arith.constant 0 : i32
    return %c0_i32, %c0_i32_0 : i32, i32
  }
  func.func @transform_6(%arg0: i32, %arg1: i32) -> (i32, i32, i32) {
    %c0_i32 = arith.constant 0 : i32
    %c0_i32_0 = arith.constant 0 : i32
    return %arg0, %arg1, %c0_i32 : i32, i32, i32
  }
}

module attributes {stable_mosaic.version = 11 : i64} {
  func.func @_proj_add_ln_kernel(%arg0: i32, %arg1: memref<8x128xf32, #tpu.memory_space<vmem>>, %arg2: memref<128x128xbf16, #tpu.memory_space<vmem>>, %arg3: memref<1x128xf32, #tpu.memory_space<vmem>>, %arg4: memref<8x128xf32, #tpu.memory_space<vmem>>, %arg5: memref<1x128xf32, #tpu.memory_space<vmem>>, %arg6: memref<1x128xf32, #tpu.memory_space<vmem>>, %arg7: memref<8x128xf32, #tpu.memory_space<vmem>>) attributes {dimension_semantics = [#tpu.dimension_semantics<parallel>], iteration_bounds = array<i64: 2>, scalar_prefetch = 0 : i64, scratch_operands = 0 : i64, tpu.core_type = #tpu.core_type<tc>, window_params = [{transform_indices = @transform_0, window_bounds = array<i64: 8, 128>}, {pipeline_mode = #tpu.pipeline_mode<synchronous>, transform_indices = @transform_1, window_bounds = array<i64: 128, 128>}, {pipeline_mode = #tpu.pipeline_mode<synchronous>, transform_indices = @transform_2, window_bounds = array<i64: 1, 128>}, {transform_indices = @transform_3, window_bounds = array<i64: 8, 128>}, {pipeline_mode = #tpu.pipeline_mode<synchronous>, transform_indices = @transform_4, window_bounds = array<i64: 1, 128>}, {pipeline_mode = #tpu.pipeline_mode<synchronous>, transform_indices = @transform_5, window_bounds = array<i64: 1, 128>}, {transform_indices = @transform_6, window_bounds = array<i64: 8, 128>}]} {
    %c0 = arith.constant 0 : index
    %c0_0 = arith.constant 0 : index
    %0 = vector.load %arg1[%c0, %c0_0] : memref<8x128xf32, #tpu.memory_space<vmem>>, vector<8x128xf32>
    %1 = arith.truncf %0 : vector<8x128xf32> to vector<8x128xbf16>
    %c0_1 = arith.constant 0 : index
    %c0_2 = arith.constant 0 : index
    %2 = vector.load %arg2[%c0_1, %c0_2] : memref<128x128xbf16, #tpu.memory_space<vmem>>, vector<128x128xbf16>
    %cst = arith.constant dense<0.000000e+00> : vector<8x128xf32>
    %3 = tpu.matmul %1, %2, %cst {dimension_numbers = #tpu.dot_dimension_numbers<[1], [0], [0], [1], [0, 0, 1, 1], [], []>} : vector<8x128xbf16>, vector<128x128xbf16>, vector<8x128xf32> -> vector<8x128xf32>
    %c0_3 = arith.constant 0 : index
    %c0_4 = arith.constant 0 : index
    %4 = vector.load %arg3[%c0_3, %c0_4] : memref<1x128xf32, #tpu.memory_space<vmem>>, vector<1x128xf32>
    %5 = vector.broadcast %4 : vector<1x128xf32> to vector<8x128xf32>
    %6 = arith.addf %3, %5 : vector<8x128xf32>
    %c0_5 = arith.constant 0 : index
    %c0_6 = arith.constant 0 : index
    %7 = vector.load %arg4[%c0_5, %c0_6] : memref<8x128xf32, #tpu.memory_space<vmem>>, vector<8x128xf32>
    %8 = arith.addf %6, %7 : vector<8x128xf32>
    %cst_7 = arith.constant dense<0.000000e+00> : vector<8xf32>
    %9 = vector.multi_reduction <add>, %8, %cst_7 [1] : vector<8x128xf32> to vector<8xf32>
    %10 = vector.shape_cast %9 : vector<8xf32> to vector<8x1xf32>
    %cst_8 = arith.constant 1.280000e+02 : f32
    %11 = vector.broadcast %cst_8 : f32 to vector<8x1xf32>
    %12 = arith.divf %10, %11 : vector<8x1xf32>
    %13 = vector.broadcast %12 : vector<8x1xf32> to vector<8x128xf32>
    %14 = arith.subf %8, %13 : vector<8x128xf32>
    %15 = vector.broadcast %12 : vector<8x1xf32> to vector<8x128xf32>
    %16 = arith.subf %8, %15 : vector<8x128xf32>
    %17 = arith.mulf %14, %16 : vector<8x128xf32>
    %cst_9 = arith.constant dense<0.000000e+00> : vector<8xf32>
    %18 = vector.multi_reduction <add>, %17, %cst_9 [1] : vector<8x128xf32> to vector<8xf32>
    %19 = vector.shape_cast %18 : vector<8xf32> to vector<8x1xf32>
    %cst_10 = arith.constant 1.280000e+02 : f32
    %20 = vector.broadcast %cst_10 : f32 to vector<8x1xf32>
    %21 = arith.divf %19, %20 : vector<8x1xf32>
    %22 = vector.broadcast %12 : vector<8x1xf32> to vector<8x128xf32>
    %23 = arith.subf %8, %22 : vector<8x128xf32>
    %cst_11 = arith.constant 9.99999974E-6 : f32
    %24 = vector.broadcast %cst_11 : f32 to vector<8x1xf32>
    %25 = arith.addf %21, %24 : vector<8x1xf32>
    %26 = math.rsqrt %25 : vector<8x1xf32>
    %27 = vector.broadcast %26 : vector<8x1xf32> to vector<8x128xf32>
    %28 = arith.mulf %23, %27 : vector<8x128xf32>
    %c0_12 = arith.constant 0 : index
    %c0_13 = arith.constant 0 : index
    %29 = vector.load %arg5[%c0_12, %c0_13] : memref<1x128xf32, #tpu.memory_space<vmem>>, vector<1x128xf32>
    %30 = vector.broadcast %29 : vector<1x128xf32> to vector<8x128xf32>
    %31 = arith.mulf %28, %30 : vector<8x128xf32>
    %c0_14 = arith.constant 0 : index
    %c0_15 = arith.constant 0 : index
    %32 = vector.load %arg6[%c0_14, %c0_15] : memref<1x128xf32, #tpu.memory_space<vmem>>, vector<1x128xf32>
    %33 = vector.broadcast %32 : vector<1x128xf32> to vector<8x128xf32>
    %34 = arith.addf %31, %33 : vector<8x128xf32>
    %c0_16 = arith.constant 0 : index
    %c0_17 = arith.constant 0 : index
    %35 = vector.load %arg7[%c0_16, %c0_17] : memref<8x128xf32, #tpu.memory_space<vmem>>, vector<8x128xf32>
    tpu.vector_store %arg7[%c0_16, %c0_17], %34 {strides = array<i32>} : memref<8x128xf32, #tpu.memory_space<vmem>>, vector<8x128xf32>,
    return
  }
  func.func @transform_0(%arg0: i32) -> (i32, i32) {
    %c0_i32 = arith.constant 0 : i32
    %c0_i32_0 = arith.constant 0 : i32
    return %arg0, %c0_i32 : i32, i32
  }
  func.func @transform_1(%arg0: i32) -> (i32, i32) {
    %c0_i32 = arith.constant 0 : i32
    %c0_i32_0 = arith.constant 0 : i32
    %c0_i32_1 = arith.constant 0 : i32
    return %c0_i32, %c0_i32_0 : i32, i32
  }
  func.func @transform_2(%arg0: i32) -> (i32, i32) {
    %c0_i32 = arith.constant 0 : i32
    %c0_i32_0 = arith.constant 0 : i32
    %c0_i32_1 = arith.constant 0 : i32
    return %c0_i32, %c0_i32_0 : i32, i32
  }
  func.func @transform_3(%arg0: i32) -> (i32, i32) {
    %c0_i32 = arith.constant 0 : i32
    %c0_i32_0 = arith.constant 0 : i32
    return %arg0, %c0_i32 : i32, i32
  }
  func.func @transform_4(%arg0: i32) -> (i32, i32) {
    %c0_i32 = arith.constant 0 : i32
    %c0_i32_0 = arith.constant 0 : i32
    %c0_i32_1 = arith.constant 0 : i32
    return %c0_i32, %c0_i32_0 : i32, i32
  }
  func.func @transform_5(%arg0: i32) -> (i32, i32) {
    %c0_i32 = arith.constant 0 : i32
    %c0_i32_0 = arith.constant 0 : i32
    %c0_i32_1 = arith.constant 0 : i32
    return %c0_i32, %c0_i32_0 : i32, i32
  }
  func.func @transform_6(%arg0: i32) -> (i32, i32) {
    %c0_i32 = arith.constant 0 : i32
    %c0_i32_0 = arith.constant 0 : i32
    return %arg0, %c0_i32 : i32, i32
  }
}

module attributes {stable_mosaic.version = 11 : i64} {
  func.func @_ffn_add_ln_kernel(%arg0: i32, %arg1: i32, %arg2: memref<8x128xf32, #tpu.memory_space<vmem>>, %arg3: memref<128x256xbf16, #tpu.memory_space<vmem>>, %arg4: memref<1x256xf32, #tpu.memory_space<vmem>>, %arg5: memref<256x128xbf16, #tpu.memory_space<vmem>>, %arg6: memref<1x128xf32, #tpu.memory_space<vmem>>, %arg7: memref<1x128xf32, #tpu.memory_space<vmem>>, %arg8: memref<1x128xf32, #tpu.memory_space<vmem>>, %arg9: memref<8x128xf32, #tpu.memory_space<vmem>>, %arg10: memref<8x128xf32, #tpu.memory_space<vmem>>) attributes {dimension_semantics = [#tpu.dimension_semantics<parallel>, #tpu.dimension_semantics<arbitrary>], iteration_bounds = array<i64: 2, 1>, scalar_prefetch = 0 : i64, scratch_operands = 1 : i64, tpu.core_type = #tpu.core_type<tc>, window_params = [{transform_indices = @transform_0, window_bounds = array<i64: 8, 128>}, {transform_indices = @transform_1, window_bounds = array<i64: 128, 256>}, {transform_indices = @transform_2, window_bounds = array<i64: 1, 256>}, {transform_indices = @transform_3, window_bounds = array<i64: 256, 128>}, {pipeline_mode = #tpu.pipeline_mode<synchronous>, transform_indices = @transform_4, window_bounds = array<i64: 1, 128>}, {pipeline_mode = #tpu.pipeline_mode<synchronous>, transform_indices = @transform_5, window_bounds = array<i64: 1, 128>}, {pipeline_mode = #tpu.pipeline_mode<synchronous>, transform_indices = @transform_6, window_bounds = array<i64: 1, 128>}, {transform_indices = @transform_7, window_bounds = array<i64: 8, 128>}]} {
    %c0_i32 = arith.constant 0 : i32
    %0 = arith.cmpi eq, %arg1, %c0_i32 : i32
    %1 = arith.extui %0 : i1 to i32
    %c0_i32_0 = arith.constant 0 : i32
    %2 = arith.cmpi ne, %1, %c0_i32_0 : i32
    scf.if %2 {
      %cst_16 = arith.constant 0.000000e+00 : f32
      %21 = vector.broadcast %cst_16 : f32 to vector<8x128xf32>
      %c0_17 = arith.constant 0 : index
      %c0_18 = arith.constant 0 : index
      %22 = vector.load %arg10[%c0_17, %c0_18] : memref<8x128xf32, #tpu.memory_space<vmem>>, vector<8x128xf32>
      tpu.vector_store %arg10[%c0_17, %c0_18], %21 {strides = array<i32>} : memref<8x128xf32, #tpu.memory_space<vmem>>, vector<8x128xf32>,
    } else {
    }
    %c0 = arith.constant 0 : index
    %c0_1 = arith.constant 0 : index
    %3 = vector.load %arg2[%c0, %c0_1] : memref<8x128xf32, #tpu.memory_space<vmem>>, vector<8x128xf32>
    %4 = arith.truncf %3 : vector<8x128xf32> to vector<8x128xbf16>
    %c0_2 = arith.constant 0 : index
    %c0_3 = arith.constant 0 : index
    %5 = vector.load %arg3[%c0_2, %c0_3] : memref<128x256xbf16, #tpu.memory_space<vmem>>, vector<128x256xbf16>
    %cst = arith.constant dense<0.000000e+00> : vector<8x256xf32>
    %6 = tpu.matmul %4, %5, %cst {dimension_numbers = #tpu.dot_dimension_numbers<[1], [0], [0], [1], [0, 0, 1, 1], [], []>} : vector<8x128xbf16>, vector<128x256xbf16>, vector<8x256xf32> -> vector<8x256xf32>
    %c0_4 = arith.constant 0 : index
    %c0_5 = arith.constant 0 : index
    %7 = vector.load %arg4[%c0_4, %c0_5] : memref<1x256xf32, #tpu.memory_space<vmem>>, vector<1x256xf32>
    %8 = vector.broadcast %7 : vector<1x256xf32> to vector<8x256xf32>
    %9 = arith.addf %6, %8 : vector<8x256xf32>
    %cst_6 = arith.constant 0.000000e+00 : f32
    %10 = vector.broadcast %cst_6 : f32 to vector<8x256xf32>
    %11 = arith.maximumf %9, %10 : vector<8x256xf32>
    %c0_7 = arith.constant 0 : index
    %c0_8 = arith.constant 0 : index
    %12 = vector.load %arg10[%c0_7, %c0_8] : memref<8x128xf32, #tpu.memory_space<vmem>>, vector<8x128xf32>
    %13 = arith.truncf %11 : vector<8x256xf32> to vector<8x256xbf16>
    %c0_9 = arith.constant 0 : index
    %c0_10 = arith.constant 0 : index
    %14 = vector.load %arg5[%c0_9, %c0_10] : memref<256x128xbf16, #tpu.memory_space<vmem>>, vector<256x128xbf16>
    %cst_11 = arith.constant dense<0.000000e+00> : vector<8x128xf32>
    %15 = tpu.matmul %13, %14, %cst_11 {dimension_numbers = #tpu.dot_dimension_numbers<[1], [0], [0], [1], [0, 0, 1, 1], [], []>} : vector<8x256xbf16>, vector<256x128xbf16>, vector<8x128xf32> -> vector<8x128xf32>
    %16 = arith.addf %12, %15 : vector<8x128xf32>
    %c0_12 = arith.constant 0 : index
    %c0_13 = arith.constant 0 : index
    %17 = vector.load %arg10[%c0_12, %c0_13] : memref<8x128xf32, #tpu.memory_space<vmem>>, vector<8x128xf32>
    tpu.vector_store %arg10[%c0_12, %c0_13], %16 {strides = array<i32>} : memref<8x128xf32, #tpu.memory_space<vmem>>, vector<8x128xf32>,
    %c0_i32_14 = arith.constant 0 : i32
    %18 = arith.cmpi eq, %arg1, %c0_i32_14 : i32
    %19 = arith.extui %18 : i1 to i32
    %c0_i32_15 = arith.constant 0 : i32
    %20 = arith.cmpi ne, %19, %c0_i32_15 : i32
    scf.if %20 {
      %c0_16 = arith.constant 0 : index
      %c0_17 = arith.constant 0 : index
      %21 = vector.load %arg10[%c0_16, %c0_17] : memref<8x128xf32, #tpu.memory_space<vmem>>, vector<8x128xf32>
      %22 = arith.addf %3, %21 : vector<8x128xf32>
      %c0_18 = arith.constant 0 : index
      %c0_19 = arith.constant 0 : index
      %23 = vector.load %arg6[%c0_18, %c0_19] : memref<1x128xf32, #tpu.memory_space<vmem>>, vector<1x128xf32>
      %24 = vector.broadcast %23 : vector<1x128xf32> to vector<8x128xf32>
      %25 = arith.addf %22, %24 : vector<8x128xf32>
      %cst_20 = arith.constant dense<0.000000e+00> : vector<8xf32>
      %26 = vector.multi_reduction <add>, %25, %cst_20 [1] : vector<8x128xf32> to vector<8xf32>
      %27 = vector.shape_cast %26 : vector<8xf32> to vector<8x1xf32>
      %cst_21 = arith.constant 1.280000e+02 : f32
      %28 = vector.broadcast %cst_21 : f32 to vector<8x1xf32>
      %29 = arith.divf %27, %28 : vector<8x1xf32>
      %30 = vector.broadcast %29 : vector<8x1xf32> to vector<8x128xf32>
      %31 = arith.subf %25, %30 : vector<8x128xf32>
      %32 = vector.broadcast %29 : vector<8x1xf32> to vector<8x128xf32>
      %33 = arith.subf %25, %32 : vector<8x128xf32>
      %34 = arith.mulf %31, %33 : vector<8x128xf32>
      %cst_22 = arith.constant dense<0.000000e+00> : vector<8xf32>
      %35 = vector.multi_reduction <add>, %34, %cst_22 [1] : vector<8x128xf32> to vector<8xf32>
      %36 = vector.shape_cast %35 : vector<8xf32> to vector<8x1xf32>
      %cst_23 = arith.constant 1.280000e+02 : f32
      %37 = vector.broadcast %cst_23 : f32 to vector<8x1xf32>
      %38 = arith.divf %36, %37 : vector<8x1xf32>
      %39 = vector.broadcast %29 : vector<8x1xf32> to vector<8x128xf32>
      %40 = arith.subf %25, %39 : vector<8x128xf32>
      %cst_24 = arith.constant 9.99999974E-6 : f32
      %41 = vector.broadcast %cst_24 : f32 to vector<8x1xf32>
      %42 = arith.addf %38, %41 : vector<8x1xf32>
      %43 = math.rsqrt %42 : vector<8x1xf32>
      %44 = vector.broadcast %43 : vector<8x1xf32> to vector<8x128xf32>
      %45 = arith.mulf %40, %44 : vector<8x128xf32>
      %c0_25 = arith.constant 0 : index
      %c0_26 = arith.constant 0 : index
      %46 = vector.load %arg7[%c0_25, %c0_26] : memref<1x128xf32, #tpu.memory_space<vmem>>, vector<1x128xf32>
      %47 = vector.broadcast %46 : vector<1x128xf32> to vector<8x128xf32>
      %48 = arith.mulf %45, %47 : vector<8x128xf32>
      %c0_27 = arith.constant 0 : index
      %c0_28 = arith.constant 0 : index
      %49 = vector.load %arg8[%c0_27, %c0_28] : memref<1x128xf32, #tpu.memory_space<vmem>>, vector<1x128xf32>
      %50 = vector.broadcast %49 : vector<1x128xf32> to vector<8x128xf32>
      %51 = arith.addf %48, %50 : vector<8x128xf32>
      %c0_29 = arith.constant 0 : index
      %c0_30 = arith.constant 0 : index
      %52 = vector.load %arg9[%c0_29, %c0_30] : memref<8x128xf32, #tpu.memory_space<vmem>>, vector<8x128xf32>
      tpu.vector_store %arg9[%c0_29, %c0_30], %51 {strides = array<i32>} : memref<8x128xf32, #tpu.memory_space<vmem>>, vector<8x128xf32>,
    } else {
    }
    return
  }
  func.func @transform_0(%arg0: i32, %arg1: i32) -> (i32, i32) {
    %c0_i32 = arith.constant 0 : i32
    %c0_i32_0 = arith.constant 0 : i32
    return %arg0, %c0_i32 : i32, i32
  }
  func.func @transform_1(%arg0: i32, %arg1: i32) -> (i32, i32) {
    %c0_i32 = arith.constant 0 : i32
    %c0_i32_0 = arith.constant 0 : i32
    return %c0_i32, %arg1 : i32, i32
  }
  func.func @transform_2(%arg0: i32, %arg1: i32) -> (i32, i32) {
    %c0_i32 = arith.constant 0 : i32
    %c0_i32_0 = arith.constant 0 : i32
    return %c0_i32, %arg1 : i32, i32
  }
  func.func @transform_3(%arg0: i32, %arg1: i32) -> (i32, i32) {
    %c0_i32 = arith.constant 0 : i32
    %c0_i32_0 = arith.constant 0 : i32
    return %arg1, %c0_i32 : i32, i32
  }
  func.func @transform_4(%arg0: i32, %arg1: i32) -> (i32, i32) {
    %c0_i32 = arith.constant 0 : i32
    %c0_i32_0 = arith.constant 0 : i32
    %c0_i32_1 = arith.constant 0 : i32
    return %c0_i32, %c0_i32_0 : i32, i32
  }
  func.func @transform_5(%arg0: i32, %arg1: i32) -> (i32, i32) {
    %c0_i32 = arith.constant 0 : i32
    %c0_i32_0 = arith.constant 0 : i32
    %c0_i32_1 = arith.constant 0 : i32
    return %c0_i32, %c0_i32_0 : i32, i32
  }
  func.func @transform_6(%arg0: i32, %arg1: i32) -> (i32, i32) {
    %c0_i32 = arith.constant 0 : i32
    %c0_i32_0 = arith.constant 0 : i32
    %c0_i32_1 = arith.constant 0 : i32
    return %c0_i32, %c0_i32_0 : i32, i32
  }
  func.func @transform_7(%arg0: i32, %arg1: i32) -> (i32, i32) {
    %c0_i32 = arith.constant 0 : i32
    %c0_i32_0 = arith.constant 0 : i32
    return %arg0, %c0_i32 : i32, i32
  }
}

</mosaic_0001>

<llo_original>
// kernel: decoder_layer.6
$region0: #{decoder_layer.6}
  #allocation0 [shape = 'u32[]', space=smem, size = 0x4, offset = 0x4, fixed_abs, tag = 'smem constant byte address 0x4 - core index']
  #allocation1 [shape = 'u32[144,128]{1,0:T(1,128)}', space=vmem, size = 0x12000, scoped, tag = 'internal scratch']
  %s0 = inlined_call_operand.vmem [shape: f32[16,128], index: 0, kind: input, shape index: {}]
  %s1 = inlined_call_operand.vmem [shape: bf16[128,128], index: 1, kind: input, shape index: {}]
  %s2 = inlined_call_operand.vmem [shape: f32[1,128], index: 2, kind: input, shape index: {}]
  %s3 = inlined_call_operand.vmem [shape: f32[16,128], index: 3, kind: input, shape index: {}]
  %s4 = inlined_call_operand.vmem [shape: f32[1,128], index: 4, kind: input, shape index: {}]
  %s5 = inlined_call_operand.vmem [shape: f32[1,128], index: 5, kind: input, shape index: {}]
  %s6 = inlined_call_operand.vmem [shape: f32[16,128], index: 6, kind: output, shape index: {}]
  %s7 = sld [smem:[#allocation0]]
  $region57: #{decoder_layer.6} parent=0
    _
  %s9 = ssub.s32 1, %s7
  %s10 = scalar_select 0, %s9, %s7
  loop: start=0, step=1, limit=4
  $region2: #{decoder_layer.6} parent=0 // loop_pre_header
    _
  $region3: #{decoder_layer.6} parent=0 // loop_header
    %s12 = sphi 0, %s16
    %p13 = scmp.ge.s32.totalorder %s12, 4
    %s22 = sphi 0, %s24
    %s25 = sphi 0, %s22
    %s26 = sphi 0, %s25
    %s42 = sphi 0, %s26
    %s46 = sphi 0, %s46
    %s48 = sphi 0, %s46
    %s49 = sphi 0, %s48
    %s63 = sphi 0, %s49
    %s67 = sphi 0, %s67
    %s69 = sphi 0, %s67
    %s70 = sphi 0, %s69
    %s84 = sphi 0, %s70
    %s90 = sphi 0, %s92
    %s93 = sphi 0, %s90
    %s94 = sphi 0, %s93
    %s110 = sphi 0, %s94
    %s114 = sphi 0, %s114
    %s116 = sphi 0, %s114
    %s117 = sphi 0, %s116
    %s131 = sphi 0, %s117
    %s135 = sphi 0, %s135
    %s137 = sphi 0, %s135
    %s138 = sphi 0, %s137
    %s152 = sphi 0, %s138
    %s158 = sphi 0, %s160
    %s161 = sphi 0, %s158
    %s162 = sphi 0, %s161
    %s178 = sphi 0, %s162
  $region4: #{decoder_layer.6} parent=0 // loop_header_branch
    %15 = sbr.rel (%p13) target = $region8
  $region5: #{decoder_layer.6} parent=0 // loop_body
    %s17 = ssub.s32 %s12, 1
    %s18 = ssub.s32 %s12, 2
    %s19 = sadd.s32 %s12, 1
    %s20 = ssub.s32 %s12, %s19
    %p21 = scmp.eq.s32.totalorder %s20, 0
    %s23 = sadd.s32 %s22, 1
    %s24 = scalar_select %p21, %s22, %s23
    %p27 = pneg %p21
    %p28 = scmp.eq.s32.totalorder %s12, 1
    %p29 = por %p27, %p28
    %p30 = scmp.ne.s32.totalorder %s22, %s25
    %p31 = scmp.eq.s32.totalorder %s12, 0
    %p32 = por %p30, %p31
    %p33 = scmp.ne.s32.totalorder %s22, %s25
    %p34 = scmp.eq.s32.totalorder %s17, 1
    %p35 = por %p33, %p34
    %p36 = scmp.ne.s32.totalorder %s25, %s26
    %p37 = scmp.eq.s32.totalorder %s17, 0
    %p38 = por %p36, %p37
    %p39 = scmp.ne.s32.totalorder %s25, %s26
    %p40 = scmp.eq.s32.totalorder %s18, 1
    %p41 = por %p39, %p40
    %p43 = scmp.ne.s32.totalorder %s26, %s42
    %p44 = scmp.eq.s32.totalorder %s18, 0
    %p45 = por %p43, %p44
    %s47 = sadd.s32 %s46, 1
    %p50 = scmp.eq.s32.totalorder %s12, 1
    %p51 = scmp.ne.s32.totalorder %s46, %s48
    %p52 = scmp.eq.s32.totalorder %s12, 0
    %p53 = por %p51, %p52
    %p54 = scmp.ne.s32.totalorder %s46, %s48
    %p55 = scmp.eq.s32.totalorder %s17, 1
    %p56 = por %p54, %p55
    %p57 = scmp.ne.s32.totalorder %s48, %s49
    %p58 = scmp.eq.s32.totalorder %s17, 0
    %p59 = por %p57, %p58
    %p60 = scmp.ne.s32.totalorder %s48, %s49
    %p61 = scmp.eq.s32.totalorder %s18, 1
    %p62 = por %p60, %p61
    %p64 = scmp.ne.s32.totalorder %s49, %s63
    %p65 = scmp.eq.s32.totalorder %s18, 0
    %p66 = por %p64, %p65
    %s68 = sadd.s32 %s67, 1
    %p71 = scmp.eq.s32.totalorder %s12, 1
    %p72 = scmp.ne.s32.totalorder %s67, %s69
    %p73 = scmp.eq.s32.totalorder %s12, 0
    %p74 = por %p72, %p73
    %p75 = scmp.ne.s32.totalorder %s67, %s69
    %p76 = scmp.eq.s32.totalorder %s17, 1
    %p77 = por %p75, %p76
    %p78 = scmp.ne.s32.totalorder %s69, %s70
    %p79 = scmp.eq.s32.totalorder %s17, 0
    %p80 = por %p78, %p79
    %p81 = scmp.ne.s32.totalorder %s69, %s70
    %p82 = scmp.eq.s32.totalorder %s18, 1
    %p83 = por %p81, %p82
    %p85 = scmp.ne.s32.totalorder %s70, %s84
    %p86 = scmp.eq.s32.totalorder %s18, 0
    %p87 = por %p85, %p86
    %s88 = ssub.s32 %s12, %s19
    %p89 = scmp.eq.s32.totalorder %s88, 0
    %s91 = sadd.s32 %s90, 1
    %s92 = scalar_select %p89, %s90, %s91
    %p95 = pneg %p89
    %p96 = scmp.eq.s32.totalorder %s12, 1
    %p97 = por %p95, %p96
    %p98 = scmp.ne.s32.totalorder %s90, %s93
    %p99 = scmp.eq.s32.totalorder %s12, 0
    %p100 = por %p98, %p99
    %p101 = scmp.ne.s32.totalorder %s90, %s93
    %p102 = scmp.eq.s32.totalorder %s17, 1
    %p103 = por %p101, %p102
    %p104 = scmp.ne.s32.totalorder %s93, %s94
    %p105 = scmp.eq.s32.totalorder %s17, 0
    %p106 = por %p104, %p105
    %p107 = scmp.ne.s32.totalorder %s93, %s94
    %p108 = scmp.eq.s32.totalorder %s18, 1
    %p109 = por %p107, %p108
    %p111 = scmp.ne.s32.totalorder %s94, %s110
    %p112 = scmp.eq.s32.totalorder %s18, 0
    %p113 = por %p111, %p112
    %s115 = sadd.s32 %s114, 1
    %p118 = scmp.eq.s32.totalorder %s12, 1
    %p119 = scmp.ne.s32.totalorder %s114, %s116
    %p120 = scmp.eq.s32.totalorder %s12, 0
    %p121 = por %p119, %p120
    %p122 = scmp.ne.s32.totalorder %s114, %s116
    %p123 = scmp.eq.s32.totalorder %s17, 1
    %p124 = por %p122, %p123
    %p125 = scmp.ne.s32.totalorder %s116, %s117
    %p126 = scmp.eq.s32.totalorder %s17, 0
    %p127 = por %p125, %p126
    %p128 = scmp.ne.s32.totalorder %s116, %s117
    %p129 = scmp.eq.s32.totalorder %s18, 1
    %p130 = por %p128, %p129
    %p132 = scmp.ne.s32.totalorder %s117, %s131
    %p133 = scmp.eq.s32.totalorder %s18, 0
    %p134 = por %p132, %p133
    %s136 = sadd.s32 %s135, 1
    %p139 = scmp.eq.s32.totalorder %s12, 1
    %p140 = scmp.ne.s32.totalorder %s135, %s137
    %p141 = scmp.eq.s32.totalorder %s12, 0
    %p142 = por %p140, %p141
    %p143 = scmp.ne.s32.totalorder %s135, %s137
    %p144 = scmp.eq.s32.totalorder %s17, 1
    %p145 = por %p143, %p144
    %p146 = scmp.ne.s32.totalorder %s137, %s138
    %p147 = scmp.eq.s32.totalorder %s17, 0
    %p148 = por %p146, %p147
    %p149 = scmp.ne.s32.totalorder %s137, %s138
    %p150 = scmp.eq.s32.totalorder %s18, 1
    %p151 = por %p149, %p150
    %p153 = scmp.ne.s32.totalorder %s138, %s152
    %p154 = scmp.eq.s32.totalorder %s18, 0
    %p155 = por %p153, %p154
    %s156 = ssub.s32 %s12, %s19
    %p157 = scmp.eq.s32.totalorder %s156, 0
    %s159 = sadd.s32 %s158, 1
    %s160 = scalar_select %p157, %s158, %s159
    %p163 = pneg %p157
    %p164 = scmp.eq.s32.totalorder %s12, 1
    %p165 = por %p163, %p164
    %p166 = scmp.ne.s32.totalorder %s158, %s161
    %p167 = scmp.eq.s32.totalorder %s12, 0
    %p168 = por %p166, %p167
    %p169 = scmp.ne.s32.totalorder %s158, %s161
    %p170 = scmp.eq.s32.totalorder %s17, 1
    %p171 = por %p169, %p170
    %p172 = scmp.ne.s32.totalorder %s161, %s162
    %p173 = scmp.eq.s32.totalorder %s17, 0
    %p174 = por %p172, %p173
    %p175 = scmp.ne.s32.totalorder %s161, %s162
    %p176 = scmp.eq.s32.totalorder %s18, 1
    %p177 = por %p175, %p176
    %p179 = scmp.ne.s32.totalorder %s162, %s178
    %p180 = scmp.eq.s32.totalorder %s18, 0
    %p181 = por %p179, %p180
    %p182 = scmp.le.s32.totalorder 1, %s12
    %p183 = scmp.lt.s32.totalorder %s12, 3
    %p184 = pnand %p182, %p183
    %p185 = pneg %p184
    // Predicated region
    $region9: #{decoder_layer.6} parent=5 // pred_check
      _
    $region10: #{decoder_layer.6} parent=5 // pred_check_branch
      %187 = sbr.rel (%p184) target = $region12
    $region11: #{decoder_layer.6} parent=5 // pred_region
      %s188 = ssub.s32 %s12, 1
      // Predicated region
      $region13: #{decoder_layer.6} parent=11 // pred_check
        %p189 = pneg %p59
      $region14: #{decoder_layer.6} parent=11 // pred_check_branch
        %191 = sbr.rel (%p189) target = $region16
      $region15: #{decoder_layer.6} parent=11 // pred_region
        _
      $region16: #{decoder_layer.6} parent=11 // pred_fallthru
        _
      // Predicated region
      $region17: #{decoder_layer.6} parent=11 // pred_check
        %p192 = pneg %p80
      $region18: #{decoder_layer.6} parent=11 // pred_check_branch
        %194 = sbr.rel (%p192) target = $region20
      $region19: #{decoder_layer.6} parent=11 // pred_region
        _
      $region20: #{decoder_layer.6} parent=11 // pred_fallthru
        _
      // Predicated region
      $region21: #{decoder_layer.6} parent=11 // pred_check
        %p195 = pneg %p127
      $region22: #{decoder_layer.6} parent=11 // pred_check_branch
        %197 = sbr.rel (%p195) target = $region24
      $region23: #{decoder_layer.6} parent=11 // pred_region
        _
      $region24: #{decoder_layer.6} parent=11 // pred_fallthru
        _
      // Predicated region
      $region25: #{decoder_layer.6} parent=11 // pred_check
        %p198 = pneg %p148
      $region26: #{decoder_layer.6} parent=11 // pred_check_branch
        %200 = sbr.rel (%p198) target = $region28
      $region27: #{decoder_layer.6} parent=11 // pred_region
        _
      $region28: #{decoder_layer.6} parent=11 // pred_fallthru
        _
    $region12: #{decoder_layer.6} parent=5 // pred_fallthru
      _
    %p201 = scmp.lt.s32.totalorder %s12, 2
    // Predicated region
    $region29: #{decoder_layer.6} parent=5 // pred_check
      %p202 = pneg %p201
    $region30: #{decoder_layer.6} parent=5 // pred_check_branch
      %204 = sbr.rel (%p202) target = $region32
    $region31: #{decoder_layer.6} parent=5 // pred_region
      // Predicated region
      $region33: #{decoder_layer.6} parent=31 // pred_check
        %p205 = pneg %p32
      $region34: #{decoder_layer.6} parent=31 // pred_check_branch
        %207 = sbr.rel (%p205) target = $region36
      $region35: #{decoder_layer.6} parent=31 // pred_region
        %p208 = scmp.lt.s32.totalorder %s12, 1
        %s209 = scalar_select %p208, %s12, 1
        %s210 = smul.addr %s209, 8
        %s211 = scalar_lea.vmem %s0, %s210
      $region36: #{decoder_layer.6} parent=31 // pred_fallthru
        _
      // Predicated region
      $region37: #{decoder_layer.6} parent=31 // pred_check
        %p212 = pneg %p100
      $region38: #{decoder_layer.6} parent=31 // pred_check_branch
        %214 = sbr.rel (%p212) target = $region40
      $region39: #{decoder_layer.6} parent=31 // pred_region
        %p215 = scmp.lt.s32.totalorder %s12, 1
        %s216 = scalar_select %p215, %s12, 1
        %s217 = smul.addr %s216, 8
        %s218 = scalar_lea.vmem %s3, %s217
      $region40: #{decoder_layer.6} parent=31 // pred_fallthru
        _
    $region32: #{decoder_layer.6} parent=5 // pred_fallthru
      _
    %p219 = scmp.le.s32.totalorder 1, %s12
    %p220 = scmp.lt.s32.totalorder %s12, 3
    %p221 = pnand %p219, %p220
    %p222 = pneg %p221
    // Predicated region
    $region41: #{decoder_layer.6} parent=5 // pred_check
      _
    $region42: #{decoder_layer.6} parent=5 // pred_check_branch
      %224 = sbr.rel (%p221) target = $region44
    $region43: #{decoder_layer.6} parent=5 // pred_region
      %s225 = ssub.s32 %s12, 1
      %p226 = scmp.lt.s32.totalorder %s17, 1
      %s227 = scalar_select %p226, %s17, 1
      %s228 = smul.addr %s227, 8
      %s229 = scalar_lea.vmem %s0, %s228
      %p230 = pneg %p38
      %p231 = pneg %p35
      %p232 = pneg %p59
      %p233 = pneg %p56
      %p234 = pneg %p80
      %p235 = pneg %p77
      %p236 = scmp.lt.s32.totalorder %s17, 1
      %s237 = scalar_select %p236, %s17, 1
      %s238 = smul.addr %s237, 8
      %s239 = scalar_lea.vmem %s3, %s238
      %p240 = pneg %p106
      %p241 = pneg %p103
      %p242 = pneg %p127
      %p243 = pneg %p124
      %p244 = pneg %p148
      %p245 = pneg %p145
      %p246 = pneg %p174
      %p247 = pneg %p171
      %p248 = scmp.lt.s32.totalorder %s17, 1
      %s249 = scalar_select %p248, %s17, 1
      %s250 = smul.addr %s249, 8
      %s251 = scalar_lea.vmem %s6, %s250
      %p252 = scmp.lt.s32.totalorder %s17, 1
      %s253 = scalar_select %p252, %s17, 1
      %s254 = smul.addr %s253, 8
      %s255 = scalar_lea.vmem %s0, %s254
      %p256 = scmp.lt.s32.totalorder %s17, 1
      %s257 = scalar_select %p256, %s17, 1
      %s258 = smul.addr %s257, 8
      %s259 = scalar_lea.vmem %s3, %s258
      %p260 = scmp.lt.s32.totalorder %s17, 1
      %s261 = scalar_select %p260, %s17, 1
      %s262 = smul.addr %s261, 8
      %s263 = scalar_lea.vmem %s6, %s262
      %v265 = vld [vmem:[%s255] sm:$0xff]
      %v266 = vpack.c.bf16 %v265, %v265
      %v267 = vld [vmem:[%s1] sm:$0xf]
      %v268 = vld [vmem:[%s1 + $0x4] sm:$0xf]
      %v269 = vld [vmem:[%s1 + $0x8] sm:$0xf]
      %v270 = vld [vmem:[%s1 + $0xc] sm:$0xf]
      %v271 = vld [vmem:[%s1 + $0x10] sm:$0xf]
      %v272 = vld [vmem:[%s1 + $0x14] sm:$0xf]
      %v273 = vld [vmem:[%s1 + $0x18] sm:$0xf]
      %v274 = vld [vmem:[%s1 + $0x1c] sm:$0xf]
      %v275 = vld [vmem:[%s1 + $0x20] sm:$0xf]
      %v276 = vld [vmem:[%s1 + $0x24] sm:$0xf]
      %v277 = vld [vmem:[%s1 + $0x28] sm:$0xf]
      %v278 = vld [vmem:[%s1 + $0x2c] sm:$0xf]
      %v279 = vld [vmem:[%s1 + $0x30] sm:$0xf]
      %v280 = vld [vmem:[%s1 + $0x34] sm:$0xf]
      %v281 = vld [vmem:[%s1 + $0x38] sm:$0xf]
      %v282 = vld [vmem:[%s1 + $0x3c] sm:$0xf]
      %v283 = vld [vmem:[%s2] sm:$0x1]
      %v285 = vlaneseq
      %v286 = vshrl.u32 %v285, 7
      %v287 = vsub.s32 0, %v286
      %v288 = vrot.slane %v283, %v287
      %v306 = vunpack.c.l.b16 %v267
      %v307 = vunpack.c.l.b16 %v268
      %v308 = vunpack.c.l.b16 %v269
      %v309 = vunpack.c.l.b16 %v270
      %v310 = vunpack.c.l.b16 %v271
      %v311 = vunpack.c.l.b16 %v272
      %v312 = vunpack.c.l.b16 %v273
      %v313 = vunpack.c.l.b16 %v274
      %v314 = vunpack.c.l.b16 %v275
      %v315 = vunpack.c.l.b16 %v276
      %v316 = vunpack.c.l.b16 %v277
      %v317 = vunpack.c.l.b16 %v278
      %v318 = vunpack.c.l.b16 %v279
      %v319 = vunpack.c.l.b16 %v280
      %v320 = vunpack.c.l.b16 %v281
      %v321 = vunpack.c.l.b16 %v282
      %v322 = vpack.c.b16 %v307, %v306
      %v323 = vpack.c.b16 %v309, %v308
      %v324 = vpack.c.b16 %v311, %v310
      %v325 = vpack.c.b16 %v313, %v312
      %v326 = vpack.c.b16 %v315, %v314
      %v327 = vpack.c.b16 %v317, %v316
      %v328 = vpack.c.b16 %v319, %v318
      %v329 = vpack.c.b16 %v321, %v320
      %338 = vmatprep.subr.bf16.mxu0 0
      %339 = vmatpush1.bf16.msra.mxu0 %v322
      %340 = vmatprep.subr.bf16.mxu0 0
      %341 = vmatpush1.bf16.msra.mxu0 %v323
      %342 = vmatprep.subr.bf16.mxu0 0
      %343 = vmatpush1.bf16.msra.mxu0 %v324
      %344 = vmatprep.subr.bf16.mxu0 0
      %345 = vmatpush1.bf16.msra.mxu0 %v325
      %346 = vmatprep.subr.bf16.mxu0 0
      %347 = vmatpush1.bf16.msra.mxu0 %v326
      %348 = vmatprep.subr.bf16.mxu0 0
      %349 = vmatpush1.bf16.msra.mxu0 %v327
      %350 = vmatprep.subr.bf16.mxu0 0
      %351 = vmatpush1.bf16.msra.mxu0 %v328
      %352 = vmatprep.subr.bf16.mxu0 0
      %353 = vmatpush1.bf16.msra.mxu0 %v329
      %354 = vmatprep.subr.bf16.mxu0 0
      %355 = vmatpush1.bf16.msra.mxu0 0
      %356 = vmatprep.subr.bf16.mxu0 0
      %357 = vmatpush1.bf16.msra.mxu0 0
      %358 = vmatprep.subr.bf16.mxu0 0
      %359 = vmatpush1.bf16.msra.mxu0 0
      %360 = vmatprep.subr.bf16.mxu0 0
      %361 = vmatpush1.bf16.msra.mxu0 0
      %362 = vmatprep.subr.bf16.mxu0 0
      %363 = vmatpush1.bf16.msra.mxu0 0
      %364 = vmatprep.subr.bf16.mxu0 0
      %365 = vmatpush1.bf16.msra.mxu0 0
      %366 = vmatprep.subr.bf16.mxu0 0
      %367 = vmatpush1.bf16.msra.mxu0 0
      %368 = vmatprep.subr.bf16.mxu0 0
      %369 = vmatpush1.bf16.msra.mxu0 0
      %370 = vmatprep.mubr.bf16.mxu0 0
      %371 = vmatmul.mubr.bf16.gmra.mrb[0].mxu0 %v266
      %v372 = vpop.f32.mrb[0].mxu0
      %v373 = vadd.f32 %v288, %v372
      %v374 = vpop.f32.mrb[0].mxu0
      %v375 = vpop.f32.mrb[0].mxu0
      %v376 = vpop.f32.mrb[0].mxu0
      %377 = vdwg.mxu0
      %v378 = vld [vmem:[%s259] sm:$0xff]
      %v379 = vadd.f32 %v373, %v378
      %380 = vadd.xlane.f32.xlu0 %v379
      %v381 = vpop.xlane.xlu0 %380
      %v382 = vrcp.pop 128.0
      %v383 = vmul.f32 %v381, %v382
      %v384 = vsub.f32 %v379, %v383
      %v385 = vmul.f32 %v384, %v384
      %386 = vadd.xlane.f32.xlu0 %v385
      %v387 = vpop.xlane.xlu0 %386
      %v388 = vmul.f32 %v387, %v382
      %v389 = vadd.f32 %v388, 1e-05
      %v390 = vrsqrt.pop %v389
      %v391 = vmul.f32 %v384, %v390
      %v392 = vld [vmem:[%s4] sm:$0x1]
      %v394 = vlaneseq
      %v395 = vshrl.u32 %v394, 7
      %v396 = vsub.s32 0, %v395
      %v397 = vrot.slane %v392, %v396
      %v399 = vmul.f32 %v391, %v397
      %v400 = vld [vmem:[%s5] sm:$0x1]
      %v402 = vlaneseq
      %v403 = vshrl.u32 %v402, 7
      %v404 = vsub.s32 0, %v403
      %v405 = vrot.slane %v400, %v404
      %v407 = vadd.f32 %v399, %v405
      %408 = vst [vmem:[%s263] sm:$0xff] %v407
      %p409 = scmp.lt.s32.totalorder %s17, 1
      %s410 = scalar_select %p409, %s17, 1
      %s411 = smul.addr %s410, 8
      %s412 = scalar_lea.vmem %s6, %s411
      // Predicated region
      $region45: #{decoder_layer.6} parent=43 // pred_check
        %p413 = pneg %p171
      $region46: #{decoder_layer.6} parent=43 // pred_check_branch
        %415 = sbr.rel (%p413) target = $region48
      $region47: #{decoder_layer.6} parent=43 // pred_region
        _
      $region48: #{decoder_layer.6} parent=43 // pred_fallthru
        _
    $region44: #{decoder_layer.6} parent=5 // pred_fallthru
      _
    %p416 = scmp.le.s32.totalorder 2, %s12
    // Predicated region
    $region49: #{decoder_layer.6} parent=5 // pred_check
      %p417 = pneg %p416
    $region50: #{decoder_layer.6} parent=5 // pred_check_branch
      %419 = sbr.rel (%p417) target = $region52
    $region51: #{decoder_layer.6} parent=5 // pred_region
      %s420 = ssub.s32 %s12, 2
      // Predicated region
      $region53: #{decoder_layer.6} parent=51 // pred_check
        %p421 = pneg %p177
      $region54: #{decoder_layer.6} parent=51 // pred_check_branch
        %423 = sbr.rel (%p421) target = $region56
      $region55: #{decoder_layer.6} parent=51 // pred_region
        %p424 = scmp.lt.s32.totalorder %s18, 1
        %s425 = scalar_select %p424, %s18, 1
        %s426 = smul.addr %s425, 8
        %s427 = scalar_lea.vmem %s6, %s426
      $region56: #{decoder_layer.6} parent=51 // pred_fallthru
        _
    $region52: #{decoder_layer.6} parent=5 // pred_fallthru
      _
  $region6: #{decoder_layer.6} parent=0 // loop_footer
    %s16 = sadd.s32 1, %s12
  $region7: #{decoder_layer.6} parent=0 // loop_footer_branch
    %11 = sbr.rel target = $region3
  $region8: #{decoder_layer.6} parent=0 // loop_exit
    _

// kernel: decoder_layer.9
$region0: #{decoder_layer.9}
  #allocation0 [shape = 'u32[]', space=smem, size = 0x4, offset = 0x4, fixed_abs, tag = 'smem constant byte address 0x4 - core index']
  #allocation1 [shape = 'u32[144,128]{1,0:T(1,128)}', space=vmem, size = 0x12000, scoped, tag = 'internal scratch']
  #allocation2 [shape = 'f32[8,128]{1,0:T(8,128)}', space=vmem, size = 0x1000, scoped, tag = 'scratch operand']
  %s0 = inlined_call_operand.vmem [shape: f32[16,128], index: 0, kind: input, shape index: {}]
  %s1 = inlined_call_operand.vmem [shape: bf16[128,256], index: 1, kind: input, shape index: {}]
  %s2 = inlined_call_operand.vmem [shape: f32[1,256], index: 2, kind: input, shape index: {}]
  %s3 = inlined_call_operand.vmem [shape: bf16[256,128], index: 3, kind: input, shape index: {}]
  %s4 = inlined_call_operand.vmem [shape: f32[1,128], index: 4, kind: input, shape index: {}]
  %s5 = inlined_call_operand.vmem [shape: f32[1,128], index: 5, kind: input, shape index: {}]
  %s6 = inlined_call_operand.vmem [shape: f32[1,128], index: 6, kind: input, shape index: {}]
  %s7 = inlined_call_operand.hbm [shape: f32[16,128], index: 7, kind: output, shape index: {}]
  %s8 = sld [smem:[#allocation0]]
  $region69: #{decoder_layer.9} parent=0
    _
  %s10 = ssub.s32 1, %s8
  %s11 = scalar_select 0, %s10, %s8
  $region1: #{decoder_layer.9} parent=0
    #allocation3 [shape = 'u8[8192]{0}', space=vmem, size = 0x2000, scoped, tag = 'output window, operand 0']
    #allocation4 [shape = 's32[2]{0}', space=sflag, size = 0x8, scoped, tag = 'scoped memory for decoder_layer.9']
    %12 = vsyncpa [#allocation4], 0
    %s13 = scalar_lea.sflag [#allocation4], 1
    %14 = vsyncpa %s13, 0
    loop: start=0, step=1, limit=4
    $region2: #{decoder_layer.9} parent=1 // loop_pre_header
      _
    $region3: #{decoder_layer.9} parent=1 // loop_header
      %s16 = sphi 0, %s20
      %p17 = scmp.ge.s32.totalorder %s16, 4
      %s23 = sphi 0, %s35
      %s24 = sphi 0, %s31
      %s25 = sphi 0, %s23
      %s26 = sphi 0, %s24
      %s27 = sphi 0, %s25
      %s28 = sphi 0, %s26
      %s38 = sphi 0, %s40
      %s41 = sphi 0, %s38
      %s42 = sphi 0, %s41
      %s58 = sphi 0, %s42
      %s64 = sphi 0, %s66
      %s67 = sphi 0, %s64
      %s68 = sphi 0, %s67
      %s84 = sphi 0, %s68
      %s90 = sphi 0, %s92
      %s93 = sphi 0, %s90
      %s94 = sphi 0, %s93
      %s110 = sphi 0, %s94
      %s116 = sphi 0, %s118
      %s119 = sphi 0, %s116
      %s120 = sphi 0, %s119
      %s136 = sphi 0, %s120
      %s140 = sphi 0, %s140
      %s142 = sphi 0, %s140
      %s143 = sphi 0, %s142
      %s157 = sphi 0, %s143
      %s161 = sphi 0, %s161
      %s163 = sphi 0, %s161
      %s164 = sphi 0, %s163
      %s178 = sphi 0, %s164
      %s182 = sphi 0, %s182
      %s184 = sphi 0, %s182
      %s185 = sphi 0, %s184
      %s199 = sphi 0, %s185
      %s205 = sphi 0, %s207
      %s208 = sphi 0, %s205
      %s209 = sphi 0, %s208
      %s225 = sphi 0, %s209
    $region4: #{decoder_layer.9} parent=1 // loop_header_branch
      %19 = sbr.rel (%p17) target = $region8
    $region5: #{decoder_layer.9} parent=1 // loop_body
      %s21 = ssub.s32 %s16, 1
      %s22 = ssub.s32 %s16, 2
      %s29 = sadd.s32 1, %s24
      %p30 = scmp.ge.s32.totalorder %s29, 1
      %s31 = scalar_select %p30, 0, %s29
      %s32 = sadd.s32 1, %s23
      %s33 = scalar_select %p30, %s32, %s23
      %p34 = scmp.ge.s32.totalorder %s33, 2
      %s35 = scalar_select %p34, 0, %s33
      %s36 = ssub.s32 %s23, %s35
      %p37 = scmp.eq.s32.totalorder %s36, 0
      %s39 = sadd.s32 %s38, 1
      %s40 = scalar_select %p37, %s38, %s39
      %p43 = pneg %p37
      %p44 = scmp.eq.s32.totalorder %s16, 1
      %p45 = por %p43, %p44
      %p46 = scmp.ne.s32.totalorder %s38, %s41
      %p47 = scmp.eq.s32.totalorder %s16, 0
      %p48 = por %p46, %p47
      %p49 = scmp.ne.s32.totalorder %s38, %s41
      %p50 = scmp.eq.s32.totalorder %s21, 1
      %p51 = por %p49, %p50
      %p52 = scmp.ne.s32.totalorder %s41, %s42
      %p53 = scmp.eq.s32.totalorder %s21, 0
      %p54 = por %p52, %p53
      %p55 = scmp.ne.s32.totalorder %s41, %s42
      %p56 = scmp.eq.s32.totalorder %s22, 1
      %p57 = por %p55, %p56
      %p59 = scmp.ne.s32.totalorder %s42, %s58
      %p60 = scmp.eq.s32.totalorder %s22, 0
      %p61 = por %p59, %p60
      %s62 = ssub.s32 %s24, %s31
      %p63 = scmp.eq.s32.totalorder %s62, 0
      %s65 = sadd.s32 %s64, 1
      %s66 = scalar_select %p63, %s64, %s65
      %p69 = pneg %p63
      %p70 = scmp.eq.s32.totalorder %s16, 1
      %p71 = por %p69, %p70
      %p72 = scmp.ne.s32.totalorder %s64, %s67
      %p73 = scmp.eq.s32.totalorder %s16, 0
      %p74 = por %p72, %p73
      %p75 = scmp.ne.s32.totalorder %s64, %s67
      %p76 = scmp.eq.s32.totalorder %s21, 1
      %p77 = por %p75, %p76
      %p78 = scmp.ne.s32.totalorder %s67, %s68
      %p79 = scmp.eq.s32.totalorder %s21, 0
      %p80 = por %p78, %p79
      %p81 = scmp.ne.s32.totalorder %s67, %s68
      %p82 = scmp.eq.s32.totalorder %s22, 1
      %p83 = por %p81, %p82
      %p85 = scmp.ne.s32.totalorder %s68, %s84
      %p86 = scmp.eq.s32.totalorder %s22, 0
      %p87 = por %p85, %p86
      %s88 = ssub.s32 %s24, %s31
      %p89 = scmp.eq.s32.totalorder %s88, 0
      %s91 = sadd.s32 %s90, 1
      %s92 = scalar_select %p89, %s90, %s91
      %p95 = pneg %p89
      %p96 = scmp.eq.s32.totalorder %s16, 1
      %p97 = por %p95, %p96
      %p98 = scmp.ne.s32.totalorder %s90, %s93
      %p99 = scmp.eq.s32.totalorder %s16, 0
      %p100 = por %p98, %p99
      %p101 = scmp.ne.s32.totalorder %s90, %s93
      %p102 = scmp.eq.s32.totalorder %s21, 1
      %p103 = por %p101, %p102
      %p104 = scmp.ne.s32.totalorder %s93, %s94
      %p105 = scmp.eq.s32.totalorder %s21, 0
      %p106 = por %p104, %p105
      %p107 = scmp.ne.s32.totalorder %s93, %s94
      %p108 = scmp.eq.s32.totalorder %s22, 1
      %p109 = por %p107, %p108
      %p111 = scmp.ne.s32.totalorder %s94, %s110
      %p112 = scmp.eq.s32.totalorder %s22, 0
      %p113 = por %p111, %p112
      %s114 = ssub.s32 %s24, %s31
      %p115 = scmp.eq.s32.totalorder %s114, 0
      %s117 = sadd.s32 %s116, 1
      %s118 = scalar_select %p115, %s116, %s117
      %p121 = pneg %p115
      %p122 = scmp.eq.s32.totalorder %s16, 1
      %p123 = por %p121, %p122
      %p124 = scmp.ne.s32.totalorder %s116, %s119
      %p125 = scmp.eq.s32.totalorder %s16, 0
      %p126 = por %p124, %p125
      %p127 = scmp.ne.s32.totalorder %s116, %s119
      %p128 = scmp.eq.s32.totalorder %s21, 1
      %p129 = por %p127, %p128
      %p130 = scmp.ne.s32.totalorder %s119, %s120
      %p131 = scmp.eq.s32.totalorder %s21, 0
      %p132 = por %p130, %p131
      %p133 = scmp.ne.s32.totalorder %s119, %s120
      %p134 = scmp.eq.s32.totalorder %s22, 1
      %p135 = por %p133, %p134
      %p137 = scmp.ne.s32.totalorder %s120, %s136
      %p138 = scmp.eq.s32.totalorder %s22, 0
      %p139 = por %p137, %p138
      %s141 = sadd.s32 %s140, 1
      %p144 = scmp.eq.s32.totalorder %s16, 1
      %p145 = scmp.ne.s32.totalorder %s140, %s142
      %p146 = scmp.eq.s32.totalorder %s16, 0
      %p147 = por %p145, %p146
      %p148 = scmp.ne.s32.totalorder %s140, %s142
      %p149 = scmp.eq.s32.totalorder %s21, 1
      %p150 = por %p148, %p149
      %p151 = scmp.ne.s32.totalorder %s142, %s143
      %p152 = scmp.eq.s32.totalorder %s21, 0
      %p153 = por %p151, %p152
      %p154 = scmp.ne.s32.totalorder %s142, %s143
      %p155 = scmp.eq.s32.totalorder %s22, 1
      %p156 = por %p154, %p155
      %p158 = scmp.ne.s32.totalorder %s143, %s157
      %p159 = scmp.eq.s32.totalorder %s22, 0
      %p160 = por %p158, %p159
      %s162 = sadd.s32 %s161, 1
      %p165 = scmp.eq.s32.totalorder %s16, 1
      %p166 = scmp.ne.s32.totalorder %s161, %s163
      %p167 = scmp.eq.s32.totalorder %s16, 0
      %p168 = por %p166, %p167
      %p169 = scmp.ne.s32.totalorder %s161, %s163
      %p170 = scmp.eq.s32.totalorder %s21, 1
      %p171 = por %p169, %p170
      %p172 = scmp.ne.s32.totalorder %s163, %s164
      %p173 = scmp.eq.s32.totalorder %s21, 0
      %p174 = por %p172, %p173
      %p175 = scmp.ne.s32.totalorder %s163, %s164
      %p176 = scmp.eq.s32.totalorder %s22, 1
      %p177 = por %p175, %p176
      %p179 = scmp.ne.s32.totalorder %s164, %s178
      %p180 = scmp.eq.s32.totalorder %s22, 0
      %p181 = por %p179, %p180
      %s183 = sadd.s32 %s182, 1
      %p186 = scmp.eq.s32.totalorder %s16, 1
      %p187 = scmp.ne.s32.totalorder %s182, %s184
      %p188 = scmp.eq.s32.totalorder %s16, 0
      %p189 = por %p187, %p188
      %p190 = scmp.ne.s32.totalorder %s182, %s184
      %p191 = scmp.eq.s32.totalorder %s21, 1
      %p192 = por %p190, %p191
      %p193 = scmp.ne.s32.totalorder %s184, %s185
      %p194 = scmp.eq.s32.totalorder %s21, 0
      %p195 = por %p193, %p194
      %p196 = scmp.ne.s32.totalorder %s184, %s185
      %p197 = scmp.eq.s32.totalorder %s22, 1
      %p198 = por %p196, %p197
      %p200 = scmp.ne.s32.totalorder %s185, %s199
      %p201 = scmp.eq.s32.totalorder %s22, 0
      %p202 = por %p200, %p201
      %s203 = ssub.s32 %s23, %s35
      %p204 = scmp.eq.s32.totalorder %s203, 0
      %s206 = sadd.s32 %s205, 1
      %s207 = scalar_select %p204, %s205, %s206
      %p210 = pneg %p204
      %p211 = scmp.eq.s32.totalorder %s16, 1
      %p212 = por %p210, %p211
      %p213 = scmp.ne.s32.totalorder %s205, %s208
      %p214 = scmp.eq.s32.totalorder %s16, 0
      %p215 = por %p213, %p214
      %p216 = scmp.ne.s32.totalorder %s205, %s208
      %p217 = scmp.eq.s32.totalorder %s21, 1
      %p218 = por %p216, %p217
      %p219 = scmp.ne.s32.totalorder %s208, %s209
      %p220 = scmp.eq.s32.totalorder %s21, 0
      %p221 = por %p219, %p220
      %p222 = scmp.ne.s32.totalorder %s208, %s209
      %p223 = scmp.eq.s32.totalorder %s22, 1
      %p224 = por %p222, %p223
      %p226 = scmp.ne.s32.totalorder %s209, %s225
      %p227 = scmp.eq.s32.totalorder %s22, 0
      %p228 = por %p226, %p227
      %p229 = scmp.le.s32.totalorder 1, %s16
      %p230 = scmp.lt.s32.totalorder %s16, 3
      %p231 = pnand %p229, %p230
      %p232 = pneg %p231
      // Predicated region
      $region9: #{decoder_layer.9} parent=5 // pred_check
        _
      $region10: #{decoder_layer.9} parent=5 // pred_check_branch
        %234 = sbr.rel (%p231) target = $region12
      $region11: #{decoder_layer.9} parent=5 // pred_region
        %s235 = ssub.s32 %s16, 1
        // Predicated region
        $region13: #{decoder_layer.9} parent=11 // pred_check
          %p236 = pneg %p80
        $region14: #{decoder_layer.9} parent=11 // pred_check_branch
          %238 = sbr.rel (%p236) target = $region16
        $region15: #{decoder_layer.9} parent=11 // pred_region
          %s239 = smul.u32 2, %s26
          %p240 = scmp.lt.s32.totalorder %s239, 1
          %s241 = scalar_select %p240, %s239, 1
          %s242 = smul.addr %s241, 4
          %s243 = scalar_lea.vmem %s1, %s242
          %s244 = smul.u32 2, %s26
        $region16: #{decoder_layer.9} parent=11 // pred_fallthru
          _
        // Predicated region
        $region17: #{decoder_layer.9} parent=11 // pred_check
          %p245 = pneg %p106
        $region18: #{decoder_layer.9} parent=11 // pred_check_branch
          %247 = sbr.rel (%p245) target = $region20
        $region19: #{decoder_layer.9} parent=11 // pred_region
          %s248 = smul.u32 2, %s26
          %p249 = scmp.lt.s32.totalorder %s248, 1
          %s250 = scalar_select %p249, %s248, 1
          %s251 = scalar_lea.vmem %s2, %s250
          %s252 = smul.u32 2, %s26
        $region20: #{decoder_layer.9} parent=11 // pred_fallthru
          _
        // Predicated region
        $region21: #{decoder_layer.9} parent=11 // pred_check
          %p253 = pneg %p132
        $region22: #{decoder_layer.9} parent=11 // pred_check_branch
          %255 = sbr.rel (%p253) target = $region24
        $region23: #{decoder_layer.9} parent=11 // pred_region
          %s256 = smul.u32 32, %s26
          %p257 = scmp.lt.s32.totalorder %s256, 31
          %s258 = scalar_select %p257, %s256, 31
          %s259 = smul.addr %s258, 4
          %s260 = scalar_lea.vmem %s3, %s259
          %s261 = smul.u32 32, %s26
        $region24: #{decoder_layer.9} parent=11 // pred_fallthru
          _
        // Predicated region
        $region25: #{decoder_layer.9} parent=11 // pred_check
          %p262 = pneg %p153
        $region26: #{decoder_layer.9} parent=11 // pred_check_branch
          %264 = sbr.rel (%p262) target = $region28
        $region27: #{decoder_layer.9} parent=11 // pred_region
          _
        $region28: #{decoder_layer.9} parent=11 // pred_fallthru
          _
        // Predicated region
        $region29: #{decoder_layer.9} parent=11 // pred_check
          %p265 = pneg %p174
        $region30: #{decoder_layer.9} parent=11 // pred_check_branch
          %267 = sbr.rel (%p265) target = $region32
        $region31: #{decoder_layer.9} parent=11 // pred_region
          _
        $region32: #{decoder_layer.9} parent=11 // pred_fallthru
          _
        // Predicated region
        $region33: #{decoder_layer.9} parent=11 // pred_check
          %p268 = pneg %p195
        $region34: #{decoder_layer.9} parent=11 // pred_check_branch
          %270 = sbr.rel (%p268) target = $region36
        $region35: #{decoder_layer.9} parent=11 // pred_region
          _
        $region36: #{decoder_layer.9} parent=11 // pred_fallthru
          _
      $region12: #{decoder_layer.9} parent=5 // pred_fallthru
        _
      %p271 = scmp.lt.s32.totalorder %s16, 2
      // Predicated region
      $region37: #{decoder_layer.9} parent=5 // pred_check
        %p272 = pneg %p271
      $region38: #{decoder_layer.9} parent=5 // pred_check_branch
        %274 = sbr.rel (%p272) target = $region40
      $region39: #{decoder_layer.9} parent=5 // pred_region
        // Predicated region
        $region41: #{decoder_layer.9} parent=39 // pred_check
          %p275 = pneg %p48
        $region42: #{decoder_layer.9} parent=39 // pred_check_branch
          %277 = sbr.rel (%p275) target = $region44
        $region43: #{decoder_layer.9} parent=39 // pred_region
          %p278 = scmp.lt.s32.totalorder %s23, 1
          %s279 = scalar_select %p278, %s23, 1
          %s280 = smul.addr %s279, 8
          %s281 = scalar_lea.vmem %s0, %s280
        $region44: #{decoder_layer.9} parent=39 // pred_fallthru
          _
      $region40: #{decoder_layer.9} parent=5 // pred_fallthru
        _
      %p282 = scmp.le.s32.totalorder 1, %s16
      %p283 = scmp.lt.s32.totalorder %s16, 3
      %p284 = pnand %p282, %p283
      %p285 = pneg %p284
      // Predicated region
      $region45: #{decoder_layer.9} parent=5 // pred_check
        _
      $region46: #{decoder_layer.9} parent=5 // pred_check_branch
        %287 = sbr.rel (%p284) target = $region48
      $region47: #{decoder_layer.9} parent=5 // pred_region
        %s288 = ssub.s32 %s16, 1
        %p289 = scmp.lt.s32.totalorder %s25, 1
        %s290 = scalar_select %p289, %s25, 1
        %s291 = smul.addr %s290, 8
        %s292 = scalar_lea.vmem %s0, %s291
        %p293 = pneg %p54
        %p294 = pneg %p51
        %s295 = smul.u32 2, %s26
        %p296 = scmp.lt.s32.totalorder %s295, 1
        %s297 = scalar_select %p296, %s295, 1
        %s298 = smul.addr %s297, 4
        %s299 = scalar_lea.vmem %s1, %s298
        %p300 = pneg %p80
        %p301 = pneg %p77
        %s302 = smul.u32 2, %s26
        %p303 = scmp.lt.s32.totalorder %s302, 1
        %s304 = scalar_select %p303, %s302, 1
        %s305 = scalar_lea.vmem %s2, %s304
        %p306 = pneg %p106
        %p307 = pneg %p103
        %s308 = smul.u32 32, %s26
        %p309 = scmp.lt.s32.totalorder %s308, 31
        %s310 = scalar_select %p309, %s308, 31
        %s311 = smul.addr %s310, 4
        %s312 = scalar_lea.vmem %s3, %s311
        %p313 = pneg %p132
        %p314 = pneg %p129
        %p315 = pneg %p153
        %p316 = pneg %p150
        %p317 = pneg %p174
        %p318 = pneg %p171
        %p319 = pneg %p195
        %p320 = pneg %p192
        %p321 = pneg %p221
        %p322 = pneg %p218
        %s323 = sand.u32 %s208, 1
        %s324 = scalar_lea.sflag [#allocation4], %s323
        %s325 = sand.u32 %s208, 1
        %s326 = smul.addr %s325, 8
        %s327 = scalar_lea.vmem [#allocation3], %s326
        %p328 = scmp.lt.s32.totalorder %s25, 1
        %s329 = scalar_select %p328, %s25, 1
        %s330 = smul.addr %s329, 8
        %s331 = scalar_lea.vmem %s0, %s330
        %s332 = smul.u32 2, %s26
        %p333 = scmp.lt.s32.totalorder %s332, 1
        %s334 = scalar_select %p333, %s332, 1
        %s335 = smul.addr %s334, 4
        %s336 = scalar_lea.vmem %s1, %s335
        %s337 = smul.u32 2, %s26
        %s338 = smul.u32 2, %s26
        %p339 = scmp.lt.s32.totalorder %s338, 1
        %s340 = scalar_select %p339, %s338, 1
        %s341 = scalar_lea.vmem %s2, %s340
        %s342 = smul.u32 2, %s26
        %s343 = smul.u32 32, %s26
        %p344 = scmp.lt.s32.totalorder %s343, 31
        %s345 = scalar_select %p344, %s343, 31
        %s346 = smul.addr %s345, 4
        %s347 = scalar_lea.vmem %s3, %s346
        %s348 = smul.u32 32, %s26
        %p350 = scmp.eq.s32.totalorder %s26, 0
        // Predicated region
        $region49: #{decoder_layer.9} parent=47 // pred_check
          %p351 = pneg %p350
        $region50: #{decoder_layer.9} parent=47 // pred_check_branch
          %353 = sbr.rel (%p351) target = $region52
        $region51: #{decoder_layer.9} parent=47 // pred_region
          %354 = vst [vmem:[#allocation2] sm:$0xff] 0.0
        $region52: #{decoder_layer.9} parent=47 // pred_fallthru
          _
        %v355 = vld [vmem:[%s331] sm:$0xff]
        %v356 = vpack.c.bf16 %v355, %v355
        %v357 = vld [vmem:[%s336] sm:$0xff]
        %v358 = vld [vmem:[%s336 + $0x8] sm:$0xff]
        %v359 = vld [vmem:[%s336 + $0x10] sm:$0xff]
        %v360 = vld [vmem:[%s336 + $0x18] sm:$0xff]
        %v361 = vld [vmem:[%s336 + $0x20] sm:$0xff]
        %v362 = vld [vmem:[%s336 + $0x28] sm:$0xff]
        %v363 = vld [vmem:[%s336 + $0x30] sm:$0xff]
        %v364 = vld [vmem:[%s336 + $0x38] sm:$0xff]
        %v365 = vld [vmem:[%s336 + $0x40] sm:$0xff]
        %v366 = vld [vmem:[%s336 + $0x48] sm:$0xff]
        %v367 = vld [vmem:[%s336 + $0x50] sm:$0xff]
        %v368 = vld [vmem:[%s336 + $0x58] sm:$0xff]
        %v369 = vld [vmem:[%s336 + $0x60] sm:$0xff]
        %v370 = vld [vmem:[%s336 + $0x68] sm:$0xff]
        %v371 = vld [vmem:[%s336 + $0x70] sm:$0xff]
        %v372 = vld [vmem:[%s336 + $0x78] sm:$0xff]
        %v373 = vld [vmem:[%s341] sm:$0x3]
        %v375 = vlaneseq
        %v376 = vshrl.u32 %v375, 7
        %v377 = vsub.s32 0, %v376
        %v378 = vrot.slane %v373, %v377
        %v379 = vlaneseq
        %v380 = vshrl.u32 %v379, 7
        %v381 = vsub.s32 1, %v380
        %v382 = vrot.slane %v373, %v381
        %v401 = vunpack.c.l.b16 %v357
        %v402 = vunpack.c.h.b16 %v357
        %v403 = vunpack.c.l.b16 %v358
        %v404 = vunpack.c.h.b16 %v358
        %v405 = vunpack.c.l.b16 %v359
        %v406 = vunpack.c.h.b16 %v359
        %v407 = vunpack.c.l.b16 %v360
        %v408 = vunpack.c.h.b16 %v360
        %v409 = vunpack.c.l.b16 %v361
        %v410 = vunpack.c.h.b16 %v361
        %v411 = vunpack.c.l.b16 %v362
        %v412 = vunpack.c.h.b16 %v362
        %v413 = vunpack.c.l.b16 %v363
        %v414 = vunpack.c.h.b16 %v363
        %v415 = vunpack.c.l.b16 %v364
        %v416 = vunpack.c.h.b16 %v364
        %v417 = vunpack.c.l.b16 %v365
        %v418 = vunpack.c.h.b16 %v365
        %v419 = vunpack.c.l.b16 %v366
        %v420 = vunpack.c.h.b16 %v366
        %v421 = vunpack.c.l.b16 %v367
        %v422 = vunpack.c.h.b16 %v367
        %v423 = vunpack.c.l.b16 %v368
        %v424 = vunpack.c.h.b16 %v368
        %v425 = vunpack.c.l.b16 %v369
        %v426 = vunpack.c.h.b16 %v369
        %v427 = vunpack.c.l.b16 %v370
        %v428 = vunpack.c.h.b16 %v370
        %v429 = vunpack.c.l.b16 %v371
        %v430 = vunpack.c.h.b16 %v371
        %v431 = vunpack.c.l.b16 %v372
        %v432 = vunpack.c.h.b16 %v372
        %v433 = vpack.c.b16 %v403, %v401
        %v434 = vpack.c.b16 %v404, %v402
        %v435 = vpack.c.b16 %v407, %v405
        %v436 = vpack.c.b16 %v408, %v406
        %v437 = vpack.c.b16 %v411, %v409
        %v438 = vpack.c.b16 %v412, %v410
        %v439 = vpack.c.b16 %v415, %v413
        %v440 = vpack.c.b16 %v416, %v414
        %v441 = vpack.c.b16 %v419, %v417
        %v442 = vpack.c.b16 %v420, %v418
        %v443 = vpack.c.b16 %v423, %v421
        %v444 = vpack.c.b16 %v424, %v422
        %v445 = vpack.c.b16 %v427, %v425
        %v446 = vpack.c.b16 %v428, %v426
        %v447 = vpack.c.b16 %v431, %v429
        %v448 = vpack.c.b16 %v432, %v430
        %465 = vmatprep.subr.bf16.mxu0 %v434
        %466 = vmatpush1.bf16.msra.mxu0 %v433
        %467 = vmatprep.subr.bf16.mxu0 %v436
        %468 = vmatpush1.bf16.msra.mxu0 %v435
        %469 = vmatprep.subr.bf16.mxu0 %v438
        %470 = vmatpush1.bf16.msra.mxu0 %v437
        %471 = vmatprep.subr.bf16.mxu0 %v440
        %472 = vmatpush1.bf16.msra.mxu0 %v439
        %473 = vmatprep.subr.bf16.mxu0 %v442
        %474 = vmatpush1.bf16.msra.mxu0 %v441
        %475 = vmatprep.subr.bf16.mxu0 %v444
        %476 = vmatpush1.bf16.msra.mxu0 %v443
        %477 = vmatprep.subr.bf16.mxu0 %v446
        %478 = vmatpush1.bf16.msra.mxu0 %v445
        %479 = vmatprep.subr.bf16.mxu0 %v448
        %480 = vmatpush1.bf16.msra.mxu0 %v447
        %481 = vmatprep.subr.bf16.mxu0 0
        %482 = vmatpush1.bf16.msra.mxu0 0
        %483 = vmatprep.subr.bf16.mxu0 0
        %484 = vmatpush1.bf16.msra.mxu0 0
        %485 = vmatprep.subr.bf16.mxu0 0
        %486 = vmatpush1.bf16.msra.mxu0 0
        %487 = vmatprep.subr.bf16.mxu0 0
        %488 = vmatpush1.bf16.msra.mxu0 0
        %489 = vmatprep.subr.bf16.mxu0 0
        %490 = vmatpush1.bf16.msra.mxu0 0
        %491 = vmatprep.subr.bf16.mxu0 0
        %492 = vmatpush1.bf16.msra.mxu0 0
        %493 = vmatprep.subr.bf16.mxu0 0
        %494 = vmatpush1.bf16.msra.mxu0 0
        %495 = vmatprep.subr.bf16.mxu0 0
        %496 = vmatpush1.bf16.msra.mxu0 0
        %497 = vmatprep.mubr.bf16.mxu0 0
        %498 = vmatmul.mubr.bf16.gmra.mrb[0].mxu0 %v356
        %v499 = vpop.f32.mrb[0].mxu0
        %v500 = vadd.f32 %v378, %v499
        %v501 = vpop.f32.mrb[0].mxu0
        %v502 = vadd.f32 %v382, %v501
        %v503 = vpop.f32.mrb[0].mxu0
        %v504 = vpop.f32.mrb[0].mxu0
        %505 = vdwg.mxu0
        %v506 = vmax.f32 %v500, 0.0
        %v507 = vmax.f32 %v502, 0.0
        %v508 = vld [vmem:[#allocation2] sm:$0xff]
        %v509 = vpack.c.bf16 %v506, %v506
        %v510 = vpack.c.bf16 %v507, %v507
        %v511 = vld [vmem:[%s347] sm:$0xf]
        %v512 = vld [vmem:[%s347 + $0x4] sm:$0xf]
        %v513 = vld [vmem:[%s347 + $0x8] sm:$0xf]
        %v514 = vld [vmem:[%s347 + $0xc] sm:$0xf]
        %v515 = vld [vmem:[%s347 + $0x10] sm:$0xf]
        %v516 = vld [vmem:[%s347 + $0x14] sm:$0xf]
        %v517 = vld [vmem:[%s347 + $0x18] sm:$0xf]
        %v518 = vld [vmem:[%s347 + $0x1c] sm:$0xf]
        %v519 = vld [vmem:[%s347 + $0x20] sm:$0xf]
        %v520 = vld [vmem:[%s347 + $0x24] sm:$0xf]
        %v521 = vld [vmem:[%s347 + $0x28] sm:$0xf]
        %v522 = vld [vmem:[%s347 + $0x2c] sm:$0xf]
        %v523 = vld [vmem:[%s347 + $0x30] sm:$0xf]
        %v524 = vld [vmem:[%s347 + $0x34] sm:$0xf]
        %v525 = vld [vmem:[%s347 + $0x38] sm:$0xf]
        %v526 = vld [vmem:[%s347 + $0x3c] sm:$0xf]
        %v527 = vld [vmem:[%s347 + $0x40] sm:$0xf]
        %v528 = vld [vmem:[%s347 + $0x44] sm:$0xf]
        %v529 = vld [vmem:[%s347 + $0x48] sm:$0xf]
        %v530 = vld [vmem:[%s347 + $0x4c] sm:$0xf]
        %v531 = vld [vmem:[%s347 + $0x50] sm:$0xf]
        %v532 = vld [vmem:[%s347 + $0x54] sm:$0xf]
        %v533 = vld [vmem:[%s347 + $0x58] sm:$0xf]
        %v534 = vld [vmem:[%s347 + $0x5c] sm:$0xf]
        %v535 = vld [vmem:[%s347 + $0x60] sm:$0xf]
        %v536 = vld [vmem:[%s347 + $0x64] sm:$0xf]
        %v537 = vld [vmem:[%s347 + $0x68] sm:$0xf]
        %v538 = vld [vmem:[%s347 + $0x6c] sm:$0xf]
        %v539 = vld [vmem:[%s347 + $0x70] sm:$0xf]
        %v540 = vld [vmem:[%s347 + $0x74] sm:$0xf]
        %v541 = vld [vmem:[%s347 + $0x78] sm:$0xf]
        %v542 = vld [vmem:[%s347 + $0x7c] sm:$0xf]
        %v575 = vunpack.c.l.b16 %v511
        %v576 = vunpack.c.l.b16 %v512
        %v577 = vunpack.c.l.b16 %v513
        %v578 = vunpack.c.l.b16 %v514
        %v579 = vunpack.c.l.b16 %v515
        %v580 = vunpack.c.l.b16 %v516
        %v581 = vunpack.c.l.b16 %v517
        %v582 = vunpack.c.l.b16 %v518
        %v583 = vunpack.c.l.b16 %v519
        %v584 = vunpack.c.l.b16 %v520
        %v585 = vunpack.c.l.b16 %v521
        %v586 = vunpack.c.l.b16 %v522
        %v587 = vunpack.c.l.b16 %v523
        %v588 = vunpack.c.l.b16 %v524
        %v589 = vunpack.c.l.b16 %v525
        %v590 = vunpack.c.l.b16 %v526
        %v591 = vunpack.c.l.b16 %v527
        %v592 = vunpack.c.l.b16 %v528
        %v593 = vunpack.c.l.b16 %v529
        %v594 = vunpack.c.l.b16 %v530
        %v595 = vunpack.c.l.b16 %v531
        %v596 = vunpack.c.l.b16 %v532
        %v597 = vunpack.c.l.b16 %v533
        %v598 = vunpack.c.l.b16 %v534
        %v599 = vunpack.c.l.b16 %v535
        %v600 = vunpack.c.l.b16 %v536
        %v601 = vunpack.c.l.b16 %v537
        %v602 = vunpack.c.l.b16 %v538
        %v603 = vunpack.c.l.b16 %v539
        %v604 = vunpack.c.l.b16 %v540
        %v605 = vunpack.c.l.b16 %v541
        %v606 = vunpack.c.l.b16 %v542
        %v607 = vpack.c.b16 %v576, %v575
        %v608 = vpack.c.b16 %v578, %v577
        %v609 = vpack.c.b16 %v580, %v579
        %v610 = vpack.c.b16 %v582, %v581
        %v611 = vpack.c.b16 %v584, %v583
        %v612 = vpack.c.b16 %v586, %v585
        %v613 = vpack.c.b16 %v588, %v587
        %v614 = vpack.c.b16 %v590, %v589
        %v615 = vpack.c.b16 %v592, %v591
        %v616 = vpack.c.b16 %v594, %v593
        %v617 = vpack.c.b16 %v596, %v595
        %v618 = vpack.c.b16 %v598, %v597
        %v619 = vpack.c.b16 %v600, %v599
        %v620 = vpack.c.b16 %v602, %v601
        %v621 = vpack.c.b16 %v604, %v603
        %v622 = vpack.c.b16 %v606, %v605
        %639 = vmatprep.subr.bf16.mxu0 0
        %640 = vmatpush1.bf16.msra.mxu0 %v607
        %641 = vmatprep.subr.bf16.mxu0 0
        %642 = vmatpush1.bf16.msra.mxu0 %v608
        %643 = vmatprep.subr.bf16.mxu0 0
        %644 = vmatpush1.bf16.msra.mxu0 %v609
        %645 = vmatprep.subr.bf16.mxu0 0
        %646 = vmatpush1.bf16.msra.mxu0 %v610
        %647 = vmatprep.subr.bf16.mxu0 0
        %648 = vmatpush1.bf16.msra.mxu0 %v611
        %649 = vmatprep.subr.bf16.mxu0 0
        %650 = vmatpush1.bf16.msra.mxu0 %v612
        %651 = vmatprep.subr.bf16.mxu0 0
        %652 = vmatpush1.bf16.msra.mxu0 %v613
        %653 = vmatprep.subr.bf16.mxu0 0
        %654 = vmatpush1.bf16.msra.mxu0 %v614
        %655 = vmatprep.subr.bf16.mxu0 0
        %656 = vmatpush1.bf16.msra.mxu0 %v615
        %657 = vmatprep.subr.bf16.mxu0 0
        %658 = vmatpush1.bf16.msra.mxu0 %v616
        %659 = vmatprep.subr.bf16.mxu0 0
        %660 = vmatpush1.bf16.msra.mxu0 %v617
        %661 = vmatprep.subr.bf16.mxu0 0
        %662 = vmatpush1.bf16.msra.mxu0 %v618
        %663 = vmatprep.subr.bf16.mxu0 0
        %664 = vmatpush1.bf16.msra.mxu0 %v619
        %665 = vmatprep.subr.bf16.mxu0 0
        %666 = vmatpush1.bf16.msra.mxu0 %v620
        %667 = vmatprep.subr.bf16.mxu0 0
        %668 = vmatpush1.bf16.msra.mxu0 %v621
        %669 = vmatprep.subr.bf16.mxu0 0
        %670 = vmatpush1.bf16.msra.mxu0 %v622
        %671 = vmatprep.mubr.bf16.mxu0 %v510
        %672 = vmatmul.mubr.bf16.gmra.mrb[0].mxu0 %v509
        %v673 = vpop.f32.mrb[0].mxu0
        %v674 = vadd.f32 0.0, %v673
        %v675 = vpop.f32.mrb[0].mxu0
        %v676 = vpop.f32.mrb[0].mxu0
        %v677 = vpop.f32.mrb[0].mxu0
        %678 = vdwg.mxu0
        %v679 = vadd.f32 %v508, %v674
        %680 = vst [vmem:[#allocation2] sm:$0xff] %v679
        // Predicated region
        $region53: #{decoder_layer.9} parent=47 // pred_check
          %p681 = pneg %p350
        $region54: #{decoder_layer.9} parent=47 // pred_check_branch
          %683 = sbr.rel (%p681) target = $region56
        $region55: #{decoder_layer.9} parent=47 // pred_region
          %v684 = vld [vmem:[#allocation2] sm:$0xff]
          %v685 = vadd.f32 %v355, %v684
          %v686 = vld [vmem:[%s4] sm:$0x1]
          %v688 = vlaneseq
          %v689 = vshrl.u32 %v688, 7
          %v690 = vsub.s32 0, %v689
          %v691 = vrot.slane %v686, %v690
          %v693 = vadd.f32 %v685, %v691
          %694 = vadd.xlane.f32.xlu0 %v693
          %v695 = vpop.xlane.xlu0 %694
          %v696 = vrcp.pop 128.0
          %v697 = vmul.f32 %v695, %v696
          %v698 = vsub.f32 %v693, %v697
          %v699 = vmul.f32 %v698, %v698
          %700 = vadd.xlane.f32.xlu0 %v699
          %v701 = vpop.xlane.xlu0 %700
          %v702 = vmul.f32 %v701, %v696
          %v703 = vadd.f32 %v702, 1e-05
          %v704 = vrsqrt.pop %v703
          %v705 = vmul.f32 %v698, %v704
          %v706 = vld [vmem:[%s5] sm:$0x1]
          %v708 = vlaneseq
          %v709 = vshrl.u32 %v708, 7
          %v710 = vsub.s32 0, %v709
          %v711 = vrot.slane %v706, %v710
          %v713 = vmul.f32 %v705, %v711
          %v714 = vld [vmem:[%s6] sm:$0x1]
          %v716 = vlaneseq
          %v717 = vshrl.u32 %v716, 7
          %v718 = vsub.s32 0, %v717
          %v719 = vrot.slane %v714, %v718
          %v721 = vadd.f32 %v713, %v719
          %722 = vst [vmem:[%s327] sm:$0xff] %v721
        $region56: #{decoder_layer.9} parent=47 // pred_fallthru
          _
        %s723 = sand.u32 %s208, 1
        %s724 = scalar_lea.sflag [#allocation4], %s723
        %s725 = sand.u32 %s208, 1
        %s726 = smul.addr %s725, 8
        %s727 = scalar_lea.vmem [#allocation3], %s726
        // Predicated region
        $region57: #{decoder_layer.9} parent=47 // pred_check
          %p728 = pneg %p218
        $region58: #{decoder_layer.9} parent=47 // pred_check_branch
          %730 = sbr.rel (%p728) target = $region60
        $region59: #{decoder_layer.9} parent=47 // pred_region
          %s732 = ssub.s32 128, 128
          %733 = vsyncadd %s724, %s732
          %s734 = smul.addr %s25, 128
          %s735 = scalar_lea.hbm %s7, %s734
          %s737 = sshll.u32 %s727, 4
          %s738 = int_to_ptr.vmem [resolvable:$true] %s737
          %740 = dma.vmem_to_hbm [thread:$0]  %s738, 128, %s735, %s724
        $region60: #{decoder_layer.9} parent=47 // pred_fallthru
          _
      $region48: #{decoder_layer.9} parent=5 // pred_fallthru
        _
      %p741 = scmp.le.s32.totalorder 2, %s16
      // Predicated region
      $region61: #{decoder_layer.9} parent=5 // pred_check
        %p742 = pneg %p741
      $region62: #{decoder_layer.9} parent=5 // pred_check_branch
        %744 = sbr.rel (%p742) target = $region64
      $region63: #{decoder_layer.9} parent=5 // pred_region
        %s745 = ssub.s32 %s16, 2
        // Predicated region
        $region65: #{decoder_layer.9} parent=63 // pred_check
          %p746 = pneg %p224
        $region66: #{decoder_layer.9} parent=63 // pred_check_branch
          %748 = sbr.rel (%p746) target = $region68
        $region67: #{decoder_layer.9} parent=63 // pred_region
          %s749 = sand.u32 %s209, 1
          %s750 = scalar_lea.sflag [#allocation4], %s749
          %s751 = sand.u32 %s209, 1
          %s752 = smul.addr %s751, 8
          %s753 = scalar_lea.vmem [#allocation3], %s752
          %754 = dma.done %s750, 128
        $region68: #{decoder_layer.9} parent=63 // pred_fallthru
          _
      $region64: #{decoder_layer.9} parent=5 // pred_fallthru
        _
    $region6: #{decoder_layer.9} parent=1 // loop_footer
      %s20 = sadd.s32 1, %s16
    $region7: #{decoder_layer.9} parent=1 // loop_footer_branch
      %15 = sbr.rel target = $region3
    $region8: #{decoder_layer.9} parent=1 // loop_exit
      _
    %755 = vsyncpa [#allocation4], 1
    %s756 = scalar_lea.sflag [#allocation4], 1
    %757 = vsyncpa %s756, 1

// kernel: decoder_layer.5
$region0: #{decoder_layer.5}
  #allocation0 [shape = 'u32[]', space=smem, size = 0x4, offset = 0x4, fixed_abs, tag = 'smem constant byte address 0x4 - core index']
  #allocation1 [shape = 'u32[144,128]{1,0:T(1,128)}', space=vmem, size = 0x12000, scoped, tag = 'internal scratch']
  %s0 = inlined_call_operand.vmem [shape: f32[2,8,128], index: 0, kind: input, shape index: {}, may-alias: {0,1}]
  %s1 = inlined_call_operand.vmem [shape: f32[2,8,128], index: 1, kind: input, shape index: {}, may-alias: {0,1}]
  %s2 = inlined_call_operand.vmem [shape: bf16[128,128], index: 2, kind: input, shape index: {}]
  %s3 = inlined_call_operand.vmem [shape: f32[1,128], index: 3, kind: input, shape index: {}]
  %s4 = inlined_call_operand.hbm [shape: bf16[128,256], index: 4, kind: input, shape index: {}]
  %s5 = inlined_call_operand.vmem [shape: f32[1,256], index: 5, kind: input, shape index: {}]
  %s6 = inlined_call_operand.vmem [shape: f32[2,8,128], index: 6, kind: output, shape index: {}]
  %s7 = sld [smem:[#allocation0]]
  $region61: #{decoder_layer.5} parent=0
    _
  %s9 = ssub.s32 1, %s7
  %s10 = scalar_select 0, %s9, %s7
  $region1: #{decoder_layer.5} parent=0
    #allocation2 [shape = 'u8[65536]{0}', space=vmem, size = 0x10000, scoped, tag = 'input window, operand 4, single buffered']
    #allocation3 [shape = 's32[2]{0}', space=sflag, size = 0x8, scoped, tag = 'scoped memory for decoder_layer.5']
    %11 = vsyncpa [#allocation3], 0
    loop: start=0, step=1, limit=4
    $region2: #{decoder_layer.5} parent=1 // loop_pre_header
      _
    $region3: #{decoder_layer.5} parent=1 // loop_header
      %s13 = sphi 0, %s17
      %p14 = scmp.ge.s32.totalorder %s13, 4
      %s20 = sphi 0, %s32
      %s21 = sphi 0, %s28
      %s22 = sphi 0, %s20
      %s23 = sphi 0, %s21
      %s24 = sphi 0, %s22
      %s25 = sphi 0, %s23
      %s37 = sphi 0, %s39
      %s40 = sphi 0, %s37
      %s41 = sphi 0, %s40
      %s57 = sphi 0, %s41
      %s63 = sphi 0, %s65
      %s66 = sphi 0, %s63
      %s67 = sphi 0, %s66
      %s83 = sphi 0, %s67
      %s87 = sphi 0, %s87
      %s89 = sphi 0, %s87
      %s90 = sphi 0, %s89
      %s104 = sphi 0, %s90
      %s108 = sphi 0, %s108
      %s110 = sphi 0, %s108
      %s111 = sphi 0, %s110
      %s125 = sphi 0, %s111
      %s129 = sphi 0, %s129
      %s131 = sphi 0, %s129
      %s132 = sphi 0, %s131
      %s146 = sphi 0, %s132
      %s150 = sphi 0, %s150
      %s152 = sphi 0, %s150
      %s153 = sphi 0, %s152
      %s167 = sphi 0, %s153
      %s175 = sphi 0, %s177
      %s178 = sphi 0, %s175
      %s179 = sphi 0, %s178
      %s195 = sphi 0, %s179
    $region4: #{decoder_layer.5} parent=1 // loop_header_branch
      %16 = sbr.rel (%p14) target = $region8
    $region5: #{decoder_layer.5} parent=1 // loop_body
      %s18 = ssub.s32 %s13, 1
      %s19 = ssub.s32 %s13, 2
      %s26 = sadd.s32 1, %s21
      %p27 = scmp.ge.s32.totalorder %s26, 1
      %s28 = scalar_select %p27, 0, %s26
      %s29 = sadd.s32 1, %s20
      %s30 = scalar_select %p27, %s29, %s20
      %p31 = scmp.ge.s32.totalorder %s30, 2
      %s32 = scalar_select %p31, 0, %s30
      %s33 = ssub.s32 %s20, %s32
      %s34 = ssub.s32 %s21, %s28
      %s35 = sor.u32 %s33, %s34
      %p36 = scmp.eq.s32.totalorder %s35, 0
      %s38 = sadd.s32 %s37, 1
      %s39 = scalar_select %p36, %s37, %s38
      %p42 = pneg %p36
      %p43 = scmp.eq.s32.totalorder %s13, 1
      %p44 = por %p42, %p43
      %p45 = scmp.ne.s32.totalorder %s37, %s40
      %p46 = scmp.eq.s32.totalorder %s13, 0
      %p47 = por %p45, %p46
      %p48 = scmp.ne.s32.totalorder %s37, %s40
      %p49 = scmp.eq.s32.totalorder %s18, 1
      %p50 = por %p48, %p49
      %p51 = scmp.ne.s32.totalorder %s40, %s41
      %p52 = scmp.eq.s32.totalorder %s18, 0
      %p53 = por %p51, %p52
      %p54 = scmp.ne.s32.totalorder %s40, %s41
      %p55 = scmp.eq.s32.totalorder %s19, 1
      %p56 = por %p54, %p55
      %p58 = scmp.ne.s32.totalorder %s41, %s57
      %p59 = scmp.eq.s32.totalorder %s19, 0
      %p60 = por %p58, %p59
      %s61 = ssub.s32 %s20, %s32
      %p62 = scmp.eq.s32.totalorder %s61, 0
      %s64 = sadd.s32 %s63, 1
      %s65 = scalar_select %p62, %s63, %s64
      %p68 = pneg %p62
      %p69 = scmp.eq.s32.totalorder %s13, 1
      %p70 = por %p68, %p69
      %p71 = scmp.ne.s32.totalorder %s63, %s66
      %p72 = scmp.eq.s32.totalorder %s13, 0
      %p73 = por %p71, %p72
      %p74 = scmp.ne.s32.totalorder %s63, %s66
      %p75 = scmp.eq.s32.totalorder %s18, 1
      %p76 = por %p74, %p75
      %p77 = scmp.ne.s32.totalorder %s66, %s67
      %p78 = scmp.eq.s32.totalorder %s18, 0
      %p79 = por %p77, %p78
      %p80 = scmp.ne.s32.totalorder %s66, %s67
      %p81 = scmp.eq.s32.totalorder %s19, 1
      %p82 = por %p80, %p81
      %p84 = scmp.ne.s32.totalorder %s67, %s83
      %p85 = scmp.eq.s32.totalorder %s19, 0
      %p86 = por %p84, %p85
      %s88 = sadd.s32 %s87, 1
      %p91 = scmp.eq.s32.totalorder %s13, 1
      %p92 = scmp.ne.s32.totalorder %s87, %s89
      %p93 = scmp.eq.s32.totalorder %s13, 0
      %p94 = por %p92, %p93
      %p95 = scmp.ne.s32.totalorder %s87, %s89
      %p96 = scmp.eq.s32.totalorder %s18, 1
      %p97 = por %p95, %p96
      %p98 = scmp.ne.s32.totalorder %s89, %s90
      %p99 = scmp.eq.s32.totalorder %s18, 0
      %p100 = por %p98, %p99
      %p101 = scmp.ne.s32.totalorder %s89, %s90
      %p102 = scmp.eq.s32.totalorder %s19, 1
      %p103 = por %p101, %p102
      %p105 = scmp.ne.s32.totalorder %s90, %s104
      %p106 = scmp.eq.s32.totalorder %s19, 0
      %p107 = por %p105, %p106
      %s109 = sadd.s32 %s108, 1
      %p112 = scmp.eq.s32.totalorder %s13, 1
      %p113 = scmp.ne.s32.totalorder %s108, %s110
      %p114 = scmp.eq.s32.totalorder %s13, 0
      %p115 = por %p113, %p114
      %p116 = scmp.ne.s32.totalorder %s108, %s110
      %p117 = scmp.eq.s32.totalorder %s18, 1
      %p118 = por %p116, %p117
      %p119 = scmp.ne.s32.totalorder %s110, %s111
      %p120 = scmp.eq.s32.totalorder %s18, 0
      %p121 = por %p119, %p120
      %p122 = scmp.ne.s32.totalorder %s110, %s111
      %p123 = scmp.eq.s32.totalorder %s19, 1
      %p124 = por %p122, %p123
      %p126 = scmp.ne.s32.totalorder %s111, %s125
      %p127 = scmp.eq.s32.totalorder %s19, 0
      %p128 = por %p126, %p127
      %s130 = sadd.s32 %s129, 1
      %p133 = scmp.eq.s32.totalorder %s13, 1
      %p134 = scmp.ne.s32.totalorder %s129, %s131
      %p135 = scmp.eq.s32.totalorder %s13, 0
      %p136 = por %p134, %p135
      %p137 = scmp.ne.s32.totalorder %s129, %s131
      %p138 = scmp.eq.s32.totalorder %s18, 1
      %p139 = por %p137, %p138
      %p140 = scmp.ne.s32.totalorder %s131, %s132
      %p141 = scmp.eq.s32.totalorder %s18, 0
      %p142 = por %p140, %p141
      %p143 = scmp.ne.s32.totalorder %s131, %s132
      %p144 = scmp.eq.s32.totalorder %s19, 1
      %p145 = por %p143, %p144
      %p147 = scmp.ne.s32.totalorder %s132, %s146
      %p148 = scmp.eq.s32.totalorder %s19, 0
      %p149 = por %p147, %p148
      %s151 = sadd.s32 %s150, 1
      %p154 = scmp.eq.s32.totalorder %s13, 1
      %p155 = scmp.ne.s32.totalorder %s150, %s152
      %p156 = scmp.eq.s32.totalorder %s13, 0
      %p157 = por %p155, %p156
      %p158 = scmp.ne.s32.totalorder %s150, %s152
      %p159 = scmp.eq.s32.totalorder %s18, 1
      %p160 = por %p158, %p159
      %p161 = scmp.ne.s32.totalorder %s152, %s153
      %p162 = scmp.eq.s32.totalorder %s18, 0
      %p163 = por %p161, %p162
      %p164 = scmp.ne.s32.totalorder %s152, %s153
      %p165 = scmp.eq.s32.totalorder %s19, 1
      %p166 = por %p164, %p165
      %p168 = scmp.ne.s32.totalorder %s153, %s167
      %p169 = scmp.eq.s32.totalorder %s19, 0
      %p170 = por %p168, %p169
      %s171 = ssub.s32 %s20, %s32
      %s172 = ssub.s32 %s21, %s28
      %s173 = sor.u32 %s171, %s172
      %p174 = scmp.eq.s32.totalorder %s173, 0
      %s176 = sadd.s32 %s175, 1
      %s177 = scalar_select %p174, %s175, %s176
      %p180 = pneg %p174
      %p181 = scmp.eq.s32.totalorder %s13, 1
      %p182 = por %p180, %p181
      %p183 = scmp.ne.s32.totalorder %s175, %s178
      %p184 = scmp.eq.s32.totalorder %s13, 0
      %p185 = por %p183, %p184
      %p186 = scmp.ne.s32.totalorder %s175, %s178
      %p187 = scmp.eq.s32.totalorder %s18, 1
      %p188 = por %p186, %p187
      %p189 = scmp.ne.s32.totalorder %s178, %s179
      %p190 = scmp.eq.s32.totalorder %s18, 0
      %p191 = por %p189, %p190
      %p192 = scmp.ne.s32.totalorder %s178, %s179
      %p193 = scmp.eq.s32.totalorder %s19, 1
      %p194 = por %p192, %p193
      %p196 = scmp.ne.s32.totalorder %s179, %s195
      %p197 = scmp.eq.s32.totalorder %s19, 0
      %p198 = por %p196, %p197
      %p199 = scmp.le.s32.totalorder 1, %s13
      %p200 = scmp.lt.s32.totalorder %s13, 3
      %p201 = pnand %p199, %p200
      %p202 = pneg %p201
      // Predicated region
      $region9: #{decoder_layer.5} parent=5 // pred_check
        _
      $region10: #{decoder_layer.5} parent=5 // pred_check_branch
        %204 = sbr.rel (%p201) target = $region12
      $region11: #{decoder_layer.5} parent=5 // pred_region
        %s205 = ssub.s32 %s13, 1
        // Predicated region
        $region13: #{decoder_layer.5} parent=11 // pred_check
          %p206 = pneg %p100
        $region14: #{decoder_layer.5} parent=11 // pred_check_branch
          %208 = sbr.rel (%p206) target = $region16
        $region15: #{decoder_layer.5} parent=11 // pred_region
          _
        $region16: #{decoder_layer.5} parent=11 // pred_fallthru
          _
        // Predicated region
        $region17: #{decoder_layer.5} parent=11 // pred_check
          %p209 = pneg %p121
        $region18: #{decoder_layer.5} parent=11 // pred_check_branch
          %211 = sbr.rel (%p209) target = $region20
        $region19: #{decoder_layer.5} parent=11 // pred_region
          _
        $region20: #{decoder_layer.5} parent=11 // pred_fallthru
          _
        // Predicated region
        $region21: #{decoder_layer.5} parent=11 // pred_check
          %p212 = pneg %p142
        $region22: #{decoder_layer.5} parent=11 // pred_check_branch
          %214 = sbr.rel (%p212) target = $region24
        $region23: #{decoder_layer.5} parent=11 // pred_region
          %s216 = ssub.s32 2048, 2048
          %217 = vsyncadd [#allocation3], %s216
          %s218 = sshll.u32 [#allocation2], 4
          %s219 = int_to_ptr.vmem [resolvable:$true] %s218
          %224 = dma.hbm_to_vmem [thread:$0]  %s4, 2048, %s219, [#allocation3], 128, 128, 8
        $region24: #{decoder_layer.5} parent=11 // pred_fallthru
          _
        // Predicated region
        $region25: #{decoder_layer.5} parent=11 // pred_check
          %p225 = pneg %p163
        $region26: #{decoder_layer.5} parent=11 // pred_check_branch
          %227 = sbr.rel (%p225) target = $region28
        $region27: #{decoder_layer.5} parent=11 // pred_region
          _
        $region28: #{decoder_layer.5} parent=11 // pred_fallthru
          _
      $region12: #{decoder_layer.5} parent=5 // pred_fallthru
        _
      %p228 = scmp.lt.s32.totalorder %s13, 2
      // Predicated region
      $region29: #{decoder_layer.5} parent=5 // pred_check
        %p229 = pneg %p228
      $region30: #{decoder_layer.5} parent=5 // pred_check_branch
        %231 = sbr.rel (%p229) target = $region32
      $region31: #{decoder_layer.5} parent=5 // pred_region
        // Predicated region
        $region33: #{decoder_layer.5} parent=31 // pred_check
          %p232 = pneg %p47
        $region34: #{decoder_layer.5} parent=31 // pred_check_branch
          %234 = sbr.rel (%p232) target = $region36
        $region35: #{decoder_layer.5} parent=31 // pred_region
          %p235 = scmp.lt.s32.totalorder %s20, 1
          %s236 = scalar_select %p235, %s20, 1
          %p237 = scmp.lt.s32.totalorder %s21, 0
          %s238 = scalar_select %p237, %s21, 0
          %s239 = sadd.s32 %s238, %s236
          %s240 = smul.addr %s239, 8
          %s241 = scalar_lea.vmem %s0, %s240
        $region36: #{decoder_layer.5} parent=31 // pred_fallthru
          _
        // Predicated region
        $region37: #{decoder_layer.5} parent=31 // pred_check
          %p242 = pneg %p73
        $region38: #{decoder_layer.5} parent=31 // pred_check_branch
          %244 = sbr.rel (%p242) target = $region40
        $region39: #{decoder_layer.5} parent=31 // pred_region
          %p245 = scmp.lt.s32.totalorder %s20, 1
          %s246 = scalar_select %p245, %s20, 1
          %s247 = smul.addr %s246, 8
          %s248 = scalar_lea.vmem %s1, %s247
        $region40: #{decoder_layer.5} parent=31 // pred_fallthru
          _
      $region32: #{decoder_layer.5} parent=5 // pred_fallthru
        _
      %p249 = scmp.le.s32.totalorder 1, %s13
      %p250 = scmp.lt.s32.totalorder %s13, 3
      %p251 = pnand %p249, %p250
      %p252 = pneg %p251
      // Predicated region
      $region41: #{decoder_layer.5} parent=5 // pred_check
        _
      $region42: #{decoder_layer.5} parent=5 // pred_check_branch
        %254 = sbr.rel (%p251) target = $region44
      $region43: #{decoder_layer.5} parent=5 // pred_region
        %s255 = ssub.s32 %s13, 1
        // Predicated region
        $region45: #{decoder_layer.5} parent=43 // pred_check
          %p256 = pneg %p142
        $region46: #{decoder_layer.5} parent=43 // pred_check_branch
          %258 = sbr.rel (%p256) target = $region48
        $region47: #{decoder_layer.5} parent=43 // pred_region
          %259 = dma.done [#allocation3], 2048
        $region48: #{decoder_layer.5} parent=43 // pred_fallthru
          _
        %p260 = scmp.lt.s32.totalorder %s22, 1
        %s261 = scalar_select %p260, %s22, 1
        %p262 = scmp.lt.s32.totalorder %s23, 0
        %s263 = scalar_select %p262, %s23, 0
        %s264 = sadd.s32 %s263, %s261
        %s265 = smul.addr %s264, 8
        %s266 = scalar_lea.vmem %s0, %s265
        %p267 = pneg %p53
        %p268 = pneg %p50
        %p269 = scmp.lt.s32.totalorder %s22, 1
        %s270 = scalar_select %p269, %s22, 1
        %s271 = smul.addr %s270, 8
        %s272 = scalar_lea.vmem %s1, %s271
        %p273 = pneg %p79
        %p274 = pneg %p76
        %p275 = pneg %p100
        %p276 = pneg %p97
        %p277 = pneg %p121
        %p278 = pneg %p118
        %p279 = pneg %p142
        %p280 = pneg %p139
        %p281 = pneg %p163
        %p282 = pneg %p160
        %p283 = pneg %p191
        %p284 = pneg %p188
        %p285 = scmp.lt.s32.totalorder %s22, 1
        %s286 = scalar_select %p285, %s22, 1
        %p287 = scmp.lt.s32.totalorder %s23, 0
        %s288 = scalar_select %p287, %s23, 0
        %s289 = sadd.s32 %s288, %s286
        %s290 = smul.addr %s289, 8
        %s291 = scalar_lea.vmem %s6, %s290
        %p292 = scmp.lt.s32.totalorder %s22, 1
        %s293 = scalar_select %p292, %s22, 1
        %p294 = scmp.lt.s32.totalorder %s23, 0
        %s295 = scalar_select %p294, %s23, 0
        %s296 = sadd.s32 %s295, %s293
        %s297 = smul.addr %s296, 8
        %s298 = scalar_lea.vmem %s0, %s297
        %p299 = scmp.lt.s32.totalorder %s22, 1
        %s300 = scalar_select %p299, %s22, 1
        %s301 = smul.addr %s300, 8
        %s302 = scalar_lea.vmem %s1, %s301
        %p303 = scmp.lt.s32.totalorder %s22, 1
        %s304 = scalar_select %p303, %s22, 1
        %p305 = scmp.lt.s32.totalorder %s23, 0
        %s306 = scalar_select %p305, %s23, 0
        %s307 = sadd.s32 %s306, %s304
        %s308 = smul.addr %s307, 8
        %s309 = scalar_lea.vmem %s6, %s308
        %v311 = vld [vmem:[%s298] sm:$0xff]
        %v312 = vpack.c.bf16 %v311, %v311
        %v313 = vld [vmem:[%s302] sm:$0xff]
        %v314 = vpack.c.bf16 %v313, %v313
        %v315 = vld [vmem:[%s2] sm:$0xf]
        %v316 = vld [vmem:[%s2 + $0x4] sm:$0xf]
        %v317 = vld [vmem:[%s2 + $0x8] sm:$0xf]
        %v318 = vld [vmem:[%s2 + $0xc] sm:$0xf]
        %v319 = vld [vmem:[%s2 + $0x10] sm:$0xf]
        %v320 = vld [vmem:[%s2 + $0x14] sm:$0xf]
        %v321 = vld [vmem:[%s2 + $0x18] sm:$0xf]
        %v322 = vld [vmem:[%s2 + $0x1c] sm:$0xf]
        %v323 = vld [vmem:[%s2 + $0x20] sm:$0xf]
        %v324 = vld [vmem:[%s2 + $0x24] sm:$0xf]
        %v325 = vld [vmem:[%s2 + $0x28] sm:$0xf]
        %v326 = vld [vmem:[%s2 + $0x2c] sm:$0xf]
        %v327 = vld [vmem:[%s2 + $0x30] sm:$0xf]
        %v328 = vld [vmem:[%s2 + $0x34] sm:$0xf]
        %v329 = vld [vmem:[%s2 + $0x38] sm:$0xf]
        %v330 = vld [vmem:[%s2 + $0x3c] sm:$0xf]
        %v331 = vld [vmem:[%s3] sm:$0x1]
        %v333 = vlaneseq
        %v334 = vshrl.u32 %v333, 7
        %v335 = vsub.s32 0, %v334
        %v336 = vrot.slane %v331, %v335
        %v354 = vunpack.c.l.b16 %v315
        %v355 = vunpack.c.l.b16 %v316
        %v356 = vunpack.c.l.b16 %v317
        %v357 = vunpack.c.l.b16 %v318
        %v358 = vunpack.c.l.b16 %v319
        %v359 = vunpack.c.l.b16 %v320
        %v360 = vunpack.c.l.b16 %v321
        %v361 = vunpack.c.l.b16 %v322
        %v362 = vunpack.c.l.b16 %v323
        %v363 = vunpack.c.l.b16 %v324
        %v364 = vunpack.c.l.b16 %v325
        %v365 = vunpack.c.l.b16 %v326
        %v366 = vunpack.c.l.b16 %v327
        %v367 = vunpack.c.l.b16 %v328
        %v368 = vunpack.c.l.b16 %v329
        %v369 = vunpack.c.l.b16 %v330
        %v370 = vpack.c.b16 %v355, %v354
        %v371 = vpack.c.b16 %v357, %v356
        %v372 = vpack.c.b16 %v359, %v358
        %v373 = vpack.c.b16 %v361, %v360
        %v374 = vpack.c.b16 %v363, %v362
        %v375 = vpack.c.b16 %v365, %v364
        %v376 = vpack.c.b16 %v367, %v366
        %v377 = vpack.c.b16 %v369, %v368
        %386 = vmatprep.subr.bf16.mxu0 0
        %387 = vmatpush1.bf16.msra.mxu0 %v370
        %388 = vmatprep.subr.bf16.mxu0 0
        %389 = vmatpush1.bf16.msra.mxu0 %v371
        %390 = vmatprep.subr.bf16.mxu0 0
        %391 = vmatpush1.bf16.msra.mxu0 %v372
        %392 = vmatprep.subr.bf16.mxu0 0
        %393 = vmatpush1.bf16.msra.mxu0 %v373
        %394 = vmatprep.subr.bf16.mxu0 0
        %395 = vmatpush1.bf16.msra.mxu0 %v374
        %396 = vmatprep.subr.bf16.mxu0 0
        %397 = vmatpush1.bf16.msra.mxu0 %v375
        %398 = vmatprep.subr.bf16.mxu0 0
        %399 = vmatpush1.bf16.msra.mxu0 %v376
        %400 = vmatprep.subr.bf16.mxu0 0
        %401 = vmatpush1.bf16.msra.mxu0 %v377
        %402 = vmatprep.subr.bf16.mxu0 0
        %403 = vmatpush1.bf16.msra.mxu0 0
        %404 = vmatprep.subr.bf16.mxu0 0
        %405 = vmatpush1.bf16.msra.mxu0 0
        %406 = vmatprep.subr.bf16.mxu0 0
        %407 = vmatpush1.bf16.msra.mxu0 0
        %408 = vmatprep.subr.bf16.mxu0 0
        %409 = vmatpush1.bf16.msra.mxu0 0
        %410 = vmatprep.subr.bf16.mxu0 0
        %411 = vmatpush1.bf16.msra.mxu0 0
        %412 = vmatprep.subr.bf16.mxu0 0
        %413 = vmatpush1.bf16.msra.mxu0 0
        %414 = vmatprep.subr.bf16.mxu0 0
        %415 = vmatpush1.bf16.msra.mxu0 0
        %416 = vmatprep.subr.bf16.mxu0 0
        %417 = vmatpush1.bf16.msra.mxu0 0
        %418 = vmatprep.mubr.bf16.mxu0 0
        %419 = vmatmul.mubr.bf16.gmra.mrb[0].mxu0 %v312
        %v420 = vpop.f32.mrb[0].mxu0
        %v421 = vadd.f32 %v336, %v420
        %v422 = vpop.f32.mrb[0].mxu0
        %v423 = vpop.f32.mrb[0].mxu0
        %v424 = vpop.f32.mrb[0].mxu0
        %425 = vdwg.mxu0
        %v426 = vld [vmem:[#allocation2] sm:$0xff]
        %v427 = vld [vmem:[#allocation2 + $0x8] sm:$0xff]
        %v428 = vld [vmem:[#allocation2 + $0x10] sm:$0xff]
        %v429 = vld [vmem:[#allocation2 + $0x18] sm:$0xff]
        %v430 = vld [vmem:[#allocation2 + $0x20] sm:$0xff]
        %v431 = vld [vmem:[#allocation2 + $0x28] sm:$0xff]
        %v432 = vld [vmem:[#allocation2 + $0x30] sm:$0xff]
        %v433 = vld [vmem:[#allocation2 + $0x38] sm:$0xff]
        %v434 = vld [vmem:[#allocation2 + $0x40] sm:$0xff]
        %v435 = vld [vmem:[#allocation2 + $0x48] sm:$0xff]
        %v436 = vld [vmem:[#allocation2 + $0x50] sm:$0xff]
        %v437 = vld [vmem:[#allocation2 + $0x58] sm:$0xff]
        %v438 = vld [vmem:[#allocation2 + $0x60] sm:$0xff]
        %v439 = vld [vmem:[#allocation2 + $0x68] sm:$0xff]
        %v440 = vld [vmem:[#allocation2 + $0x70] sm:$0xff]
        %v441 = vld [vmem:[#allocation2 + $0x78] sm:$0xff]
        %v442 = vld [vmem:[%s5] sm:$0x3]
        %v444 = vlaneseq
        %v445 = vshrl.u32 %v444, 7
        %v446 = vsub.s32 0, %v445
        %v447 = vrot.slane %v442, %v446
        %v448 = vlaneseq
        %v449 = vshrl.u32 %v448, 7
        %v450 = vsub.s32 1, %v449
        %v451 = vrot.slane %v442, %v450
        %v470 = vunpack.c.l.b16 %v426
        %v471 = vunpack.c.h.b16 %v426
        %v472 = vunpack.c.l.b16 %v427
        %v473 = vunpack.c.h.b16 %v427
        %v474 = vunpack.c.l.b16 %v428
        %v475 = vunpack.c.h.b16 %v428
        %v476 = vunpack.c.l.b16 %v429
        %v477 = vunpack.c.h.b16 %v429
        %v478 = vunpack.c.l.b16 %v430
        %v479 = vunpack.c.h.b16 %v430
        %v480 = vunpack.c.l.b16 %v431
        %v481 = vunpack.c.h.b16 %v431
        %v482 = vunpack.c.l.b16 %v432
        %v483 = vunpack.c.h.b16 %v432
        %v484 = vunpack.c.l.b16 %v433
        %v485 = vunpack.c.h.b16 %v433
        %v486 = vunpack.c.l.b16 %v434
        %v487 = vunpack.c.h.b16 %v434
        %v488 = vunpack.c.l.b16 %v435
        %v489 = vunpack.c.h.b16 %v435
        %v490 = vunpack.c.l.b16 %v436
        %v491 = vunpack.c.h.b16 %v436
        %v492 = vunpack.c.l.b16 %v437
        %v493 = vunpack.c.h.b16 %v437
        %v494 = vunpack.c.l.b16 %v438
        %v495 = vunpack.c.h.b16 %v438
        %v496 = vunpack.c.l.b16 %v439
        %v497 = vunpack.c.h.b16 %v439
        %v498 = vunpack.c.l.b16 %v440
        %v499 = vunpack.c.h.b16 %v440
        %v500 = vunpack.c.l.b16 %v441
        %v501 = vunpack.c.h.b16 %v441
        %v502 = vpack.c.b16 %v472, %v470
        %v503 = vpack.c.b16 %v473, %v471
        %v504 = vpack.c.b16 %v476, %v474
        %v505 = vpack.c.b16 %v477, %v475
        %v506 = vpack.c.b16 %v480, %v478
        %v507 = vpack.c.b16 %v481, %v479
        %v508 = vpack.c.b16 %v484, %v482
        %v509 = vpack.c.b16 %v485, %v483
        %v510 = vpack.c.b16 %v488, %v486
        %v511 = vpack.c.b16 %v489, %v487
        %v512 = vpack.c.b16 %v492, %v490
        %v513 = vpack.c.b16 %v493, %v491
        %v514 = vpack.c.b16 %v496, %v494
        %v515 = vpack.c.b16 %v497, %v495
        %v516 = vpack.c.b16 %v500, %v498
        %v517 = vpack.c.b16 %v501, %v499
        %534 = vmatprep.subr.bf16.mxu0 %v503
        %535 = vmatpush1.bf16.msra.mxu0 %v502
        %536 = vmatprep.subr.bf16.mxu0 %v505
        %537 = vmatpush1.bf16.msra.mxu0 %v504
        %538 = vmatprep.subr.bf16.mxu0 %v507
        %539 = vmatpush1.bf16.msra.mxu0 %v506
        %540 = vmatprep.subr.bf16.mxu0 %v509
        %541 = vmatpush1.bf16.msra.mxu0 %v508
        %542 = vmatprep.subr.bf16.mxu0 %v511
        %543 = vmatpush1.bf16.msra.mxu0 %v510
        %544 = vmatprep.subr.bf16.mxu0 %v513
        %545 = vmatpush1.bf16.msra.mxu0 %v512
        %546 = vmatprep.subr.bf16.mxu0 %v515
        %547 = vmatpush1.bf16.msra.mxu0 %v514
        %548 = vmatprep.subr.bf16.mxu0 %v517
        %549 = vmatpush1.bf16.msra.mxu0 %v516
        %550 = vmatprep.subr.bf16.mxu0 0
        %551 = vmatpush1.bf16.msra.mxu0 0
        %552 = vmatprep.subr.bf16.mxu0 0
        %553 = vmatpush1.bf16.msra.mxu0 0
        %554 = vmatprep.subr.bf16.mxu0 0
        %555 = vmatpush1.bf16.msra.mxu0 0
        %556 = vmatprep.subr.bf16.mxu0 0
        %557 = vmatpush1.bf16.msra.mxu0 0
        %558 = vmatprep.subr.bf16.mxu0 0
        %559 = vmatpush1.bf16.msra.mxu0 0
        %560 = vmatprep.subr.bf16.mxu0 0
        %561 = vmatpush1.bf16.msra.mxu0 0
        %562 = vmatprep.subr.bf16.mxu0 0
        %563 = vmatpush1.bf16.msra.mxu0 0
        %564 = vmatprep.subr.bf16.mxu0 0
        %565 = vmatpush1.bf16.msra.mxu0 0
        %566 = vmatprep.mubr.bf16.mxu0 0
        %567 = vmatmul.mubr.bf16.gmra.mrb[0].mxu0 %v314
        %v568 = vpop.f32.mrb[0].mxu0
        %v569 = vadd.f32 %v447, %v568
        %v570 = vpop.f32.mrb[0].mxu0
        %v571 = vadd.f32 %v451, %v570
        %v572 = vpop.f32.mrb[0].mxu0
        %v573 = vpop.f32.mrb[0].mxu0
        %574 = vdwg.mxu0
        %v575 = vmul.f32 %v421, 0.17677669
        %v576 = vpack.c.bf16 %v575, %v575
        %578 = vrot.lane.b32.xlu0 %v576, 96
        %v579 = vpop.permute.xlu0 %578
        %580 = vrot.lane.b32.xlu0 %v576, 64
        %v581 = vpop.permute.xlu0 %580
        %582 = vrot.lane.b32.xlu0 %v576, 32
        %v583 = vpop.permute.xlu0 %582
        %v584 = vpack.c.bf16 %v569, %v569
        %586 = vrot.lane.b32.xlu0 %v584, 96
        %v587 = vpop.permute.xlu0 %586
        %589 = vrot.lane.b32.xlu0 %v584, 64
        %v590 = vpop.permute.xlu0 %589
        %592 = vrot.lane.b32.xlu0 %v584, 32
        %v593 = vpop.permute.xlu0 %592
        %v595 = vpack.c.bf16 %v571, %v571
        %597 = vrot.lane.b32.xlu0 %v595, 96
        %v598 = vpop.permute.xlu0 %597
        %600 = vrot.lane.b32.xlu0 %v595, 64
        %v601 = vpop.permute.xlu0 %600
        %603 = vrot.lane.b32.xlu0 %v595, 32
        %v604 = vpop.permute.xlu0 %603
        %v606 = vlaneseq
        %v607 = vshrl.u32 %v606, 7
        %s608 = smul.u32 %s23, 8
        %v609 = vstv %s608
        %v610 = vadd.s32 %v607, %v609
        %v611 = vlaneseq
        %v612 = vand.u32 %v611, 127
        %vm613 = vcmp.gt.s32.totalorder %v612, %v610
        %v614 = vsel %vm613, -1e+09, 0.0
        %615 = vxpose.xlu0.c.b16.start [1/8] %v584, 128
        %616 = vxpose.xlu0.c.b16.cont [2/8] 0, 128
        %617 = vxpose.xlu0.c.b16.cont [3/8] 0, 128
        %618 = vxpose.xlu0.c.b16.cont [4/8] 0, 128
        %619 = vxpose.xlu0.c.b16.cont [5/8] 0, 128
        %620 = vxpose.xlu0.c.b16.cont [6/8] 0, 128
        %621 = vxpose.xlu0.c.b16.cont [7/8] 0, 128
        %622 = vxpose.xlu0.c.b16.end [8/8] 0, 128
        %v623 = vpop.trf.xlu0
        %v624 = vpop.trf.xlu0
        %v625 = vpop.trf.xlu0
        %v626 = vpop.trf.xlu0
        %v627 = vpop.trf.xlu0
        %v628 = vpop.trf.xlu0
        %v629 = vpop.trf.xlu0
        %v630 = vpop.trf.xlu0
        %631 = vxpose.xlu0.c.b16.start [1/8] %v587, 128
        %632 = vxpose.xlu0.c.b16.cont [2/8] 0, 128
        %633 = vxpose.xlu0.c.b16.cont [3/8] 0, 128
        %634 = vxpose.xlu0.c.b16.cont [4/8] 0, 128
        %635 = vxpose.xlu0.c.b16.cont [5/8] 0, 128
        %636 = vxpose.xlu0.c.b16.cont [6/8] 0, 128
        %637 = vxpose.xlu0.c.b16.cont [7/8] 0, 128
        %638 = vxpose.xlu0.c.b16.end [8/8] 0, 128
        %v639 = vpop.trf.xlu0
        %v640 = vpop.trf.xlu0
        %v641 = vpop.trf.xlu0
        %v642 = vpop.trf.xlu0
        %v643 = vpop.trf.xlu0
        %v644 = vpop.trf.xlu0
        %v645 = vpop.trf.xlu0
        %v646 = vpop.trf.xlu0
        %647 = vxpose.xlu0.c.b16.start [1/8] %v590, 128
        %648 = vxpose.xlu0.c.b16.cont [2/8] 0, 128
        %649 = vxpose.xlu0.c.b16.cont [3/8] 0, 128
        %650 = vxpose.xlu0.c.b16.cont [4/8] 0, 128
        %651 = vxpose.xlu0.c.b16.cont [5/8] 0, 128
        %652 = vxpose.xlu0.c.b16.cont [6/8] 0, 128
        %653 = vxpose.xlu0.c.b16.cont [7/8] 0, 128
        %654 = vxpose.xlu0.c.b16.end [8/8] 0, 128
        %v655 = vpop.trf.xlu0
        %v656 = vpop.trf.xlu0
        %v657 = vpop.trf.xlu0
        %v658 = vpop.trf.xlu0
        %v659 = vpop.trf.xlu0
        %v660 = vpop.trf.xlu0
        %v661 = vpop.trf.xlu0
        %v662 = vpop.trf.xlu0
        %663 = vxpose.xlu0.c.b16.start [1/8] %v593, 128
        %664 = vxpose.xlu0.c.b16.cont [2/8] 0, 128
        %665 = vxpose.xlu0.c.b16.cont [3/8] 0, 128
        %666 = vxpose.xlu0.c.b16.cont [4/8] 0, 128
        %667 = vxpose.xlu0.c.b16.cont [5/8] 0, 128
        %668 = vxpose.xlu0.c.b16.cont [6/8] 0, 128
        %669 = vxpose.xlu0.c.b16.cont [7/8] 0, 128
        %670 = vxpose.xlu0.c.b16.end [8/8] 0, 128
        %v671 = vpop.trf.xlu0
        %v672 = vpop.trf.xlu0
        %v673 = vpop.trf.xlu0
        %v674 = vpop.trf.xlu0
        %v675 = vpop.trf.xlu0
        %v676 = vpop.trf.xlu0
        %v677 = vpop.trf.xlu0
        %v678 = vpop.trf.xlu0
        %vm679 = vcmask 261120
        %v681 = vsel %vm679, %v576, 0
        %683 = vmatprep.subr.bf16.mxu0 0
        %684 = vmatpush1.bf16.msra.mxu0 %v623
        %685 = vmatprep.subr.bf16.mxu0 0
        %686 = vmatpush1.bf16.msra.mxu0 %v624
        %687 = vmatprep.subr.bf16.mxu0 0
        %688 = vmatpush1.bf16.msra.mxu0 0
        %689 = vmatprep.subr.bf16.mxu0 0
        %690 = vmatpush1.bf16.msra.mxu0 0
        %691 = vmatprep.subr.bf16.mxu0 0
        %692 = vmatpush1.bf16.msra.mxu0 0
        %693 = vmatprep.subr.bf16.mxu0 0
        %694 = vmatpush1.bf16.msra.mxu0 0
        %695 = vmatprep.subr.bf16.mxu0 0
        %696 = vmatpush1.bf16.msra.mxu0 0
        %697 = vmatprep.subr.bf16.mxu0 0
        %698 = vmatpush1.bf16.msra.mxu0 0
        %699 = vmatprep.subr.bf16.mxu0 0
        %700 = vmatpush1.bf16.msra.mxu0 0
        %701 = vmatprep.subr.bf16.mxu0 0
        %702 = vmatpush1.bf16.msra.mxu0 0
        %703 = vmatprep.subr.bf16.mxu0 0
        %704 = vmatpush1.bf16.msra.mxu0 0
        %705 = vmatprep.subr.bf16.mxu0 0
        %706 = vmatpush1.bf16.msra.mxu0 0
        %707 = vmatprep.subr.bf16.mxu0 0
        %708 = vmatpush1.bf16.msra.mxu0 0
        %709 = vmatprep.subr.bf16.mxu0 0
        %710 = vmatpush1.bf16.msra.mxu0 0
        %711 = vmatprep.subr.bf16.mxu0 0
        %712 = vmatpush1.bf16.msra.mxu0 0
        %713 = vmatprep.subr.bf16.mxu0 0
        %714 = vmatpush1.bf16.msra.mxu0 0
        %715 = vmatprep.mubr.bf16.mxu0 0
        %716 = vmatmul.mubr.bf16.gmra.mrb[0].mxu0 %v681
        %v717 = vpop.f32.mrb[0].mxu0
        %v718 = vadd.f32 %v614, %v717
        %v719 = vpop.f32.mrb[0].mxu0
        %v720 = vpop.f32.mrb[0].mxu0
        %v721 = vpop.f32.mrb[0].mxu0
        %722 = vdwg.mxu0
        %v724 = vsel %vm679, %v579, 0
        %726 = vmatprep.subr.bf16.mxu0 0
        %727 = vmatpush1.bf16.msra.mxu0 %v639
        %728 = vmatprep.subr.bf16.mxu0 0
        %729 = vmatpush1.bf16.msra.mxu0 %v640
        %730 = vmatprep.subr.bf16.mxu0 0
        %731 = vmatpush1.bf16.msra.mxu0 0
        %732 = vmatprep.subr.bf16.mxu0 0
        %733 = vmatpush1.bf16.msra.mxu0 0
        %734 = vmatprep.subr.bf16.mxu0 0
        %735 = vmatpush1.bf16.msra.mxu0 0
        %736 = vmatprep.subr.bf16.mxu0 0
        %737 = vmatpush1.bf16.msra.mxu0 0
        %738 = vmatprep.subr.bf16.mxu0 0
        %739 = vmatpush1.bf16.msra.mxu0 0
        %740 = vmatprep.subr.bf16.mxu0 0
        %741 = vmatpush1.bf16.msra.mxu0 0
        %742 = vmatprep.subr.bf16.mxu0 0
        %743 = vmatpush1.bf16.msra.mxu0 0
        %744 = vmatprep.subr.bf16.mxu0 0
        %745 = vmatpush1.bf16.msra.mxu0 0
        %746 = vmatprep.subr.bf16.mxu0 0
        %747 = vmatpush1.bf16.msra.mxu0 0
        %748 = vmatprep.subr.bf16.mxu0 0
        %749 = vmatpush1.bf16.msra.mxu0 0
        %750 = vmatprep.subr.bf16.mxu0 0
        %751 = vmatpush1.bf16.msra.mxu0 0
        %752 = vmatprep.subr.bf16.mxu0 0
        %753 = vmatpush1.bf16.msra.mxu0 0
        %754 = vmatprep.subr.bf16.mxu0 0
        %755 = vmatpush1.bf16.msra.mxu0 0
        %756 = vmatprep.subr.bf16.mxu0 0
        %757 = vmatpush1.bf16.msra.mxu0 0
        %758 = vmatprep.mubr.bf16.mxu0 0
        %759 = vmatmul.mubr.bf16.gmra.mrb[0].mxu0 %v724
        %v760 = vpop.f32.mrb[0].mxu0
        %v761 = vadd.f32 %v614, %v760
        %v762 = vpop.f32.mrb[0].mxu0
        %v763 = vpop.f32.mrb[0].mxu0
        %v764 = vpop.f32.mrb[0].mxu0
        %765 = vdwg.mxu0
        %v767 = vsel %vm679, %v581, 0
        %769 = vmatprep.subr.bf16.mxu0 0
        %770 = vmatpush1.bf16.msra.mxu0 %v655
        %771 = vmatprep.subr.bf16.mxu0 0
        %772 = vmatpush1.bf16.msra.mxu0 %v656
        %773 = vmatprep.subr.bf16.mxu0 0
        %774 = vmatpush1.bf16.msra.mxu0 0
        %775 = vmatprep.subr.bf16.mxu0 0
        %776 = vmatpush1.bf16.msra.mxu0 0
        %777 = vmatprep.subr.bf16.mxu0 0
        %778 = vmatpush1.bf16.msra.mxu0 0
        %779 = vmatprep.subr.bf16.mxu0 0
        %780 = vmatpush1.bf16.msra.mxu0 0
        %781 = vmatprep.subr.bf16.mxu0 0
        %782 = vmatpush1.bf16.msra.mxu0 0
        %783 = vmatprep.subr.bf16.mxu0 0
        %784 = vmatpush1.bf16.msra.mxu0 0
        %785 = vmatprep.subr.bf16.mxu0 0
        %786 = vmatpush1.bf16.msra.mxu0 0
        %787 = vmatprep.subr.bf16.mxu0 0
        %788 = vmatpush1.bf16.msra.mxu0 0
        %789 = vmatprep.subr.bf16.mxu0 0
        %790 = vmatpush1.bf16.msra.mxu0 0
        %791 = vmatprep.subr.bf16.mxu0 0
        %792 = vmatpush1.bf16.msra.mxu0 0
        %793 = vmatprep.subr.bf16.mxu0 0
        %794 = vmatpush1.bf16.msra.mxu0 0
        %795 = vmatprep.subr.bf16.mxu0 0
        %796 = vmatpush1.bf16.msra.mxu0 0
        %797 = vmatprep.subr.bf16.mxu0 0
        %798 = vmatpush1.bf16.msra.mxu0 0
        %799 = vmatprep.subr.bf16.mxu0 0
        %800 = vmatpush1.bf16.msra.mxu0 0
        %801 = vmatprep.mubr.bf16.mxu0 0
        %802 = vmatmul.mubr.bf16.gmra.mrb[0].mxu0 %v767
        %v803 = vpop.f32.mrb[0].mxu0
        %v804 = vadd.f32 %v614, %v803
        %v805 = vpop.f32.mrb[0].mxu0
        %v806 = vpop.f32.mrb[0].mxu0
        %v807 = vpop.f32.mrb[0].mxu0
        %808 = vdwg.mxu0
        %v810 = vsel %vm679, %v583, 0
        %812 = vmatprep.subr.bf16.mxu0 0
        %813 = vmatpush1.bf16.msra.mxu0 %v671
        %814 = vmatprep.subr.bf16.mxu0 0
        %815 = vmatpush1.bf16.msra.mxu0 %v672
        %816 = vmatprep.subr.bf16.mxu0 0
        %817 = vmatpush1.bf16.msra.mxu0 0
        %818 = vmatprep.subr.bf16.mxu0 0
        %819 = vmatpush1.bf16.msra.mxu0 0
        %820 = vmatprep.subr.bf16.mxu0 0
        %821 = vmatpush1.bf16.msra.mxu0 0
        %822 = vmatprep.subr.bf16.mxu0 0
        %823 = vmatpush1.bf16.msra.mxu0 0
        %824 = vmatprep.subr.bf16.mxu0 0
        %825 = vmatpush1.bf16.msra.mxu0 0
        %826 = vmatprep.subr.bf16.mxu0 0
        %827 = vmatpush1.bf16.msra.mxu0 0
        %828 = vmatprep.subr.bf16.mxu0 0
        %829 = vmatpush1.bf16.msra.mxu0 0
        %830 = vmatprep.subr.bf16.mxu0 0
        %831 = vmatpush1.bf16.msra.mxu0 0
        %832 = vmatprep.subr.bf16.mxu0 0
        %833 = vmatpush1.bf16.msra.mxu0 0
        %834 = vmatprep.subr.bf16.mxu0 0
        %835 = vmatpush1.bf16.msra.mxu0 0
        %836 = vmatprep.subr.bf16.mxu0 0
        %837 = vmatpush1.bf16.msra.mxu0 0
        %838 = vmatprep.subr.bf16.mxu0 0
        %839 = vmatpush1.bf16.msra.mxu0 0
        %840 = vmatprep.subr.bf16.mxu0 0
        %841 = vmatpush1.bf16.msra.mxu0 0
        %842 = vmatprep.subr.bf16.mxu0 0
        %843 = vmatpush1.bf16.msra.mxu0 0
        %844 = vmatprep.mubr.bf16.mxu0 0
        %845 = vmatmul.mubr.bf16.gmra.mrb[0].mxu0 %v810
        %v846 = vpop.f32.mrb[0].mxu0
        %v847 = vadd.f32 %v614, %v846
        %v848 = vpop.f32.mrb[0].mxu0
        %v849 = vpop.f32.mrb[0].mxu0
        %v850 = vpop.f32.mrb[0].mxu0
        %851 = vdwg.mxu0
        %vm852 = vcmask 64512
        %v853 = vsel %vm852, %v718, -inf
        %854 = vmax.xlane.f32.xlu0 %v853
        %v855 = vpop.xlane.xlu0 %854
        %v856 = vsel %vm852, %v761, -inf
        %857 = vmax.xlane.f32.xlu0 %v856
        %v858 = vpop.xlane.xlu0 %857
        %v859 = vsel %vm852, %v804, -inf
        %860 = vmax.xlane.f32.xlu0 %v859
        %v861 = vpop.xlane.xlu0 %860
        %v862 = vsel %vm852, %v847, -inf
        %863 = vmax.xlane.f32.xlu0 %v862
        %v864 = vpop.xlane.xlu0 %863
        %v865 = vsub.f32 %v718, %v855
        %v866 = vsub.f32 %v761, %v858
        %v867 = vsub.f32 %v804, %v861
        %v868 = vsub.f32 %v847, %v864
        %v869 = vmul.f32 %v865, 1.442695
        %v870 = vpow.pop %v869
        %v871 = vmul.f32 %v866, 1.442695
        %v872 = vpow.pop %v871
        %v873 = vmul.f32 %v867, 1.442695
        %v874 = vpow.pop %v873
        %v875 = vmul.f32 %v868, 1.442695
        %v876 = vpow.pop %v875
        %v877 = vsel %vm852, %v870, 0.0
        %878 = vadd.xlane.f32.xlu0 %v877
        %v879 = vpop.xlane.xlu0 %878
        %v880 = vsel %vm852, %v872, 0.0
        %881 = vadd.xlane.f32.xlu0 %v880
        %v882 = vpop.xlane.xlu0 %881
        %v883 = vsel %vm852, %v874, 0.0
        %884 = vadd.xlane.f32.xlu0 %v883
        %v885 = vpop.xlane.xlu0 %884
        %v886 = vsel %vm852, %v876, 0.0
        %887 = vadd.xlane.f32.xlu0 %v886
        %v888 = vpop.xlane.xlu0 %887
        %v889 = vrcp.pop %v879
        %v890 = vrcp.pop %v882
        %v891 = vrcp.pop %v885
        %v892 = vrcp.pop %v888
        %v893 = vmul.f32 %v870, %v889
        %v894 = vmul.f32 %v872, %v890
        %v895 = vmul.f32 %v874, %v891
        %v896 = vmul.f32 %v876, %v892
        %v897 = vpack.c.bf16 %v893, %v893
        %v898 = vpack.c.bf16 %v894, %v894
        %v899 = vpack.c.bf16 %v895, %v895
        %v900 = vpack.c.bf16 %v896, %v896
        %901 = vxpose.xlu0.c.b16.start [1/8] %v595, 128
        %902 = vxpose.xlu0.c.b16.cont [2/8] 0, 128
        %903 = vxpose.xlu0.c.b16.cont [3/8] 0, 128
        %904 = vxpose.xlu0.c.b16.cont [4/8] 0, 128
        %905 = vxpose.xlu0.c.b16.cont [5/8] 0, 128
        %906 = vxpose.xlu0.c.b16.cont [6/8] 0, 128
        %907 = vxpose.xlu0.c.b16.cont [7/8] 0, 128
        %908 = vxpose.xlu0.c.b16.end [8/8] 0, 128
        %v909 = vpop.trf.xlu0
        %v910 = vpop.trf.xlu0
        %v911 = vpop.trf.xlu0
        %v912 = vpop.trf.xlu0
        %v913 = vpop.trf.xlu0
        %v914 = vpop.trf.xlu0
        %v915 = vpop.trf.xlu0
        %v916 = vpop.trf.xlu0
        %917 = vxpose.xlu0.c.b16.start [1/8] %v598, 128
        %918 = vxpose.xlu0.c.b16.cont [2/8] 0, 128
        %919 = vxpose.xlu0.c.b16.cont [3/8] 0, 128
        %920 = vxpose.xlu0.c.b16.cont [4/8] 0, 128
        %921 = vxpose.xlu0.c.b16.cont [5/8] 0, 128
        %922 = vxpose.xlu0.c.b16.cont [6/8] 0, 128
        %923 = vxpose.xlu0.c.b16.cont [7/8] 0, 128
        %924 = vxpose.xlu0.c.b16.end [8/8] 0, 128
        %v925 = vpop.trf.xlu0
        %v926 = vpop.trf.xlu0
        %v927 = vpop.trf.xlu0
        %v928 = vpop.trf.xlu0
        %v929 = vpop.trf.xlu0
        %v930 = vpop.trf.xlu0
        %v931 = vpop.trf.xlu0
        %v932 = vpop.trf.xlu0
        %933 = vxpose.xlu0.c.b16.start [1/8] %v601, 128
        %934 = vxpose.xlu0.c.b16.cont [2/8] 0, 128
        %935 = vxpose.xlu0.c.b16.cont [3/8] 0, 128
        %936 = vxpose.xlu0.c.b16.cont [4/8] 0, 128
        %937 = vxpose.xlu0.c.b16.cont [5/8] 0, 128
        %938 = vxpose.xlu0.c.b16.cont [6/8] 0, 128
        %939 = vxpose.xlu0.c.b16.cont [7/8] 0, 128
        %940 = vxpose.xlu0.c.b16.end [8/8] 0, 128
        %v941 = vpop.trf.xlu0
        %v942 = vpop.trf.xlu0
        %v943 = vpop.trf.xlu0
        %v944 = vpop.trf.xlu0
        %v945 = vpop.trf.xlu0
        %v946 = vpop.trf.xlu0
        %v947 = vpop.trf.xlu0
        %v948 = vpop.trf.xlu0
        %949 = vxpose.xlu0.c.b16.start [1/8] %v604, 128
        %950 = vxpose.xlu0.c.b16.cont [2/8] 0, 128
        %951 = vxpose.xlu0.c.b16.cont [3/8] 0, 128
        %952 = vxpose.xlu0.c.b16.cont [4/8] 0, 128
        %953 = vxpose.xlu0.c.b16.cont [5/8] 0, 128
        %954 = vxpose.xlu0.c.b16.cont [6/8] 0, 128
        %955 = vxpose.xlu0.c.b16.cont [7/8] 0, 128
        %956 = vxpose.xlu0.c.b16.end [8/8] 0, 128
        %v957 = vpop.trf.xlu0
        %v958 = vpop.trf.xlu0
        %v959 = vpop.trf.xlu0
        %v960 = vpop.trf.xlu0
        %v961 = vpop.trf.xlu0
        %v962 = vpop.trf.xlu0
        %v963 = vpop.trf.xlu0
        %v964 = vpop.trf.xlu0
        %v966 = vsel %vm852, %v909, 0
        %v969 = vsel %vm852, %v910, 0
        %v972 = vsel %vm852, %v897, 0
        %974 = vmatprep.subr.bf16.mxu0 0
        %975 = vmatpush1.bf16.xpose.msra.mxu0 %v972
        %976 = vmatprep.subr.bf16.mxu0 0
        %977 = vmatpush1.bf16.xpose.msra.mxu0 0
        %978 = vmatprep.subr.bf16.mxu0 0
        %979 = vmatpush1.bf16.xpose.msra.mxu0 0
        %980 = vmatprep.subr.bf16.mxu0 0
        %981 = vmatpush1.bf16.xpose.msra.mxu0 0
        %982 = vmatprep.subr.bf16.mxu0 0
        %983 = vmatpush1.bf16.xpose.msra.mxu0 0
        %984 = vmatprep.subr.bf16.mxu0 0
        %985 = vmatpush1.bf16.xpose.msra.mxu0 0
        %986 = vmatprep.subr.bf16.mxu0 0
        %987 = vmatpush1.bf16.xpose.msra.mxu0 0
        %988 = vmatprep.subr.bf16.mxu0 0
        %989 = vmatpush1.bf16.xpose.msra.mxu0 0
        %990 = vmatprep.subr.bf16.mxu0 0
        %991 = vmatpush1.bf16.xpose.msra.mxu0 0
        %992 = vmatprep.subr.bf16.mxu0 0
        %993 = vmatpush1.bf16.xpose.msra.mxu0 0
        %994 = vmatprep.subr.bf16.mxu0 0
        %995 = vmatpush1.bf16.xpose.msra.mxu0 0
        %996 = vmatprep.subr.bf16.mxu0 0
        %997 = vmatpush1.bf16.xpose.msra.mxu0 0
        %998 = vmatprep.subr.bf16.mxu0 0
        %999 = vmatpush1.bf16.xpose.msra.mxu0 0
        %1000 = vmatprep.subr.bf16.mxu0 0
        %1001 = vmatpush1.bf16.xpose.msra.mxu0 0
        %1002 = vmatprep.subr.bf16.mxu0 0
        %1003 = vmatpush1.bf16.xpose.msra.mxu0 0
        %1004 = vmatprep.subr.bf16.mxu0 0
        %1005 = vmatpush1.bf16.xpose.msra.mxu0 0
        %1006 = vmatprep.mubr.bf16.mxu0 0
        %1007 = vmatmul.mubr.bf16.gmra.mrb[0].mxu0 %v966
        %v1008 = vpop.f32.mrb[0].mxu0
        %v1009 = vadd.f32 0.0, %v1008
        %v1010 = vpop.f32.mrb[0].mxu0
        %v1011 = vpop.f32.mrb[0].mxu0
        %v1012 = vadd.f32 0.0, %v1011
        %v1013 = vpop.f32.mrb[0].mxu0
        %1014 = vmatprep.mubr.bf16.mxu0 0
        %1015 = vmatmul.mubr.bf16.gmra.mrb[0].mxu0 %v969
        %v1016 = vpop.f32.mrb[0].mxu0
        %v1017 = vadd.f32 0.0, %v1016
        %v1018 = vpop.f32.mrb[0].mxu0
        %v1019 = vpop.f32.mrb[0].mxu0
        %v1020 = vadd.f32 0.0, %v1019
        %v1021 = vpop.f32.mrb[0].mxu0
        %1022 = vdwg.mxu0
        %v1024 = vsel %vm852, %v925, 0
        %v1027 = vsel %vm852, %v926, 0
        %v1030 = vsel %vm852, %v898, 0
        %1032 = vmatprep.subr.bf16.mxu0 0
        %1033 = vmatpush1.bf16.xpose.msra.mxu0 %v1030
        %1034 = vmatprep.subr.bf16.mxu0 0
        %1035 = vmatpush1.bf16.xpose.msra.mxu0 0
        %1036 = vmatprep.subr.bf16.mxu0 0
        %1037 = vmatpush1.bf16.xpose.msra.mxu0 0
        %1038 = vmatprep.subr.bf16.mxu0 0
        %1039 = vmatpush1.bf16.xpose.msra.mxu0 0
        %1040 = vmatprep.subr.bf16.mxu0 0
        %1041 = vmatpush1.bf16.xpose.msra.mxu0 0
        %1042 = vmatprep.subr.bf16.mxu0 0
        %1043 = vmatpush1.bf16.xpose.msra.mxu0 0
        %1044 = vmatprep.subr.bf16.mxu0 0
        %1045 = vmatpush1.bf16.xpose.msra.mxu0 0
        %1046 = vmatprep.subr.bf16.mxu0 0
        %1047 = vmatpush1.bf16.xpose.msra.mxu0 0
        %1048 = vmatprep.subr.bf16.mxu0 0
        %1049 = vmatpush1.bf16.xpose.msra.mxu0 0
        %1050 = vmatprep.subr.bf16.mxu0 0
        %1051 = vmatpush1.bf16.xpose.msra.mxu0 0
        %1052 = vmatprep.subr.bf16.mxu0 0
        %1053 = vmatpush1.bf16.xpose.msra.mxu0 0
        %1054 = vmatprep.subr.bf16.mxu0 0
        %1055 = vmatpush1.bf16.xpose.msra.mxu0 0
        %1056 = vmatprep.subr.bf16.mxu0 0
        %1057 = vmatpush1.bf16.xpose.msra.mxu0 0
        %1058 = vmatprep.subr.bf16.mxu0 0
        %1059 = vmatpush1.bf16.xpose.msra.mxu0 0
        %1060 = vmatprep.subr.bf16.mxu0 0
        %1061 = vmatpush1.bf16.xpose.msra.mxu0 0
        %1062 = vmatprep.subr.bf16.mxu0 0
        %1063 = vmatpush1.bf16.xpose.msra.mxu0 0
        %1064 = vmatprep.mubr.bf16.mxu0 0
        %1065 = vmatmul.mubr.bf16.gmra.mrb[0].mxu0 %v1024
        %v1066 = vpop.f32.mrb[0].mxu0
        %v1067 = vadd.f32 0.0, %v1066
        %v1068 = vpop.f32.mrb[0].mxu0
        %v1069 = vpop.f32.mrb[0].mxu0
        %v1070 = vadd.f32 0.0, %v1069
        %v1071 = vpop.f32.mrb[0].mxu0
        %1072 = vmatprep.mubr.bf16.mxu0 0
        %1073 = vmatmul.mubr.bf16.gmra.mrb[0].mxu0 %v1027
        %v1074 = vpop.f32.mrb[0].mxu0
        %v1075 = vadd.f32 0.0, %v1074
        %v1076 = vpop.f32.mrb[0].mxu0
        %v1077 = vpop.f32.mrb[0].mxu0
        %v1078 = vadd.f32 0.0, %v1077
        %v1079 = vpop.f32.mrb[0].mxu0
        %1080 = vdwg.mxu0
        %v1082 = vsel %vm852, %v941, 0
        %v1085 = vsel %vm852, %v942, 0
        %v1088 = vsel %vm852, %v899, 0
        %1090 = vmatprep.subr.bf16.mxu0 0
        %1091 = vmatpush1.bf16.xpose.msra.mxu0 %v1088
        %1092 = vmatprep.subr.bf16.mxu0 0
        %1093 = vmatpush1.bf16.xpose.msra.mxu0 0
        %1094 = vmatprep.subr.bf16.mxu0 0
        %1095 = vmatpush1.bf16.xpose.msra.mxu0 0
        %1096 = vmatprep.subr.bf16.mxu0 0
        %1097 = vmatpush1.bf16.xpose.msra.mxu0 0
        %1098 = vmatprep.subr.bf16.mxu0 0
        %1099 = vmatpush1.bf16.xpose.msra.mxu0 0
        %1100 = vmatprep.subr.bf16.mxu0 0
        %1101 = vmatpush1.bf16.xpose.msra.mxu0 0
        %1102 = vmatprep.subr.bf16.mxu0 0
        %1103 = vmatpush1.bf16.xpose.msra.mxu0 0
        %1104 = vmatprep.subr.bf16.mxu0 0
        %1105 = vmatpush1.bf16.xpose.msra.mxu0 0
        %1106 = vmatprep.subr.bf16.mxu0 0
        %1107 = vmatpush1.bf16.xpose.msra.mxu0 0
        %1108 = vmatprep.subr.bf16.mxu0 0
        %1109 = vmatpush1.bf16.xpose.msra.mxu0 0
        %1110 = vmatprep.subr.bf16.mxu0 0
        %1111 = vmatpush1.bf16.xpose.msra.mxu0 0
        %1112 = vmatprep.subr.bf16.mxu0 0
        %1113 = vmatpush1.bf16.xpose.msra.mxu0 0
        %1114 = vmatprep.subr.bf16.mxu0 0
        %1115 = vmatpush1.bf16.xpose.msra.mxu0 0
        %1116 = vmatprep.subr.bf16.mxu0 0
        %1117 = vmatpush1.bf16.xpose.msra.mxu0 0
        %1118 = vmatprep.subr.bf16.mxu0 0
        %1119 = vmatpush1.bf16.xpose.msra.mxu0 0
        %1120 = vmatprep.subr.bf16.mxu0 0
        %1121 = vmatpush1.bf16.xpose.msra.mxu0 0
        %1122 = vmatprep.mubr.bf16.mxu0 0
        %1123 = vmatmul.mubr.bf16.gmra.mrb[0].mxu0 %v1082
        %v1124 = vpop.f32.mrb[0].mxu0
        %v1125 = vadd.f32 0.0, %v1124
        %v1126 = vpop.f32.mrb[0].mxu0
        %v1127 = vpop.f32.mrb[0].mxu0
        %v1128 = vadd.f32 0.0, %v1127
        %v1129 = vpop.f32.mrb[0].mxu0
        %1130 = vmatprep.mubr.bf16.mxu0 0
        %1131 = vmatmul.mubr.bf16.gmra.mrb[0].mxu0 %v1085
        %v1132 = vpop.f32.mrb[0].mxu0
        %v1133 = vadd.f32 0.0, %v1132
        %v1134 = vpop.f32.mrb[0].mxu0
        %v1135 = vpop.f32.mrb[0].mxu0
        %v1136 = vadd.f32 0.0, %v1135
        %v1137 = vpop.f32.mrb[0].mxu0
        %1138 = vdwg.mxu0
        %v1140 = vsel %vm852, %v957, 0
        %v1143 = vsel %vm852, %v958, 0
        %v1146 = vsel %vm852, %v900, 0
        %1148 = vmatprep.subr.bf16.mxu0 0
        %1149 = vmatpush1.bf16.xpose.msra.mxu0 %v1146
        %1150 = vmatprep.subr.bf16.mxu0 0
        %1151 = vmatpush1.bf16.xpose.msra.mxu0 0
        %1152 = vmatprep.subr.bf16.mxu0 0
        %1153 = vmatpush1.bf16.xpose.msra.mxu0 0
        %1154 = vmatprep.subr.bf16.mxu0 0
        %1155 = vmatpush1.bf16.xpose.msra.mxu0 0
        %1156 = vmatprep.subr.bf16.mxu0 0
        %1157 = vmatpush1.bf16.xpose.msra.mxu0 0
        %1158 = vmatprep.subr.bf16.mxu0 0
        %1159 = vmatpush1.bf16.xpose.msra.mxu0 0
        %1160 = vmatprep.subr.bf16.mxu0 0
        %1161 = vmatpush1.bf16.xpose.msra.mxu0 0
        %1162 = vmatprep.subr.bf16.mxu0 0
        %1163 = vmatpush1.bf16.xpose.msra.mxu0 0
        %1164 = vmatprep.subr.bf16.mxu0 0
        %1165 = vmatpush1.bf16.xpose.msra.mxu0 0
        %1166 = vmatprep.subr.bf16.mxu0 0
        %1167 = vmatpush1.bf16.xpose.msra.mxu0 0
        %1168 = vmatprep.subr.bf16.mxu0 0
        %1169 = vmatpush1.bf16.xpose.msra.mxu0 0
        %1170 = vmatprep.subr.bf16.mxu0 0
        %1171 = vmatpush1.bf16.xpose.msra.mxu0 0
        %1172 = vmatprep.subr.bf16.mxu0 0
        %1173 = vmatpush1.bf16.xpose.msra.mxu0 0
        %1174 = vmatprep.subr.bf16.mxu0 0
        %1175 = vmatpush1.bf16.xpose.msra.mxu0 0
        %1176 = vmatprep.subr.bf16.mxu0 0
        %1177 = vmatpush1.bf16.xpose.msra.mxu0 0
        %1178 = vmatprep.subr.bf16.mxu0 0
        %1179 = vmatpush1.bf16.xpose.msra.mxu0 0
        %1180 = vmatprep.mubr.bf16.mxu0 0
        %1181 = vmatmul.mubr.bf16.gmra.mrb[0].mxu0 %v1140
        %v1182 = vpop.f32.mrb[0].mxu0
        %v1183 = vadd.f32 0.0, %v1182
        %v1184 = vpop.f32.mrb[0].mxu0
        %v1185 = vpop.f32.mrb[0].mxu0
        %v1186 = vadd.f32 0.0, %v1185
        %v1187 = vpop.f32.mrb[0].mxu0
        %1188 = vmatprep.mubr.bf16.mxu0 0
        %1189 = vmatmul.mubr.bf16.gmra.mrb[0].mxu0 %v1143
        %v1190 = vpop.f32.mrb[0].mxu0
        %v1191 = vadd.f32 0.0, %v1190
        %v1192 = vpop.f32.mrb[0].mxu0
        %v1193 = vpop.f32.mrb[0].mxu0
        %v1194 = vadd.f32 0.0, %v1193
        %v1195 = vpop.f32.mrb[0].mxu0
        %1196 = vdwg.mxu0
        %1197 = vxpose.xlu0.b32.start [1/16] %v1009, 128
        %1198 = vxpose.xlu0.b32.cont [2/16] %v1012, 128
        %1199 = vxpose.xlu0.b32.cont [3/16] %v1017, 128
        %1200 = vxpose.xlu0.b32.cont [4/16] %v1020, 128
        %1201 = vxpose.xlu0.b32.cont [5/16] 0.0, 128
        %1202 = vxpose.xlu0.b32.cont [6/16] 0.0, 128
        %1203 = vxpose.xlu0.b32.cont [7/16] 0.0, 128
        %1204 = vxpose.xlu0.b32.cont [8/16] 0.0, 128
        %1205 = vxpose.xlu0.b32.cont [9/16] 0.0, 128
        %1206 = vxpose.xlu0.b32.cont [10/16] 0.0, 128
        %1207 = vxpose.xlu0.b32.cont [11/16] 0.0, 128
        %1208 = vxpose.xlu0.b32.cont [12/16] 0.0, 128
        %1209 = vxpose.xlu0.b32.cont [13/16] 0.0, 128
        %1210 = vxpose.xlu0.b32.cont [14/16] 0.0, 128
        %1211 = vxpose.xlu0.b32.cont [15/16] 0.0, 128
        %1212 = vxpose.xlu0.b32.end [16/16] 0.0, 128
        %v1213 = vpop.trf.xlu0
        %v1214 = vpop.trf.xlu0
        %v1215 = vpop.trf.xlu0
        %v1216 = vpop.trf.xlu0
        %v1217 = vpop.trf.xlu0
        %v1218 = vpop.trf.xlu0
        %v1219 = vpop.trf.xlu0
        %v1220 = vpop.trf.xlu0
        %v1221 = vpop.trf.xlu0
        %v1222 = vpop.trf.xlu0
        %v1223 = vpop.trf.xlu0
        %v1224 = vpop.trf.xlu0
        %v1225 = vpop.trf.xlu0
        %v1226 = vpop.trf.xlu0
        %v1227 = vpop.trf.xlu0
        %v1228 = vpop.trf.xlu0
        %1229 = vxpose.xlu0.b32.start [1/16] %v1067, 128
        %1230 = vxpose.xlu0.b32.cont [2/16] %v1070, 128
        %1231 = vxpose.xlu0.b32.cont [3/16] %v1075, 128
        %1232 = vxpose.xlu0.b32.cont [4/16] %v1078, 128
        %1233 = vxpose.xlu0.b32.cont [5/16] 0.0, 128
        %1234 = vxpose.xlu0.b32.cont [6/16] 0.0, 128
        %1235 = vxpose.xlu0.b32.cont [7/16] 0.0, 128
        %1236 = vxpose.xlu0.b32.cont [8/16] 0.0, 128
        %1237 = vxpose.xlu0.b32.cont [9/16] 0.0, 128
        %1238 = vxpose.xlu0.b32.cont [10/16] 0.0, 128
        %1239 = vxpose.xlu0.b32.cont [11/16] 0.0, 128
        %1240 = vxpose.xlu0.b32.cont [12/16] 0.0, 128
        %1241 = vxpose.xlu0.b32.cont [13/16] 0.0, 128
        %1242 = vxpose.xlu0.b32.cont [14/16] 0.0, 128
        %1243 = vxpose.xlu0.b32.cont [15/16] 0.0, 128
        %1244 = vxpose.xlu0.b32.end [16/16] 0.0, 128
        %v1245 = vpop.trf.xlu0
        %v1246 = vpop.trf.xlu0
        %v1247 = vpop.trf.xlu0
        %v1248 = vpop.trf.xlu0
        %v1249 = vpop.trf.xlu0
        %v1250 = vpop.trf.xlu0
        %v1251 = vpop.trf.xlu0
        %v1252 = vpop.trf.xlu0
        %v1253 = vpop.trf.xlu0
        %v1254 = vpop.trf.xlu0
        %v1255 = vpop.trf.xlu0
        %v1256 = vpop.trf.xlu0
        %v1257 = vpop.trf.xlu0
        %v1258 = vpop.trf.xlu0
        %v1259 = vpop.trf.xlu0
        %v1260 = vpop.trf.xlu0
        %1261 = vxpose.xlu0.b32.start [1/16] %v1125, 128
        %1262 = vxpose.xlu0.b32.cont [2/16] %v1128, 128
        %1263 = vxpose.xlu0.b32.cont [3/16] %v1133, 128
        %1264 = vxpose.xlu0.b32.cont [4/16] %v1136, 128
        %1265 = vxpose.xlu0.b32.cont [5/16] 0.0, 128
        %1266 = vxpose.xlu0.b32.cont [6/16] 0.0, 128
        %1267 = vxpose.xlu0.b32.cont [7/16] 0.0, 128
        %1268 = vxpose.xlu0.b32.cont [8/16] 0.0, 128
        %1269 = vxpose.xlu0.b32.cont [9/16] 0.0, 128
        %1270 = vxpose.xlu0.b32.cont [10/16] 0.0, 128
        %1271 = vxpose.xlu0.b32.cont [11/16] 0.0, 128
        %1272 = vxpose.xlu0.b32.cont [12/16] 0.0, 128
        %1273 = vxpose.xlu0.b32.cont [13/16] 0.0, 128
        %1274 = vxpose.xlu0.b32.cont [14/16] 0.0, 128
        %1275 = vxpose.xlu0.b32.cont [15/16] 0.0, 128
        %1276 = vxpose.xlu0.b32.end [16/16] 0.0, 128
        %v1277 = vpop.trf.xlu0
        %v1278 = vpop.trf.xlu0
        %v1279 = vpop.trf.xlu0
        %v1280 = vpop.trf.xlu0
        %v1281 = vpop.trf.xlu0
        %v1282 = vpop.trf.xlu0
        %v1283 = vpop.trf.xlu0
        %v1284 = vpop.trf.xlu0
        %v1285 = vpop.trf.xlu0
        %v1286 = vpop.trf.xlu0
        %v1287 = vpop.trf.xlu0
        %v1288 = vpop.trf.xlu0
        %v1289 = vpop.trf.xlu0
        %v1290 = vpop.trf.xlu0
        %v1291 = vpop.trf.xlu0
        %v1292 = vpop.trf.xlu0
        %1293 = vxpose.xlu0.b32.start [1/16] %v1183, 128
        %1294 = vxpose.xlu0.b32.cont [2/16] %v1186, 128
        %1295 = vxpose.xlu0.b32.cont [3/16] %v1191, 128
        %1296 = vxpose.xlu0.b32.cont [4/16] %v1194, 128
        %1297 = vxpose.xlu0.b32.cont [5/16] 0.0, 128
        %1298 = vxpose.xlu0.b32.cont [6/16] 0.0, 128
        %1299 = vxpose.xlu0.b32.cont [7/16] 0.0, 128
        %1300 = vxpose.xlu0.b32.cont [8/16] 0.0, 128
        %1301 = vxpose.xlu0.b32.cont [9/16] 0.0, 128
        %1302 = vxpose.xlu0.b32.cont [10/16] 0.0, 128
        %1303 = vxpose.xlu0.b32.cont [11/16] 0.0, 128
        %1304 = vxpose.xlu0.b32.cont [12/16] 0.0, 128
        %1305 = vxpose.xlu0.b32.cont [13/16] 0.0, 128
        %1306 = vxpose.xlu0.b32.cont [14/16] 0.0, 128
        %1307 = vxpose.xlu0.b32.cont [15/16] 0.0, 128
        %1308 = vxpose.xlu0.b32.end [16/16] 0.0, 128
        %v1309 = vpop.trf.xlu0
        %v1310 = vpop.trf.xlu0
        %v1311 = vpop.trf.xlu0
        %v1312 = vpop.trf.xlu0
        %v1313 = vpop.trf.xlu0
        %v1314 = vpop.trf.xlu0
        %v1315 = vpop.trf.xlu0
        %v1316 = vpop.trf.xlu0
        %v1317 = vpop.trf.xlu0
        %v1318 = vpop.trf.xlu0
        %v1319 = vpop.trf.xlu0
        %v1320 = vpop.trf.xlu0
        %v1321 = vpop.trf.xlu0
        %v1322 = vpop.trf.xlu0
        %v1323 = vpop.trf.xlu0
        %v1324 = vpop.trf.xlu0
        %v1325 = vcombine.low %v1213, %v1277
        %v1326 = vcombine.high %v1213, %v1277
        %v1328 = vunpack.c.l.s4 1983009808
        %v1329 = vunpack.c.0.s8 %v1328
        %v1330 = vlaneseq
        %v1331 = vshrl.u32 %v1330, 7
        %v1332 = vsub.s32 %v1329, %v1331
        %v1333 = vrot.slane %v1325, %v1332
        %v1335 = vunpack.c.l.s4 1983009808
        %v1336 = vunpack.c.0.s8 %v1335
        %v1337 = vlaneseq
        %v1338 = vshrl.u32 %v1337, 7
        %v1339 = vsub.s32 %v1336, %v1338
        %v1340 = vrot.slane %v1326, %v1339
        %v1341 = vcombine.low %v1245, %v1309
        %v1342 = vcombine.high %v1245, %v1309
        %v1344 = vunpack.c.l.s4 1983009808
        %v1345 = vunpack.c.0.s8 %v1344
        %v1346 = vlaneseq
        %v1347 = vshrl.u32 %v1346, 7
        %v1348 = vsub.s32 %v1345, %v1347
        %v1349 = vrot.slane %v1341, %v1348
        %v1351 = vunpack.c.l.s4 1983009808
        %v1352 = vunpack.c.0.s8 %v1351
        %v1353 = vlaneseq
        %v1354 = vshrl.u32 %v1353, 7
        %v1355 = vsub.s32 %v1352, %v1354
        %v1356 = vrot.slane %v1342, %v1355
        %v1357 = vcombine.low %v1333, %v1349
        %v1358 = vcombine.high %v1333, %v1349
        %v1360 = vunpack.c.l.s4 1934713408
        %v1361 = vunpack.c.0.s8 %v1360
        %v1362 = vlaneseq
        %v1363 = vshrl.u32 %v1362, 7
        %v1364 = vsub.s32 %v1361, %v1363
        %v1365 = vrot.slane %v1357, %v1364
        %v1367 = vunpack.c.l.s4 1934713408
        %v1368 = vunpack.c.0.s8 %v1367
        %v1369 = vlaneseq
        %v1370 = vshrl.u32 %v1369, 7
        %v1371 = vsub.s32 %v1368, %v1370
        %v1372 = vrot.slane %v1358, %v1371
        %v1373 = vcombine.low %v1340, %v1356
        %v1374 = vcombine.high %v1340, %v1356
        %v1376 = vunpack.c.l.s4 1934713408
        %v1377 = vunpack.c.0.s8 %v1376
        %v1378 = vlaneseq
        %v1379 = vshrl.u32 %v1378, 7
        %v1380 = vsub.s32 %v1377, %v1379
        %v1381 = vrot.slane %v1373, %v1380
        %v1383 = vunpack.c.l.s4 1934713408
        %v1384 = vunpack.c.0.s8 %v1383
        %v1385 = vlaneseq
        %v1386 = vshrl.u32 %v1385, 7
        %v1387 = vsub.s32 %v1384, %v1386
        %v1388 = vrot.slane %v1374, %v1387
        %v1389 = vcombine.high %v1365, 0.0
        %v1390 = vcombine.high %v1372, 0.0
        %v1391 = vcombine.high %v1381, 0.0
        %v1392 = vcombine.high %v1388, 0.0
        %v1393 = vcombine.low %v1365, %v1372
        %v1395 = vunpack.c.l.s4 1983009808
        %v1396 = vunpack.c.0.s8 %v1395
        %v1397 = vlaneseq
        %v1398 = vshrl.u32 %v1397, 7
        %v1399 = vsub.s32 %v1396, %v1398
        %v1400 = vrot.slane %v1393, %v1399
        %v1401 = vcombine.low %v1389, %v1390
        %v1403 = vunpack.c.l.s4 1983009808
        %v1404 = vunpack.c.0.s8 %v1403
        %v1405 = vlaneseq
        %v1406 = vshrl.u32 %v1405, 7
        %v1407 = vsub.s32 %v1404, %v1406
        %v1408 = vrot.slane %v1401, %v1407
        %v1409 = vcombine.low %v1381, %v1388
        %v1411 = vunpack.c.l.s4 1983009808
        %v1412 = vunpack.c.0.s8 %v1411
        %v1413 = vlaneseq
        %v1414 = vshrl.u32 %v1413, 7
        %v1415 = vsub.s32 %v1412, %v1414
        %v1416 = vrot.slane %v1409, %v1415
        %v1417 = vcombine.low %v1391, %v1392
        %v1419 = vunpack.c.l.s4 1983009808
        %v1420 = vunpack.c.0.s8 %v1419
        %v1421 = vlaneseq
        %v1422 = vshrl.u32 %v1421, 7
        %v1423 = vsub.s32 %v1420, %v1422
        %v1424 = vrot.slane %v1417, %v1423
        %v1425 = vcombine.low %v1400, %v1408
        %v1426 = vcombine.high %v1400, %v1408
        %v1428 = vunpack.c.l.s4 1934713408
        %v1429 = vunpack.c.0.s8 %v1428
        %v1430 = vlaneseq
        %v1431 = vshrl.u32 %v1430, 7
        %v1432 = vsub.s32 %v1429, %v1431
        %v1433 = vrot.slane %v1425, %v1432
        %v1435 = vunpack.c.l.s4 1934713408
        %v1436 = vunpack.c.0.s8 %v1435
        %v1437 = vlaneseq
        %v1438 = vshrl.u32 %v1437, 7
        %v1439 = vsub.s32 %v1436, %v1438
        %v1440 = vrot.slane %v1426, %v1439
        %v1441 = vcombine.low %v1416, %v1424
        %v1442 = vcombine.high %v1416, %v1424
        %v1444 = vunpack.c.l.s4 1934713408
        %v1445 = vunpack.c.0.s8 %v1444
        %v1446 = vlaneseq
        %v1447 = vshrl.u32 %v1446, 7
        %v1448 = vsub.s32 %v1445, %v1447
        %v1449 = vrot.slane %v1441, %v1448
        %v1451 = vunpack.c.l.s4 1934713408
        %v1452 = vunpack.c.0.s8 %v1451
        %v1453 = vlaneseq
        %v1454 = vshrl.u32 %v1453, 7
        %v1455 = vsub.s32 %v1452, %v1454
        %v1456 = vrot.slane %v1442, %v1455
        %v1457 = vcombine.low %v1433, %v1449
        %v1458 = vcombine.high %v1433, %v1449
        %v1459 = vcombine.low %v1440, %v1456
        %v1460 = vcombine.high %v1440, %v1456
        %1462 = vrot.lane.b32.xlu0 %v1458, 32
        %v1463 = vpop.permute.xlu0 %1462
        %1466 = vrot.lane.b32.xlu0 %v1459, 64
        %v1467 = vpop.permute.xlu0 %1466
        %1470 = vrot.lane.b32.xlu0 %v1460, 96
        %v1471 = vpop.permute.xlu0 %1470
        %v1473 = vsel %vm679, %v1457, %v1463
        %vm1474 = vcmask 523264
        %v1475 = vsel %vm1474, %v1473, %v1467
        %vm1476 = vcmask 785408
        %v1477 = vsel %vm1476, %v1475, %v1471
        %1478 = vst [vmem:[%s309] sm:$0xff] %v1477
        %p1479 = scmp.lt.s32.totalorder %s22, 1
        %s1480 = scalar_select %p1479, %s22, 1
        %p1481 = scmp.lt.s32.totalorder %s23, 0
        %s1482 = scalar_select %p1481, %s23, 0
        %s1483 = sadd.s32 %s1482, %s1480
        %s1484 = smul.addr %s1483, 8
        %s1485 = scalar_lea.vmem %s6, %s1484
        // Predicated region
        $region49: #{decoder_layer.5} parent=43 // pred_check
          %p1486 = pneg %p188
        $region50: #{decoder_layer.5} parent=43 // pred_check_branch
          %1488 = sbr.rel (%p1486) target = $region52
        $region51: #{decoder_layer.5} parent=43 // pred_region
          _
        $region52: #{decoder_layer.5} parent=43 // pred_fallthru
          _
      $region44: #{decoder_layer.5} parent=5 // pred_fallthru
        _
      %p1489 = scmp.le.s32.totalorder 2, %s13
      // Predicated region
      $region53: #{decoder_layer.5} parent=5 // pred_check
        %p1490 = pneg %p1489
      $region54: #{decoder_layer.5} parent=5 // pred_check_branch
        %1492 = sbr.rel (%p1490) target = $region56
      $region55: #{decoder_layer.5} parent=5 // pred_region
        %s1493 = ssub.s32 %s13, 2
        // Predicated region
        $region57: #{decoder_layer.5} parent=55 // pred_check
          %p1494 = pneg %p194
        $region58: #{decoder_layer.5} parent=55 // pred_check_branch
          %1496 = sbr.rel (%p1494) target = $region60
        $region59: #{decoder_layer.5} parent=55 // pred_region
          %p1497 = scmp.lt.s32.totalorder %s24, 1
          %s1498 = scalar_select %p1497, %s24, 1
          %p1499 = scmp.lt.s32.totalorder %s25, 0
          %s1500 = scalar_select %p1499, %s25, 0
          %s1501 = sadd.s32 %s1500, %s1498
          %s1502 = smul.addr %s1501, 8
          %s1503 = scalar_lea.vmem %s6, %s1502
        $region60: #{decoder_layer.5} parent=55 // pred_fallthru
          _
      $region56: #{decoder_layer.5} parent=5 // pred_fallthru
        _
    $region6: #{decoder_layer.5} parent=1 // loop_footer
      %s17 = sadd.s32 1, %s13
    $region7: #{decoder_layer.5} parent=1 // loop_footer_branch
      %12 = sbr.rel target = $region3
    $region8: #{decoder_layer.5} parent=1 // loop_exit
      _
    %1504 = vsyncpa [#allocation3], 1
    %s1505 = scalar_lea.sflag [#allocation3], 1
    %1506 = vsyncpa %s1505, 1

// kernel: decoder_layer.7
$region0: #{decoder_layer.7}
  #allocation0 [shape = 'u32[]', space=smem, size = 0x4, offset = 0x4, fixed_abs, tag = 'smem constant byte address 0x4 - core index']
  #allocation1 [shape = 'u32[144,128]{1,0:T(1,128)}', space=vmem, size = 0x12000, scoped, tag = 'internal scratch']
  %s0 = inlined_call_operand.vmem [shape: f32[2,8,128], index: 0, kind: input, shape index: {}]
  %s1 = inlined_call_operand.vmem [shape: f32[2,8,128], index: 1, kind: input, shape index: {}]
  %s2 = inlined_call_operand.vmem [shape: bf16[128,128], index: 2, kind: input, shape index: {}]
  %s3 = inlined_call_operand.vmem [shape: f32[1,128], index: 3, kind: input, shape index: {}]
  %s4 = inlined_call_operand.vmem [shape: bf16[128,256], index: 4, kind: input, shape index: {}]
  %s5 = inlined_call_operand.vmem [shape: f32[1,256], index: 5, kind: input, shape index: {}]
  %s6 = inlined_call_operand.vmem [shape: f32[2,8,128], index: 6, kind: output, shape index: {}]
  %s7 = sld [smem:[#allocation0]]
  $region57: #{decoder_layer.7} parent=0
    _
  %s9 = ssub.s32 1, %s7
  %s10 = scalar_select 0, %s9, %s7
  loop: start=0, step=1, limit=4
  $region2: #{decoder_layer.7} parent=0 // loop_pre_header
    _
  $region3: #{decoder_layer.7} parent=0 // loop_header
    %s12 = sphi 0, %s16
    %p13 = scmp.ge.s32.totalorder %s12, 4
    %s19 = sphi 0, %s31
    %s20 = sphi 0, %s27
    %s21 = sphi 0, %s19
    %s22 = sphi 0, %s20
    %s23 = sphi 0, %s21
    %s24 = sphi 0, %s22
    %s36 = sphi 0, %s38
    %s39 = sphi 0, %s36
    %s40 = sphi 0, %s39
    %s56 = sphi 0, %s40
    %s62 = sphi 0, %s64
    %s65 = sphi 0, %s62
    %s66 = sphi 0, %s65
    %s82 = sphi 0, %s66
    %s86 = sphi 0, %s86
    %s88 = sphi 0, %s86
    %s89 = sphi 0, %s88
    %s103 = sphi 0, %s89
    %s107 = sphi 0, %s107
    %s109 = sphi 0, %s107
    %s110 = sphi 0, %s109
    %s124 = sphi 0, %s110
    %s128 = sphi 0, %s128
    %s130 = sphi 0, %s128
    %s131 = sphi 0, %s130
    %s145 = sphi 0, %s131
    %s149 = sphi 0, %s149
    %s151 = sphi 0, %s149
    %s152 = sphi 0, %s151
    %s166 = sphi 0, %s152
    %s174 = sphi 0, %s176
    %s177 = sphi 0, %s174
    %s178 = sphi 0, %s177
    %s194 = sphi 0, %s178
  $region4: #{decoder_layer.7} parent=0 // loop_header_branch
    %15 = sbr.rel (%p13) target = $region8
  $region5: #{decoder_layer.7} parent=0 // loop_body
    %s17 = ssub.s32 %s12, 1
    %s18 = ssub.s32 %s12, 2
    %s25 = sadd.s32 1, %s20
    %p26 = scmp.ge.s32.totalorder %s25, 1
    %s27 = scalar_select %p26, 0, %s25
    %s28 = sadd.s32 1, %s19
    %s29 = scalar_select %p26, %s28, %s19
    %p30 = scmp.ge.s32.totalorder %s29, 2
    %s31 = scalar_select %p30, 0, %s29
    %s32 = ssub.s32 %s19, %s31
    %s33 = ssub.s32 %s20, %s27
    %s34 = sor.u32 %s32, %s33
    %p35 = scmp.eq.s32.totalorder %s34, 0
    %s37 = sadd.s32 %s36, 1
    %s38 = scalar_select %p35, %s36, %s37
    %p41 = pneg %p35
    %p42 = scmp.eq.s32.totalorder %s12, 1
    %p43 = por %p41, %p42
    %p44 = scmp.ne.s32.totalorder %s36, %s39
    %p45 = scmp.eq.s32.totalorder %s12, 0
    %p46 = por %p44, %p45
    %p47 = scmp.ne.s32.totalorder %s36, %s39
    %p48 = scmp.eq.s32.totalorder %s17, 1
    %p49 = por %p47, %p48
    %p50 = scmp.ne.s32.totalorder %s39, %s40
    %p51 = scmp.eq.s32.totalorder %s17, 0
    %p52 = por %p50, %p51
    %p53 = scmp.ne.s32.totalorder %s39, %s40
    %p54 = scmp.eq.s32.totalorder %s18, 1
    %p55 = por %p53, %p54
    %p57 = scmp.ne.s32.totalorder %s40, %s56
    %p58 = scmp.eq.s32.totalorder %s18, 0
    %p59 = por %p57, %p58
    %s60 = ssub.s32 %s19, %s31
    %p61 = scmp.eq.s32.totalorder %s60, 0
    %s63 = sadd.s32 %s62, 1
    %s64 = scalar_select %p61, %s62, %s63
    %p67 = pneg %p61
    %p68 = scmp.eq.s32.totalorder %s12, 1
    %p69 = por %p67, %p68
    %p70 = scmp.ne.s32.totalorder %s62, %s65
    %p71 = scmp.eq.s32.totalorder %s12, 0
    %p72 = por %p70, %p71
    %p73 = scmp.ne.s32.totalorder %s62, %s65
    %p74 = scmp.eq.s32.totalorder %s17, 1
    %p75 = por %p73, %p74
    %p76 = scmp.ne.s32.totalorder %s65, %s66
    %p77 = scmp.eq.s32.totalorder %s17, 0
    %p78 = por %p76, %p77
    %p79 = scmp.ne.s32.totalorder %s65, %s66
    %p80 = scmp.eq.s32.totalorder %s18, 1
    %p81 = por %p79, %p80
    %p83 = scmp.ne.s32.totalorder %s66, %s82
    %p84 = scmp.eq.s32.totalorder %s18, 0
    %p85 = por %p83, %p84
    %s87 = sadd.s32 %s86, 1
    %p90 = scmp.eq.s32.totalorder %s12, 1
    %p91 = scmp.ne.s32.totalorder %s86, %s88
    %p92 = scmp.eq.s32.totalorder %s12, 0
    %p93 = por %p91, %p92
    %p94 = scmp.ne.s32.totalorder %s86, %s88
    %p95 = scmp.eq.s32.totalorder %s17, 1
    %p96 = por %p94, %p95
    %p97 = scmp.ne.s32.totalorder %s88, %s89
    %p98 = scmp.eq.s32.totalorder %s17, 0
    %p99 = por %p97, %p98
    %p100 = scmp.ne.s32.totalorder %s88, %s89
    %p101 = scmp.eq.s32.totalorder %s18, 1
    %p102 = por %p100, %p101
    %p104 = scmp.ne.s32.totalorder %s89, %s103
    %p105 = scmp.eq.s32.totalorder %s18, 0
    %p106 = por %p104, %p105
    %s108 = sadd.s32 %s107, 1
    %p111 = scmp.eq.s32.totalorder %s12, 1
    %p112 = scmp.ne.s32.totalorder %s107, %s109
    %p113 = scmp.eq.s32.totalorder %s12, 0
    %p114 = por %p112, %p113
    %p115 = scmp.ne.s32.totalorder %s107, %s109
    %p116 = scmp.eq.s32.totalorder %s17, 1
    %p117 = por %p115, %p116
    %p118 = scmp.ne.s32.totalorder %s109, %s110
    %p119 = scmp.eq.s32.totalorder %s17, 0
    %p120 = por %p118, %p119
    %p121 = scmp.ne.s32.totalorder %s109, %s110
    %p122 = scmp.eq.s32.totalorder %s18, 1
    %p123 = por %p121, %p122
    %p125 = scmp.ne.s32.totalorder %s110, %s124
    %p126 = scmp.eq.s32.totalorder %s18, 0
    %p127 = por %p125, %p126
    %s129 = sadd.s32 %s128, 1
    %p132 = scmp.eq.s32.totalorder %s12, 1
    %p133 = scmp.ne.s32.totalorder %s128, %s130
    %p134 = scmp.eq.s32.totalorder %s12, 0
    %p135 = por %p133, %p134
    %p136 = scmp.ne.s32.totalorder %s128, %s130
    %p137 = scmp.eq.s32.totalorder %s17, 1
    %p138 = por %p136, %p137
    %p139 = scmp.ne.s32.totalorder %s130, %s131
    %p140 = scmp.eq.s32.totalorder %s17, 0
    %p141 = por %p139, %p140
    %p142 = scmp.ne.s32.totalorder %s130, %s131
    %p143 = scmp.eq.s32.totalorder %s18, 1
    %p144 = por %p142, %p143
    %p146 = scmp.ne.s32.totalorder %s131, %s145
    %p147 = scmp.eq.s32.totalorder %s18, 0
    %p148 = por %p146, %p147
    %s150 = sadd.s32 %s149, 1
    %p153 = scmp.eq.s32.totalorder %s12, 1
    %p154 = scmp.ne.s32.totalorder %s149, %s151
    %p155 = scmp.eq.s32.totalorder %s12, 0
    %p156 = por %p154, %p155
    %p157 = scmp.ne.s32.totalorder %s149, %s151
    %p158 = scmp.eq.s32.totalorder %s17, 1
    %p159 = por %p157, %p158
    %p160 = scmp.ne.s32.totalorder %s151, %s152
    %p161 = scmp.eq.s32.totalorder %s17, 0
    %p162 = por %p160, %p161
    %p163 = scmp.ne.s32.totalorder %s151, %s152
    %p164 = scmp.eq.s32.totalorder %s18, 1
    %p165 = por %p163, %p164
    %p167 = scmp.ne.s32.totalorder %s152, %s166
    %p168 = scmp.eq.s32.totalorder %s18, 0
    %p169 = por %p167, %p168
    %s170 = ssub.s32 %s19, %s31
    %s171 = ssub.s32 %s20, %s27
    %s172 = sor.u32 %s170, %s171
    %p173 = scmp.eq.s32.totalorder %s172, 0
    %s175 = sadd.s32 %s174, 1
    %s176 = scalar_select %p173, %s174, %s175
    %p179 = pneg %p173
    %p180 = scmp.eq.s32.totalorder %s12, 1
    %p181 = por %p179, %p180
    %p182 = scmp.ne.s32.totalorder %s174, %s177
    %p183 = scmp.eq.s32.totalorder %s12, 0
    %p184 = por %p182, %p183
    %p185 = scmp.ne.s32.totalorder %s174, %s177
    %p186 = scmp.eq.s32.totalorder %s17, 1
    %p187 = por %p185, %p186
    %p188 = scmp.ne.s32.totalorder %s177, %s178
    %p189 = scmp.eq.s32.totalorder %s17, 0
    %p190 = por %p188, %p189
    %p191 = scmp.ne.s32.totalorder %s177, %s178
    %p192 = scmp.eq.s32.totalorder %s18, 1
    %p193 = por %p191, %p192
    %p195 = scmp.ne.s32.totalorder %s178, %s194
    %p196 = scmp.eq.s32.totalorder %s18, 0
    %p197 = por %p195, %p196
    %p198 = scmp.le.s32.totalorder 1, %s12
    %p199 = scmp.lt.s32.totalorder %s12, 3
    %p200 = pnand %p198, %p199
    %p201 = pneg %p200
    // Predicated region
    $region9: #{decoder_layer.7} parent=5 // pred_check
      _
    $region10: #{decoder_layer.7} parent=5 // pred_check_branch
      %203 = sbr.rel (%p200) target = $region12
    $region11: #{decoder_layer.7} parent=5 // pred_region
      %s204 = ssub.s32 %s12, 1
      // Predicated region
      $region13: #{decoder_layer.7} parent=11 // pred_check
        %p205 = pneg %p99
      $region14: #{decoder_layer.7} parent=11 // pred_check_branch
        %207 = sbr.rel (%p205) target = $region16
      $region15: #{decoder_layer.7} parent=11 // pred_region
        _
      $region16: #{decoder_layer.7} parent=11 // pred_fallthru
        _
      // Predicated region
      $region17: #{decoder_layer.7} parent=11 // pred_check
        %p208 = pneg %p120
      $region18: #{decoder_layer.7} parent=11 // pred_check_branch
        %210 = sbr.rel (%p208) target = $region20
      $region19: #{decoder_layer.7} parent=11 // pred_region
        _
      $region20: #{decoder_layer.7} parent=11 // pred_fallthru
        _
      // Predicated region
      $region21: #{decoder_layer.7} parent=11 // pred_check
        %p211 = pneg %p141
      $region22: #{decoder_layer.7} parent=11 // pred_check_branch
        %213 = sbr.rel (%p211) target = $region24
      $region23: #{decoder_layer.7} parent=11 // pred_region
        _
      $region24: #{decoder_layer.7} parent=11 // pred_fallthru
        _
      // Predicated region
      $region25: #{decoder_layer.7} parent=11 // pred_check
        %p214 = pneg %p162
      $region26: #{decoder_layer.7} parent=11 // pred_check_branch
        %216 = sbr.rel (%p214) target = $region28
      $region27: #{decoder_layer.7} parent=11 // pred_region
        _
      $region28: #{decoder_layer.7} parent=11 // pred_fallthru
        _
    $region12: #{decoder_layer.7} parent=5 // pred_fallthru
      _
    %p217 = scmp.lt.s32.totalorder %s12, 2
    // Predicated region
    $region29: #{decoder_layer.7} parent=5 // pred_check
      %p218 = pneg %p217
    $region30: #{decoder_layer.7} parent=5 // pred_check_branch
      %220 = sbr.rel (%p218) target = $region32
    $region31: #{decoder_layer.7} parent=5 // pred_region
      // Predicated region
      $region33: #{decoder_layer.7} parent=31 // pred_check
        %p221 = pneg %p46
      $region34: #{decoder_layer.7} parent=31 // pred_check_branch
        %223 = sbr.rel (%p221) target = $region36
      $region35: #{decoder_layer.7} parent=31 // pred_region
        %p224 = scmp.lt.s32.totalorder %s19, 1
        %s225 = scalar_select %p224, %s19, 1
        %p226 = scmp.lt.s32.totalorder %s20, 0
        %s227 = scalar_select %p226, %s20, 0
        %s228 = sadd.s32 %s227, %s225
        %s229 = smul.addr %s228, 8
        %s230 = scalar_lea.vmem %s0, %s229
      $region36: #{decoder_layer.7} parent=31 // pred_fallthru
        _
      // Predicated region
      $region37: #{decoder_layer.7} parent=31 // pred_check
        %p231 = pneg %p72
      $region38: #{decoder_layer.7} parent=31 // pred_check_branch
        %233 = sbr.rel (%p231) target = $region40
      $region39: #{decoder_layer.7} parent=31 // pred_region
        %p234 = scmp.lt.s32.totalorder %s19, 1
        %s235 = scalar_select %p234, %s19, 1
        %s236 = smul.addr %s235, 8
        %s237 = scalar_lea.vmem %s1, %s236
      $region40: #{decoder_layer.7} parent=31 // pred_fallthru
        _
    $region32: #{decoder_layer.7} parent=5 // pred_fallthru
      _
    %p238 = scmp.le.s32.totalorder 1, %s12
    %p239 = scmp.lt.s32.totalorder %s12, 3
    %p240 = pnand %p238, %p239
    %p241 = pneg %p240
    // Predicated region
    $region41: #{decoder_layer.7} parent=5 // pred_check
      _
    $region42: #{decoder_layer.7} parent=5 // pred_check_branch
      %243 = sbr.rel (%p240) target = $region44
    $region43: #{decoder_layer.7} parent=5 // pred_region
      %s244 = ssub.s32 %s12, 1
      %p245 = scmp.lt.s32.totalorder %s21, 1
      %s246 = scalar_select %p245, %s21, 1
      %p247 = scmp.lt.s32.totalorder %s22, 0
      %s248 = scalar_select %p247, %s22, 0
      %s249 = sadd.s32 %s248, %s246
      %s250 = smul.addr %s249, 8
      %s251 = scalar_lea.vmem %s0, %s250
      %p252 = pneg %p52
      %p253 = pneg %p49
      %p254 = scmp.lt.s32.totalorder %s21, 1
      %s255 = scalar_select %p254, %s21, 1
      %s256 = smul.addr %s255, 8
      %s257 = scalar_lea.vmem %s1, %s256
      %p258 = pneg %p78
      %p259 = pneg %p75
      %p260 = pneg %p99
      %p261 = pneg %p96
      %p262 = pneg %p120
      %p263 = pneg %p117
      %p264 = pneg %p141
      %p265 = pneg %p138
      %p266 = pneg %p162
      %p267 = pneg %p159
      %p268 = pneg %p190
      %p269 = pneg %p187
      %p270 = scmp.lt.s32.totalorder %s21, 1
      %s271 = scalar_select %p270, %s21, 1
      %p272 = scmp.lt.s32.totalorder %s22, 0
      %s273 = scalar_select %p272, %s22, 0
      %s274 = sadd.s32 %s273, %s271
      %s275 = smul.addr %s274, 8
      %s276 = scalar_lea.vmem %s6, %s275
      %p277 = scmp.lt.s32.totalorder %s21, 1
      %s278 = scalar_select %p277, %s21, 1
      %p279 = scmp.lt.s32.totalorder %s22, 0
      %s280 = scalar_select %p279, %s22, 0
      %s281 = sadd.s32 %s280, %s278
      %s282 = smul.addr %s281, 8
      %s283 = scalar_lea.vmem %s0, %s282
      %p284 = scmp.lt.s32.totalorder %s21, 1
      %s285 = scalar_select %p284, %s21, 1
      %s286 = smul.addr %s285, 8
      %s287 = scalar_lea.vmem %s1, %s286
      %p288 = scmp.lt.s32.totalorder %s21, 1
      %s289 = scalar_select %p288, %s21, 1
      %p290 = scmp.lt.s32.totalorder %s22, 0
      %s291 = scalar_select %p290, %s22, 0
      %s292 = sadd.s32 %s291, %s289
      %s293 = smul.addr %s292, 8
      %s294 = scalar_lea.vmem %s6, %s293
      %v296 = vld [vmem:[%s283] sm:$0xff]
      %v297 = vpack.c.bf16 %v296, %v296
      %v298 = vld [vmem:[%s287] sm:$0xff]
      %v299 = vpack.c.bf16 %v298, %v298
      %v300 = vld [vmem:[%s2] sm:$0xf]
      %v301 = vld [vmem:[%s2 + $0x4] sm:$0xf]
      %v302 = vld [vmem:[%s2 + $0x8] sm:$0xf]
      %v303 = vld [vmem:[%s2 + $0xc] sm:$0xf]
      %v304 = vld [vmem:[%s2 + $0x10] sm:$0xf]
      %v305 = vld [vmem:[%s2 + $0x14] sm:$0xf]
      %v306 = vld [vmem:[%s2 + $0x18] sm:$0xf]
      %v307 = vld [vmem:[%s2 + $0x1c] sm:$0xf]
      %v308 = vld [vmem:[%s2 + $0x20] sm:$0xf]
      %v309 = vld [vmem:[%s2 + $0x24] sm:$0xf]
      %v310 = vld [vmem:[%s2 + $0x28] sm:$0xf]
      %v311 = vld [vmem:[%s2 + $0x2c] sm:$0xf]
      %v312 = vld [vmem:[%s2 + $0x30] sm:$0xf]
      %v313 = vld [vmem:[%s2 + $0x34] sm:$0xf]
      %v314 = vld [vmem:[%s2 + $0x38] sm:$0xf]
      %v315 = vld [vmem:[%s2 + $0x3c] sm:$0xf]
      %v316 = vld [vmem:[%s3] sm:$0x1]
      %v318 = vlaneseq
      %v319 = vshrl.u32 %v318, 7
      %v320 = vsub.s32 0, %v319
      %v321 = vrot.slane %v316, %v320
      %v339 = vunpack.c.l.b16 %v300
      %v340 = vunpack.c.l.b16 %v301
      %v341 = vunpack.c.l.b16 %v302
      %v342 = vunpack.c.l.b16 %v303
      %v343 = vunpack.c.l.b16 %v304
      %v344 = vunpack.c.l.b16 %v305
      %v345 = vunpack.c.l.b16 %v306
      %v346 = vunpack.c.l.b16 %v307
      %v347 = vunpack.c.l.b16 %v308
      %v348 = vunpack.c.l.b16 %v309
      %v349 = vunpack.c.l.b16 %v310
      %v350 = vunpack.c.l.b16 %v311
      %v351 = vunpack.c.l.b16 %v312
      %v352 = vunpack.c.l.b16 %v313
      %v353 = vunpack.c.l.b16 %v314
      %v354 = vunpack.c.l.b16 %v315
      %v355 = vpack.c.b16 %v340, %v339
      %v356 = vpack.c.b16 %v342, %v341
      %v357 = vpack.c.b16 %v344, %v343
      %v358 = vpack.c.b16 %v346, %v345
      %v359 = vpack.c.b16 %v348, %v347
      %v360 = vpack.c.b16 %v350, %v349
      %v361 = vpack.c.b16 %v352, %v351
      %v362 = vpack.c.b16 %v354, %v353
      %371 = vmatprep.subr.bf16.mxu0 0
      %372 = vmatpush1.bf16.msra.mxu0 %v355
      %373 = vmatprep.subr.bf16.mxu0 0
      %374 = vmatpush1.bf16.msra.mxu0 %v356
      %375 = vmatprep.subr.bf16.mxu0 0
      %376 = vmatpush1.bf16.msra.mxu0 %v357
      %377 = vmatprep.subr.bf16.mxu0 0
      %378 = vmatpush1.bf16.msra.mxu0 %v358
      %379 = vmatprep.subr.bf16.mxu0 0
      %380 = vmatpush1.bf16.msra.mxu0 %v359
      %381 = vmatprep.subr.bf16.mxu0 0
      %382 = vmatpush1.bf16.msra.mxu0 %v360
      %383 = vmatprep.subr.bf16.mxu0 0
      %384 = vmatpush1.bf16.msra.mxu0 %v361
      %385 = vmatprep.subr.bf16.mxu0 0
      %386 = vmatpush1.bf16.msra.mxu0 %v362
      %387 = vmatprep.subr.bf16.mxu0 0
      %388 = vmatpush1.bf16.msra.mxu0 0
      %389 = vmatprep.subr.bf16.mxu0 0
      %390 = vmatpush1.bf16.msra.mxu0 0
      %391 = vmatprep.subr.bf16.mxu0 0
      %392 = vmatpush1.bf16.msra.mxu0 0
      %393 = vmatprep.subr.bf16.mxu0 0
      %394 = vmatpush1.bf16.msra.mxu0 0
      %395 = vmatprep.subr.bf16.mxu0 0
      %396 = vmatpush1.bf16.msra.mxu0 0
      %397 = vmatprep.subr.bf16.mxu0 0
      %398 = vmatpush1.bf16.msra.mxu0 0
      %399 = vmatprep.subr.bf16.mxu0 0
      %400 = vmatpush1.bf16.msra.mxu0 0
      %401 = vmatprep.subr.bf16.mxu0 0
      %402 = vmatpush1.bf16.msra.mxu0 0
      %403 = vmatprep.mubr.bf16.mxu0 0
      %404 = vmatmul.mubr.bf16.gmra.mrb[0].mxu0 %v297
      %v405 = vpop.f32.mrb[0].mxu0
      %v406 = vadd.f32 %v321, %v405
      %v407 = vpop.f32.mrb[0].mxu0
      %v408 = vpop.f32.mrb[0].mxu0
      %v409 = vpop.f32.mrb[0].mxu0
      %410 = vdwg.mxu0
      %v411 = vld [vmem:[%s4] sm:$0xff]
      %v412 = vld [vmem:[%s4 + $0x8] sm:$0xff]
      %v413 = vld [vmem:[%s4 + $0x10] sm:$0xff]
      %v414 = vld [vmem:[%s4 + $0x18] sm:$0xff]
      %v415 = vld [vmem:[%s4 + $0x20] sm:$0xff]
      %v416 = vld [vmem:[%s4 + $0x28] sm:$0xff]
      %v417 = vld [vmem:[%s4 + $0x30] sm:$0xff]
      %v418 = vld [vmem:[%s4 + $0x38] sm:$0xff]
      %v419 = vld [vmem:[%s4 + $0x40] sm:$0xff]
      %v420 = vld [vmem:[%s4 + $0x48] sm:$0xff]
      %v421 = vld [vmem:[%s4 + $0x50] sm:$0xff]
      %v422 = vld [vmem:[%s4 + $0x58] sm:$0xff]
      %v423 = vld [vmem:[%s4 + $0x60] sm:$0xff]
      %v424 = vld [vmem:[%s4 + $0x68] sm:$0xff]
      %v425 = vld [vmem:[%s4 + $0x70] sm:$0xff]
      %v426 = vld [vmem:[%s4 + $0x78] sm:$0xff]
      %v427 = vld [vmem:[%s5] sm:$0x3]
      %v429 = vlaneseq
      %v430 = vshrl.u32 %v429, 7
      %v431 = vsub.s32 0, %v430
      %v432 = vrot.slane %v427, %v431
      %v433 = vlaneseq
      %v434 = vshrl.u32 %v433, 7
      %v435 = vsub.s32 1, %v434
      %v436 = vrot.slane %v427, %v435
      %v455 = vunpack.c.l.b16 %v411
      %v456 = vunpack.c.h.b16 %v411
      %v457 = vunpack.c.l.b16 %v412
      %v458 = vunpack.c.h.b16 %v412
      %v459 = vunpack.c.l.b16 %v413
      %v460 = vunpack.c.h.b16 %v413
      %v461 = vunpack.c.l.b16 %v414
      %v462 = vunpack.c.h.b16 %v414
      %v463 = vunpack.c.l.b16 %v415
      %v464 = vunpack.c.h.b16 %v415
      %v465 = vunpack.c.l.b16 %v416
      %v466 = vunpack.c.h.b16 %v416
      %v467 = vunpack.c.l.b16 %v417
      %v468 = vunpack.c.h.b16 %v417
      %v469 = vunpack.c.l.b16 %v418
      %v470 = vunpack.c.h.b16 %v418
      %v471 = vunpack.c.l.b16 %v419
      %v472 = vunpack.c.h.b16 %v419
      %v473 = vunpack.c.l.b16 %v420
      %v474 = vunpack.c.h.b16 %v420
      %v475 = vunpack.c.l.b16 %v421
      %v476 = vunpack.c.h.b16 %v421
      %v477 = vunpack.c.l.b16 %v422
      %v478 = vunpack.c.h.b16 %v422
      %v479 = vunpack.c.l.b16 %v423
      %v480 = vunpack.c.h.b16 %v423
      %v481 = vunpack.c.l.b16 %v424
      %v482 = vunpack.c.h.b16 %v424
      %v483 = vunpack.c.l.b16 %v425
      %v484 = vunpack.c.h.b16 %v425
      %v485 = vunpack.c.l.b16 %v426
      %v486 = vunpack.c.h.b16 %v426
      %v487 = vpack.c.b16 %v457, %v455
      %v488 = vpack.c.b16 %v458, %v456
      %v489 = vpack.c.b16 %v461, %v459
      %v490 = vpack.c.b16 %v462, %v460
      %v491 = vpack.c.b16 %v465, %v463
      %v492 = vpack.c.b16 %v466, %v464
      %v493 = vpack.c.b16 %v469, %v467
      %v494 = vpack.c.b16 %v470, %v468
      %v495 = vpack.c.b16 %v473, %v471
      %v496 = vpack.c.b16 %v474, %v472
      %v497 = vpack.c.b16 %v477, %v475
      %v498 = vpack.c.b16 %v478, %v476
      %v499 = vpack.c.b16 %v481, %v479
      %v500 = vpack.c.b16 %v482, %v480
      %v501 = vpack.c.b16 %v485, %v483
      %v502 = vpack.c.b16 %v486, %v484
      %519 = vmatprep.subr.bf16.mxu0 %v488
      %520 = vmatpush1.bf16.msra.mxu0 %v487
      %521 = vmatprep.subr.bf16.mxu0 %v490
      %522 = vmatpush1.bf16.msra.mxu0 %v489
      %523 = vmatprep.subr.bf16.mxu0 %v492
      %524 = vmatpush1.bf16.msra.mxu0 %v491
      %525 = vmatprep.subr.bf16.mxu0 %v494
      %526 = vmatpush1.bf16.msra.mxu0 %v493
      %527 = vmatprep.subr.bf16.mxu0 %v496
      %528 = vmatpush1.bf16.msra.mxu0 %v495
      %529 = vmatprep.subr.bf16.mxu0 %v498
      %530 = vmatpush1.bf16.msra.mxu0 %v497
      %531 = vmatprep.subr.bf16.mxu0 %v500
      %532 = vmatpush1.bf16.msra.mxu0 %v499
      %533 = vmatprep.subr.bf16.mxu0 %v502
      %534 = vmatpush1.bf16.msra.mxu0 %v501
      %535 = vmatprep.subr.bf16.mxu0 0
      %536 = vmatpush1.bf16.msra.mxu0 0
      %537 = vmatprep.subr.bf16.mxu0 0
      %538 = vmatpush1.bf16.msra.mxu0 0
      %539 = vmatprep.subr.bf16.mxu0 0
      %540 = vmatpush1.bf16.msra.mxu0 0
      %541 = vmatprep.subr.bf16.mxu0 0
      %542 = vmatpush1.bf16.msra.mxu0 0
      %543 = vmatprep.subr.bf16.mxu0 0
      %544 = vmatpush1.bf16.msra.mxu0 0
      %545 = vmatprep.subr.bf16.mxu0 0
      %546 = vmatpush1.bf16.msra.mxu0 0
      %547 = vmatprep.subr.bf16.mxu0 0
      %548 = vmatpush1.bf16.msra.mxu0 0
      %549 = vmatprep.subr.bf16.mxu0 0
      %550 = vmatpush1.bf16.msra.mxu0 0
      %551 = vmatprep.mubr.bf16.mxu0 0
      %552 = vmatmul.mubr.bf16.gmra.mrb[0].mxu0 %v299
      %v553 = vpop.f32.mrb[0].mxu0
      %v554 = vadd.f32 %v432, %v553
      %v555 = vpop.f32.mrb[0].mxu0
      %v556 = vadd.f32 %v436, %v555
      %v557 = vpop.f32.mrb[0].mxu0
      %v558 = vpop.f32.mrb[0].mxu0
      %559 = vdwg.mxu0
      %v560 = vmul.f32 %v406, 0.17677669
      %v561 = vpack.c.bf16 %v560, %v560
      %563 = vrot.lane.b32.xlu0 %v561, 96
      %v564 = vpop.permute.xlu0 %563
      %565 = vrot.lane.b32.xlu0 %v561, 64
      %v566 = vpop.permute.xlu0 %565
      %567 = vrot.lane.b32.xlu0 %v561, 32
      %v568 = vpop.permute.xlu0 %567
      %v569 = vpack.c.bf16 %v554, %v554
      %571 = vrot.lane.b32.xlu0 %v569, 96
      %v572 = vpop.permute.xlu0 %571
      %574 = vrot.lane.b32.xlu0 %v569, 64
      %v575 = vpop.permute.xlu0 %574
      %577 = vrot.lane.b32.xlu0 %v569, 32
      %v578 = vpop.permute.xlu0 %577
      %v580 = vpack.c.bf16 %v556, %v556
      %582 = vrot.lane.b32.xlu0 %v580, 96
      %v583 = vpop.permute.xlu0 %582
      %585 = vrot.lane.b32.xlu0 %v580, 64
      %v586 = vpop.permute.xlu0 %585
      %588 = vrot.lane.b32.xlu0 %v580, 32
      %v589 = vpop.permute.xlu0 %588
      %591 = vxpose.xlu0.c.b16.start [1/8] %v569, 128
      %592 = vxpose.xlu0.c.b16.cont [2/8] 0, 128
      %593 = vxpose.xlu0.c.b16.cont [3/8] 0, 128
      %594 = vxpose.xlu0.c.b16.cont [4/8] 0, 128
      %595 = vxpose.xlu0.c.b16.cont [5/8] 0, 128
      %596 = vxpose.xlu0.c.b16.cont [6/8] 0, 128
      %597 = vxpose.xlu0.c.b16.cont [7/8] 0, 128
      %598 = vxpose.xlu0.c.b16.end [8/8] 0, 128
      %v599 = vpop.trf.xlu0
      %v600 = vpop.trf.xlu0
      %v601 = vpop.trf.xlu0
      %v602 = vpop.trf.xlu0
      %v603 = vpop.trf.xlu0
      %v604 = vpop.trf.xlu0
      %v605 = vpop.trf.xlu0
      %v606 = vpop.trf.xlu0
      %607 = vxpose.xlu0.c.b16.start [1/8] %v572, 128
      %608 = vxpose.xlu0.c.b16.cont [2/8] 0, 128
      %609 = vxpose.xlu0.c.b16.cont [3/8] 0, 128
      %610 = vxpose.xlu0.c.b16.cont [4/8] 0, 128
      %611 = vxpose.xlu0.c.b16.cont [5/8] 0, 128
      %612 = vxpose.xlu0.c.b16.cont [6/8] 0, 128
      %613 = vxpose.xlu0.c.b16.cont [7/8] 0, 128
      %614 = vxpose.xlu0.c.b16.end [8/8] 0, 128
      %v615 = vpop.trf.xlu0
      %v616 = vpop.trf.xlu0
      %v617 = vpop.trf.xlu0
      %v618 = vpop.trf.xlu0
      %v619 = vpop.trf.xlu0
      %v620 = vpop.trf.xlu0
      %v621 = vpop.trf.xlu0
      %v622 = vpop.trf.xlu0
      %623 = vxpose.xlu0.c.b16.start [1/8] %v575, 128
      %624 = vxpose.xlu0.c.b16.cont [2/8] 0, 128
      %625 = vxpose.xlu0.c.b16.cont [3/8] 0, 128
      %626 = vxpose.xlu0.c.b16.cont [4/8] 0, 128
      %627 = vxpose.xlu0.c.b16.cont [5/8] 0, 128
      %628 = vxpose.xlu0.c.b16.cont [6/8] 0, 128
      %629 = vxpose.xlu0.c.b16.cont [7/8] 0, 128
      %630 = vxpose.xlu0.c.b16.end [8/8] 0, 128
      %v631 = vpop.trf.xlu0
      %v632 = vpop.trf.xlu0
      %v633 = vpop.trf.xlu0
      %v634 = vpop.trf.xlu0
      %v635 = vpop.trf.xlu0
      %v636 = vpop.trf.xlu0
      %v637 = vpop.trf.xlu0
      %v638 = vpop.trf.xlu0
      %639 = vxpose.xlu0.c.b16.start [1/8] %v578, 128
      %640 = vxpose.xlu0.c.b16.cont [2/8] 0, 128
      %641 = vxpose.xlu0.c.b16.cont [3/8] 0, 128
      %642 = vxpose.xlu0.c.b16.cont [4/8] 0, 128
      %643 = vxpose.xlu0.c.b16.cont [5/8] 0, 128
      %644 = vxpose.xlu0.c.b16.cont [6/8] 0, 128
      %645 = vxpose.xlu0.c.b16.cont [7/8] 0, 128
      %646 = vxpose.xlu0.c.b16.end [8/8] 0, 128
      %v647 = vpop.trf.xlu0
      %v648 = vpop.trf.xlu0
      %v649 = vpop.trf.xlu0
      %v650 = vpop.trf.xlu0
      %v651 = vpop.trf.xlu0
      %v652 = vpop.trf.xlu0
      %v653 = vpop.trf.xlu0
      %v654 = vpop.trf.xlu0
      %vm655 = vcmask 261120
      %v657 = vsel %vm655, %v561, 0
      %659 = vmatprep.subr.bf16.mxu0 0
      %660 = vmatpush1.bf16.msra.mxu0 %v599
      %661 = vmatprep.subr.bf16.mxu0 0
      %662 = vmatpush1.bf16.msra.mxu0 %v600
      %663 = vmatprep.subr.bf16.mxu0 0
      %664 = vmatpush1.bf16.msra.mxu0 0
      %665 = vmatprep.subr.bf16.mxu0 0
      %666 = vmatpush1.bf16.msra.mxu0 0
      %667 = vmatprep.subr.bf16.mxu0 0
      %668 = vmatpush1.bf16.msra.mxu0 0
      %669 = vmatprep.subr.bf16.mxu0 0
      %670 = vmatpush1.bf16.msra.mxu0 0
      %671 = vmatprep.subr.bf16.mxu0 0
      %672 = vmatpush1.bf16.msra.mxu0 0
      %673 = vmatprep.subr.bf16.mxu0 0
      %674 = vmatpush1.bf16.msra.mxu0 0
      %675 = vmatprep.subr.bf16.mxu0 0
      %676 = vmatpush1.bf16.msra.mxu0 0
      %677 = vmatprep.subr.bf16.mxu0 0
      %678 = vmatpush1.bf16.msra.mxu0 0
      %679 = vmatprep.subr.bf16.mxu0 0
      %680 = vmatpush1.bf16.msra.mxu0 0
      %681 = vmatprep.subr.bf16.mxu0 0
      %682 = vmatpush1.bf16.msra.mxu0 0
      %683 = vmatprep.subr.bf16.mxu0 0
      %684 = vmatpush1.bf16.msra.mxu0 0
      %685 = vmatprep.subr.bf16.mxu0 0
      %686 = vmatpush1.bf16.msra.mxu0 0
      %687 = vmatprep.subr.bf16.mxu0 0
      %688 = vmatpush1.bf16.msra.mxu0 0
      %689 = vmatprep.subr.bf16.mxu0 0
      %690 = vmatpush1.bf16.msra.mxu0 0
      %691 = vmatprep.mubr.bf16.mxu0 0
      %692 = vmatmul.mubr.bf16.gmra.mrb[0].mxu0 %v657
      %v693 = vpop.f32.mrb[0].mxu0
      %v694 = vadd.f32 0.0, %v693
      %v695 = vpop.f32.mrb[0].mxu0
      %v696 = vpop.f32.mrb[0].mxu0
      %v697 = vpop.f32.mrb[0].mxu0
      %698 = vdwg.mxu0
      %v700 = vsel %vm655, %v564, 0
      %702 = vmatprep.subr.bf16.mxu0 0
      %703 = vmatpush1.bf16.msra.mxu0 %v615
      %704 = vmatprep.subr.bf16.mxu0 0
      %705 = vmatpush1.bf16.msra.mxu0 %v616
      %706 = vmatprep.subr.bf16.mxu0 0
      %707 = vmatpush1.bf16.msra.mxu0 0
      %708 = vmatprep.subr.bf16.mxu0 0
      %709 = vmatpush1.bf16.msra.mxu0 0
      %710 = vmatprep.subr.bf16.mxu0 0
      %711 = vmatpush1.bf16.msra.mxu0 0
      %712 = vmatprep.subr.bf16.mxu0 0
      %713 = vmatpush1.bf16.msra.mxu0 0
      %714 = vmatprep.subr.bf16.mxu0 0
      %715 = vmatpush1.bf16.msra.mxu0 0
      %716 = vmatprep.subr.bf16.mxu0 0
      %717 = vmatpush1.bf16.msra.mxu0 0
      %718 = vmatprep.subr.bf16.mxu0 0
      %719 = vmatpush1.bf16.msra.mxu0 0
      %720 = vmatprep.subr.bf16.mxu0 0
      %721 = vmatpush1.bf16.msra.mxu0 0
      %722 = vmatprep.subr.bf16.mxu0 0
      %723 = vmatpush1.bf16.msra.mxu0 0
      %724 = vmatprep.subr.bf16.mxu0 0
      %725 = vmatpush1.bf16.msra.mxu0 0
      %726 = vmatprep.subr.bf16.mxu0 0
      %727 = vmatpush1.bf16.msra.mxu0 0
      %728 = vmatprep.subr.bf16.mxu0 0
      %729 = vmatpush1.bf16.msra.mxu0 0
      %730 = vmatprep.subr.bf16.mxu0 0
      %731 = vmatpush1.bf16.msra.mxu0 0
      %732 = vmatprep.subr.bf16.mxu0 0
      %733 = vmatpush1.bf16.msra.mxu0 0
      %734 = vmatprep.mubr.bf16.mxu0 0
      %735 = vmatmul.mubr.bf16.gmra.mrb[0].mxu0 %v700
      %v736 = vpop.f32.mrb[0].mxu0
      %v737 = vadd.f32 0.0, %v736
      %v738 = vpop.f32.mrb[0].mxu0
      %v739 = vpop.f32.mrb[0].mxu0
      %v740 = vpop.f32.mrb[0].mxu0
      %741 = vdwg.mxu0
      %v743 = vsel %vm655, %v566, 0
      %745 = vmatprep.subr.bf16.mxu0 0
      %746 = vmatpush1.bf16.msra.mxu0 %v631
      %747 = vmatprep.subr.bf16.mxu0 0
      %748 = vmatpush1.bf16.msra.mxu0 %v632
      %749 = vmatprep.subr.bf16.mxu0 0
      %750 = vmatpush1.bf16.msra.mxu0 0
      %751 = vmatprep.subr.bf16.mxu0 0
      %752 = vmatpush1.bf16.msra.mxu0 0
      %753 = vmatprep.subr.bf16.mxu0 0
      %754 = vmatpush1.bf16.msra.mxu0 0
      %755 = vmatprep.subr.bf16.mxu0 0
      %756 = vmatpush1.bf16.msra.mxu0 0
      %757 = vmatprep.subr.bf16.mxu0 0
      %758 = vmatpush1.bf16.msra.mxu0 0
      %759 = vmatprep.subr.bf16.mxu0 0
      %760 = vmatpush1.bf16.msra.mxu0 0
      %761 = vmatprep.subr.bf16.mxu0 0
      %762 = vmatpush1.bf16.msra.mxu0 0
      %763 = vmatprep.subr.bf16.mxu0 0
      %764 = vmatpush1.bf16.msra.mxu0 0
      %765 = vmatprep.subr.bf16.mxu0 0
      %766 = vmatpush1.bf16.msra.mxu0 0
      %767 = vmatprep.subr.bf16.mxu0 0
      %768 = vmatpush1.bf16.msra.mxu0 0
      %769 = vmatprep.subr.bf16.mxu0 0
      %770 = vmatpush1.bf16.msra.mxu0 0
      %771 = vmatprep.subr.bf16.mxu0 0
      %772 = vmatpush1.bf16.msra.mxu0 0
      %773 = vmatprep.subr.bf16.mxu0 0
      %774 = vmatpush1.bf16.msra.mxu0 0
      %775 = vmatprep.subr.bf16.mxu0 0
      %776 = vmatpush1.bf16.msra.mxu0 0
      %777 = vmatprep.mubr.bf16.mxu0 0
      %778 = vmatmul.mubr.bf16.gmra.mrb[0].mxu0 %v743
      %v779 = vpop.f32.mrb[0].mxu0
      %v780 = vadd.f32 0.0, %v779
      %v781 = vpop.f32.mrb[0].mxu0
      %v782 = vpop.f32.mrb[0].mxu0
      %v783 = vpop.f32.mrb[0].mxu0
      %784 = vdwg.mxu0
      %v786 = vsel %vm655, %v568, 0
      %788 = vmatprep.subr.bf16.mxu0 0
      %789 = vmatpush1.bf16.msra.mxu0 %v647
      %790 = vmatprep.subr.bf16.mxu0 0
      %791 = vmatpush1.bf16.msra.mxu0 %v648
      %792 = vmatprep.subr.bf16.mxu0 0
      %793 = vmatpush1.bf16.msra.mxu0 0
      %794 = vmatprep.subr.bf16.mxu0 0
      %795 = vmatpush1.bf16.msra.mxu0 0
      %796 = vmatprep.subr.bf16.mxu0 0
      %797 = vmatpush1.bf16.msra.mxu0 0
      %798 = vmatprep.subr.bf16.mxu0 0
      %799 = vmatpush1.bf16.msra.mxu0 0
      %800 = vmatprep.subr.bf16.mxu0 0
      %801 = vmatpush1.bf16.msra.mxu0 0
      %802 = vmatprep.subr.bf16.mxu0 0
      %803 = vmatpush1.bf16.msra.mxu0 0
      %804 = vmatprep.subr.bf16.mxu0 0
      %805 = vmatpush1.bf16.msra.mxu0 0
      %806 = vmatprep.subr.bf16.mxu0 0
      %807 = vmatpush1.bf16.msra.mxu0 0
      %808 = vmatprep.subr.bf16.mxu0 0
      %809 = vmatpush1.bf16.msra.mxu0 0
      %810 = vmatprep.subr.bf16.mxu0 0
      %811 = vmatpush1.bf16.msra.mxu0 0
      %812 = vmatprep.subr.bf16.mxu0 0
      %813 = vmatpush1.bf16.msra.mxu0 0
      %814 = vmatprep.subr.bf16.mxu0 0
      %815 = vmatpush1.bf16.msra.mxu0 0
      %816 = vmatprep.subr.bf16.mxu0 0
      %817 = vmatpush1.bf16.msra.mxu0 0
      %818 = vmatprep.subr.bf16.mxu0 0
      %819 = vmatpush1.bf16.msra.mxu0 0
      %820 = vmatprep.mubr.bf16.mxu0 0
      %821 = vmatmul.mubr.bf16.gmra.mrb[0].mxu0 %v786
      %v822 = vpop.f32.mrb[0].mxu0
      %v823 = vadd.f32 0.0, %v822
      %v824 = vpop.f32.mrb[0].mxu0
      %v825 = vpop.f32.mrb[0].mxu0
      %v826 = vpop.f32.mrb[0].mxu0
      %827 = vdwg.mxu0
      %vm828 = vcmask 64512
      %v829 = vsel %vm828, %v694, -inf
      %830 = vmax.xlane.f32.xlu0 %v829
      %v831 = vpop.xlane.xlu0 %830
      %v832 = vsel %vm828, %v737, -inf
      %833 = vmax.xlane.f32.xlu0 %v832
      %v834 = vpop.xlane.xlu0 %833
      %v835 = vsel %vm828, %v780, -inf
      %836 = vmax.xlane.f32.xlu0 %v835
      %v837 = vpop.xlane.xlu0 %836
      %v838 = vsel %vm828, %v823, -inf
      %839 = vmax.xlane.f32.xlu0 %v838
      %v840 = vpop.xlane.xlu0 %839
      %v841 = vsub.f32 %v694, %v831
      %v842 = vsub.f32 %v737, %v834
      %v843 = vsub.f32 %v780, %v837
      %v844 = vsub.f32 %v823, %v840
      %v845 = vmul.f32 %v841, 1.442695
      %v846 = vpow.pop %v845
      %v847 = vmul.f32 %v842, 1.442695
      %v848 = vpow.pop %v847
      %v849 = vmul.f32 %v843, 1.442695
      %v850 = vpow.pop %v849
      %v851 = vmul.f32 %v844, 1.442695
      %v852 = vpow.pop %v851
      %v853 = vsel %vm828, %v846, 0.0
      %854 = vadd.xlane.f32.xlu0 %v853
      %v855 = vpop.xlane.xlu0 %854
      %v856 = vsel %vm828, %v848, 0.0
      %857 = vadd.xlane.f32.xlu0 %v856
      %v858 = vpop.xlane.xlu0 %857
      %v859 = vsel %vm828, %v850, 0.0
      %860 = vadd.xlane.f32.xlu0 %v859
      %v861 = vpop.xlane.xlu0 %860
      %v862 = vsel %vm828, %v852, 0.0
      %863 = vadd.xlane.f32.xlu0 %v862
      %v864 = vpop.xlane.xlu0 %863
      %v865 = vrcp.pop %v855
      %v866 = vrcp.pop %v858
      %v867 = vrcp.pop %v861
      %v868 = vrcp.pop %v864
      %v869 = vmul.f32 %v846, %v865
      %v870 = vmul.f32 %v848, %v866
      %v871 = vmul.f32 %v850, %v867
      %v872 = vmul.f32 %v852, %v868
      %v873 = vpack.c.bf16 %v869, %v869
      %v874 = vpack.c.bf16 %v870, %v870
      %v875 = vpack.c.bf16 %v871, %v871
      %v876 = vpack.c.bf16 %v872, %v872
      %877 = vxpose.xlu0.c.b16.start [1/8] %v580, 128
      %878 = vxpose.xlu0.c.b16.cont [2/8] 0, 128
      %879 = vxpose.xlu0.c.b16.cont [3/8] 0, 128
      %880 = vxpose.xlu0.c.b16.cont [4/8] 0, 128
      %881 = vxpose.xlu0.c.b16.cont [5/8] 0, 128
      %882 = vxpose.xlu0.c.b16.cont [6/8] 0, 128
      %883 = vxpose.xlu0.c.b16.cont [7/8] 0, 128
      %884 = vxpose.xlu0.c.b16.end [8/8] 0, 128
      %v885 = vpop.trf.xlu0
      %v886 = vpop.trf.xlu0
      %v887 = vpop.trf.xlu0
      %v888 = vpop.trf.xlu0
      %v889 = vpop.trf.xlu0
      %v890 = vpop.trf.xlu0
      %v891 = vpop.trf.xlu0
      %v892 = vpop.trf.xlu0
      %893 = vxpose.xlu0.c.b16.start [1/8] %v583, 128
      %894 = vxpose.xlu0.c.b16.cont [2/8] 0, 128
      %895 = vxpose.xlu0.c.b16.cont [3/8] 0, 128
      %896 = vxpose.xlu0.c.b16.cont [4/8] 0, 128
      %897 = vxpose.xlu0.c.b16.cont [5/8] 0, 128
      %898 = vxpose.xlu0.c.b16.cont [6/8] 0, 128
      %899 = vxpose.xlu0.c.b16.cont [7/8] 0, 128
      %900 = vxpose.xlu0.c.b16.end [8/8] 0, 128
      %v901 = vpop.trf.xlu0
      %v902 = vpop.trf.xlu0
      %v903 = vpop.trf.xlu0
      %v904 = vpop.trf.xlu0
      %v905 = vpop.trf.xlu0
      %v906 = vpop.trf.xlu0
      %v907 = vpop.trf.xlu0
      %v908 = vpop.trf.xlu0
      %909 = vxpose.xlu0.c.b16.start [1/8] %v586, 128
      %910 = vxpose.xlu0.c.b16.cont [2/8] 0, 128
      %911 = vxpose.xlu0.c.b16.cont [3/8] 0, 128
      %912 = vxpose.xlu0.c.b16.cont [4/8] 0, 128
      %913 = vxpose.xlu0.c.b16.cont [5/8] 0, 128
      %914 = vxpose.xlu0.c.b16.cont [6/8] 0, 128
      %915 = vxpose.xlu0.c.b16.cont [7/8] 0, 128
      %916 = vxpose.xlu0.c.b16.end [8/8] 0, 128
      %v917 = vpop.trf.xlu0
      %v918 = vpop.trf.xlu0
      %v919 = vpop.trf.xlu0
      %v920 = vpop.trf.xlu0
      %v921 = vpop.trf.xlu0
      %v922 = vpop.trf.xlu0
      %v923 = vpop.trf.xlu0
      %v924 = vpop.trf.xlu0
      %925 = vxpose.xlu0.c.b16.start [1/8] %v589, 128
      %926 = vxpose.xlu0.c.b16.cont [2/8] 0, 128
      %927 = vxpose.xlu0.c.b16.cont [3/8] 0, 128
      %928 = vxpose.xlu0.c.b16.cont [4/8] 0, 128
      %929 = vxpose.xlu0.c.b16.cont [5/8] 0, 128
      %930 = vxpose.xlu0.c.b16.cont [6/8] 0, 128
      %931 = vxpose.xlu0.c.b16.cont [7/8] 0, 128
      %932 = vxpose.xlu0.c.b16.end [8/8] 0, 128
      %v933 = vpop.trf.xlu0
      %v934 = vpop.trf.xlu0
      %v935 = vpop.trf.xlu0
      %v936 = vpop.trf.xlu0
      %v937 = vpop.trf.xlu0
      %v938 = vpop.trf.xlu0
      %v939 = vpop.trf.xlu0
      %v940 = vpop.trf.xlu0
      %v942 = vsel %vm828, %v885, 0
      %v945 = vsel %vm828, %v886, 0
      %v948 = vsel %vm828, %v873, 0
      %950 = vmatprep.subr.bf16.mxu0 0
      %951 = vmatpush1.bf16.xpose.msra.mxu0 %v948
      %952 = vmatprep.subr.bf16.mxu0 0
      %953 = vmatpush1.bf16.xpose.msra.mxu0 0
      %954 = vmatprep.subr.bf16.mxu0 0
      %955 = vmatpush1.bf16.xpose.msra.mxu0 0
      %956 = vmatprep.subr.bf16.mxu0 0
      %957 = vmatpush1.bf16.xpose.msra.mxu0 0
      %958 = vmatprep.subr.bf16.mxu0 0
      %959 = vmatpush1.bf16.xpose.msra.mxu0 0
      %960 = vmatprep.subr.bf16.mxu0 0
      %961 = vmatpush1.bf16.xpose.msra.mxu0 0
      %962 = vmatprep.subr.bf16.mxu0 0
      %963 = vmatpush1.bf16.xpose.msra.mxu0 0
      %964 = vmatprep.subr.bf16.mxu0 0
      %965 = vmatpush1.bf16.xpose.msra.mxu0 0
      %966 = vmatprep.subr.bf16.mxu0 0
      %967 = vmatpush1.bf16.xpose.msra.mxu0 0
      %968 = vmatprep.subr.bf16.mxu0 0
      %969 = vmatpush1.bf16.xpose.msra.mxu0 0
      %970 = vmatprep.subr.bf16.mxu0 0
      %971 = vmatpush1.bf16.xpose.msra.mxu0 0
      %972 = vmatprep.subr.bf16.mxu0 0
      %973 = vmatpush1.bf16.xpose.msra.mxu0 0
      %974 = vmatprep.subr.bf16.mxu0 0
      %975 = vmatpush1.bf16.xpose.msra.mxu0 0
      %976 = vmatprep.subr.bf16.mxu0 0
      %977 = vmatpush1.bf16.xpose.msra.mxu0 0
      %978 = vmatprep.subr.bf16.mxu0 0
      %979 = vmatpush1.bf16.xpose.msra.mxu0 0
      %980 = vmatprep.subr.bf16.mxu0 0
      %981 = vmatpush1.bf16.xpose.msra.mxu0 0
      %982 = vmatprep.mubr.bf16.mxu0 0
      %983 = vmatmul.mubr.bf16.gmra.mrb[0].mxu0 %v942
      %v984 = vpop.f32.mrb[0].mxu0
      %v985 = vadd.f32 0.0, %v984
      %v986 = vpop.f32.mrb[0].mxu0
      %v987 = vpop.f32.mrb[0].mxu0
      %v988 = vadd.f32 0.0, %v987
      %v989 = vpop.f32.mrb[0].mxu0
      %990 = vmatprep.mubr.bf16.mxu0 0
      %991 = vmatmul.mubr.bf16.gmra.mrb[0].mxu0 %v945
      %v992 = vpop.f32.mrb[0].mxu0
      %v993 = vadd.f32 0.0, %v992
      %v994 = vpop.f32.mrb[0].mxu0
      %v995 = vpop.f32.mrb[0].mxu0
      %v996 = vadd.f32 0.0, %v995
      %v997 = vpop.f32.mrb[0].mxu0
      %998 = vdwg.mxu0
      %v1000 = vsel %vm828, %v901, 0
      %v1003 = vsel %vm828, %v902, 0
      %v1006 = vsel %vm828, %v874, 0
      %1008 = vmatprep.subr.bf16.mxu0 0
      %1009 = vmatpush1.bf16.xpose.msra.mxu0 %v1006
      %1010 = vmatprep.subr.bf16.mxu0 0
      %1011 = vmatpush1.bf16.xpose.msra.mxu0 0
      %1012 = vmatprep.subr.bf16.mxu0 0
      %1013 = vmatpush1.bf16.xpose.msra.mxu0 0
      %1014 = vmatprep.subr.bf16.mxu0 0
      %1015 = vmatpush1.bf16.xpose.msra.mxu0 0
      %1016 = vmatprep.subr.bf16.mxu0 0
      %1017 = vmatpush1.bf16.xpose.msra.mxu0 0
      %1018 = vmatprep.subr.bf16.mxu0 0
      %1019 = vmatpush1.bf16.xpose.msra.mxu0 0
      %1020 = vmatprep.subr.bf16.mxu0 0
      %1021 = vmatpush1.bf16.xpose.msra.mxu0 0
      %1022 = vmatprep.subr.bf16.mxu0 0
      %1023 = vmatpush1.bf16.xpose.msra.mxu0 0
      %1024 = vmatprep.subr.bf16.mxu0 0
      %1025 = vmatpush1.bf16.xpose.msra.mxu0 0
      %1026 = vmatprep.subr.bf16.mxu0 0
      %1027 = vmatpush1.bf16.xpose.msra.mxu0 0
      %1028 = vmatprep.subr.bf16.mxu0 0
      %1029 = vmatpush1.bf16.xpose.msra.mxu0 0
      %1030 = vmatprep.subr.bf16.mxu0 0
      %1031 = vmatpush1.bf16.xpose.msra.mxu0 0
      %1032 = vmatprep.subr.bf16.mxu0 0
      %1033 = vmatpush1.bf16.xpose.msra.mxu0 0
      %1034 = vmatprep.subr.bf16.mxu0 0
      %1035 = vmatpush1.bf16.xpose.msra.mxu0 0
      %1036 = vmatprep.subr.bf16.mxu0 0
      %1037 = vmatpush1.bf16.xpose.msra.mxu0 0
      %1038 = vmatprep.subr.bf16.mxu0 0
      %1039 = vmatpush1.bf16.xpose.msra.mxu0 0
      %1040 = vmatprep.mubr.bf16.mxu0 0
      %1041 = vmatmul.mubr.bf16.gmra.mrb[0].mxu0 %v1000
      %v1042 = vpop.f32.mrb[0].mxu0
      %v1043 = vadd.f32 0.0, %v1042
      %v1044 = vpop.f32.mrb[0].mxu0
      %v1045 = vpop.f32.mrb[0].mxu0
      %v1046 = vadd.f32 0.0, %v1045
      %v1047 = vpop.f32.mrb[0].mxu0
      %1048 = vmatprep.mubr.bf16.mxu0 0
      %1049 = vmatmul.mubr.bf16.gmra.mrb[0].mxu0 %v1003
      %v1050 = vpop.f32.mrb[0].mxu0
      %v1051 = vadd.f32 0.0, %v1050
      %v1052 = vpop.f32.mrb[0].mxu0
      %v1053 = vpop.f32.mrb[0].mxu0
      %v1054 = vadd.f32 0.0, %v1053
      %v1055 = vpop.f32.mrb[0].mxu0
      %1056 = vdwg.mxu0
      %v1058 = vsel %vm828, %v917, 0
      %v1061 = vsel %vm828, %v918, 0
      %v1064 = vsel %vm828, %v875, 0
      %1066 = vmatprep.subr.bf16.mxu0 0
      %1067 = vmatpush1.bf16.xpose.msra.mxu0 %v1064
      %1068 = vmatprep.subr.bf16.mxu0 0
      %1069 = vmatpush1.bf16.xpose.msra.mxu0 0
      %1070 = vmatprep.subr.bf16.mxu0 0
      %1071 = vmatpush1.bf16.xpose.msra.mxu0 0
      %1072 = vmatprep.subr.bf16.mxu0 0
      %1073 = vmatpush1.bf16.xpose.msra.mxu0 0
      %1074 = vmatprep.subr.bf16.mxu0 0
      %1075 = vmatpush1.bf16.xpose.msra.mxu0 0
      %1076 = vmatprep.subr.bf16.mxu0 0
      %1077 = vmatpush1.bf16.xpose.msra.mxu0 0
      %1078 = vmatprep.subr.bf16.mxu0 0
      %1079 = vmatpush1.bf16.xpose.msra.mxu0 0
      %1080 = vmatprep.subr.bf16.mxu0 0
      %1081 = vmatpush1.bf16.xpose.msra.mxu0 0
      %1082 = vmatprep.subr.bf16.mxu0 0
      %1083 = vmatpush1.bf16.xpose.msra.mxu0 0
      %1084 = vmatprep.subr.bf16.mxu0 0
      %1085 = vmatpush1.bf16.xpose.msra.mxu0 0
      %1086 = vmatprep.subr.bf16.mxu0 0
      %1087 = vmatpush1.bf16.xpose.msra.mxu0 0
      %1088 = vmatprep.subr.bf16.mxu0 0
      %1089 = vmatpush1.bf16.xpose.msra.mxu0 0
      %1090 = vmatprep.subr.bf16.mxu0 0
      %1091 = vmatpush1.bf16.xpose.msra.mxu0 0
      %1092 = vmatprep.subr.bf16.mxu0 0
      %1093 = vmatpush1.bf16.xpose.msra.mxu0 0
      %1094 = vmatprep.subr.bf16.mxu0 0
      %1095 = vmatpush1.bf16.xpose.msra.mxu0 0
      %1096 = vmatprep.subr.bf16.mxu0 0
      %1097 = vmatpush1.bf16.xpose.msra.mxu0 0
      %1098 = vmatprep.mubr.bf16.mxu0 0
      %1099 = vmatmul.mubr.bf16.gmra.mrb[0].mxu0 %v1058
      %v1100 = vpop.f32.mrb[0].mxu0
      %v1101 = vadd.f32 0.0, %v1100
      %v1102 = vpop.f32.mrb[0].mxu0
      %v1103 = vpop.f32.mrb[0].mxu0
      %v1104 = vadd.f32 0.0, %v1103
      %v1105 = vpop.f32.mrb[0].mxu0
      %1106 = vmatprep.mubr.bf16.mxu0 0
      %1107 = vmatmul.mubr.bf16.gmra.mrb[0].mxu0 %v1061
      %v1108 = vpop.f32.mrb[0].mxu0
      %v1109 = vadd.f32 0.0, %v1108
      %v1110 = vpop.f32.mrb[0].mxu0
      %v1111 = vpop.f32.mrb[0].mxu0
      %v1112 = vadd.f32 0.0, %v1111
      %v1113 = vpop.f32.mrb[0].mxu0
      %1114 = vdwg.mxu0
      %v1116 = vsel %vm828, %v933, 0
      %v1119 = vsel %vm828, %v934, 0
      %v1122 = vsel %vm828, %v876, 0
      %1124 = vmatprep.subr.bf16.mxu0 0
      %1125 = vmatpush1.bf16.xpose.msra.mxu0 %v1122
      %1126 = vmatprep.subr.bf16.mxu0 0
      %1127 = vmatpush1.bf16.xpose.msra.mxu0 0
      %1128 = vmatprep.subr.bf16.mxu0 0
      %1129 = vmatpush1.bf16.xpose.msra.mxu0 0
      %1130 = vmatprep.subr.bf16.mxu0 0
      %1131 = vmatpush1.bf16.xpose.msra.mxu0 0
      %1132 = vmatprep.subr.bf16.mxu0 0
      %1133 = vmatpush1.bf16.xpose.msra.mxu0 0
      %1134 = vmatprep.subr.bf16.mxu0 0
      %1135 = vmatpush1.bf16.xpose.msra.mxu0 0
      %1136 = vmatprep.subr.bf16.mxu0 0
      %1137 = vmatpush1.bf16.xpose.msra.mxu0 0
      %1138 = vmatprep.subr.bf16.mxu0 0
      %1139 = vmatpush1.bf16.xpose.msra.mxu0 0
      %1140 = vmatprep.subr.bf16.mxu0 0
      %1141 = vmatpush1.bf16.xpose.msra.mxu0 0
      %1142 = vmatprep.subr.bf16.mxu0 0
      %1143 = vmatpush1.bf16.xpose.msra.mxu0 0
      %1144 = vmatprep.subr.bf16.mxu0 0
      %1145 = vmatpush1.bf16.xpose.msra.mxu0 0
      %1146 = vmatprep.subr.bf16.mxu0 0
      %1147 = vmatpush1.bf16.xpose.msra.mxu0 0
      %1148 = vmatprep.subr.bf16.mxu0 0
      %1149 = vmatpush1.bf16.xpose.msra.mxu0 0
      %1150 = vmatprep.subr.bf16.mxu0 0
      %1151 = vmatpush1.bf16.xpose.msra.mxu0 0
      %1152 = vmatprep.subr.bf16.mxu0 0
      %1153 = vmatpush1.bf16.xpose.msra.mxu0 0
      %1154 = vmatprep.subr.bf16.mxu0 0
      %1155 = vmatpush1.bf16.xpose.msra.mxu0 0
      %1156 = vmatprep.mubr.bf16.mxu0 0
      %1157 = vmatmul.mubr.bf16.gmra.mrb[0].mxu0 %v1116
      %v1158 = vpop.f32.mrb[0].mxu0
      %v1159 = vadd.f32 0.0, %v1158
      %v1160 = vpop.f32.mrb[0].mxu0
      %v1161 = vpop.f32.mrb[0].mxu0
      %v1162 = vadd.f32 0.0, %v1161
      %v1163 = vpop.f32.mrb[0].mxu0
      %1164 = vmatprep.mubr.bf16.mxu0 0
      %1165 = vmatmul.mubr.bf16.gmra.mrb[0].mxu0 %v1119
      %v1166 = vpop.f32.mrb[0].mxu0
      %v1167 = vadd.f32 0.0, %v1166
      %v1168 = vpop.f32.mrb[0].mxu0
      %v1169 = vpop.f32.mrb[0].mxu0
      %v1170 = vadd.f32 0.0, %v1169
      %v1171 = vpop.f32.mrb[0].mxu0
      %1172 = vdwg.mxu0
      %1173 = vxpose.xlu0.b32.start [1/16] %v985, 128
      %1174 = vxpose.xlu0.b32.cont [2/16] %v988, 128
      %1175 = vxpose.xlu0.b32.cont [3/16] %v993, 128
      %1176 = vxpose.xlu0.b32.cont [4/16] %v996, 128
      %1177 = vxpose.xlu0.b32.cont [5/16] 0.0, 128
      %1178 = vxpose.xlu0.b32.cont [6/16] 0.0, 128
      %1179 = vxpose.xlu0.b32.cont [7/16] 0.0, 128
      %1180 = vxpose.xlu0.b32.cont [8/16] 0.0, 128
      %1181 = vxpose.xlu0.b32.cont [9/16] 0.0, 128
      %1182 = vxpose.xlu0.b32.cont [10/16] 0.0, 128
      %1183 = vxpose.xlu0.b32.cont [11/16] 0.0, 128
      %1184 = vxpose.xlu0.b32.cont [12/16] 0.0, 128
      %1185 = vxpose.xlu0.b32.cont [13/16] 0.0, 128
      %1186 = vxpose.xlu0.b32.cont [14/16] 0.0, 128
      %1187 = vxpose.xlu0.b32.cont [15/16] 0.0, 128
      %1188 = vxpose.xlu0.b32.end [16/16] 0.0, 128
      %v1189 = vpop.trf.xlu0
      %v1190 = vpop.trf.xlu0
      %v1191 = vpop.trf.xlu0
      %v1192 = vpop.trf.xlu0
      %v1193 = vpop.trf.xlu0
      %v1194 = vpop.trf.xlu0
      %v1195 = vpop.trf.xlu0
      %v1196 = vpop.trf.xlu0
      %v1197 = vpop.trf.xlu0
      %v1198 = vpop.trf.xlu0
      %v1199 = vpop.trf.xlu0
      %v1200 = vpop.trf.xlu0
      %v1201 = vpop.trf.xlu0
      %v1202 = vpop.trf.xlu0
      %v1203 = vpop.trf.xlu0
      %v1204 = vpop.trf.xlu0
      %1205 = vxpose.xlu0.b32.start [1/16] %v1043, 128
      %1206 = vxpose.xlu0.b32.cont [2/16] %v1046, 128
      %1207 = vxpose.xlu0.b32.cont [3/16] %v1051, 128
      %1208 = vxpose.xlu0.b32.cont [4/16] %v1054, 128
      %1209 = vxpose.xlu0.b32.cont [5/16] 0.0, 128
      %1210 = vxpose.xlu0.b32.cont [6/16] 0.0, 128
      %1211 = vxpose.xlu0.b32.cont [7/16] 0.0, 128
      %1212 = vxpose.xlu0.b32.cont [8/16] 0.0, 128
      %1213 = vxpose.xlu0.b32.cont [9/16] 0.0, 128
      %1214 = vxpose.xlu0.b32.cont [10/16] 0.0, 128
      %1215 = vxpose.xlu0.b32.cont [11/16] 0.0, 128
      %1216 = vxpose.xlu0.b32.cont [12/16] 0.0, 128
      %1217 = vxpose.xlu0.b32.cont [13/16] 0.0, 128
      %1218 = vxpose.xlu0.b32.cont [14/16] 0.0, 128
      %1219 = vxpose.xlu0.b32.cont [15/16] 0.0, 128
      %1220 = vxpose.xlu0.b32.end [16/16] 0.0, 128
      %v1221 = vpop.trf.xlu0
      %v1222 = vpop.trf.xlu0
      %v1223 = vpop.trf.xlu0
      %v1224 = vpop.trf.xlu0
      %v1225 = vpop.trf.xlu0
      %v1226 = vpop.trf.xlu0
      %v1227 = vpop.trf.xlu0
      %v1228 = vpop.trf.xlu0
      %v1229 = vpop.trf.xlu0
      %v1230 = vpop.trf.xlu0
      %v1231 = vpop.trf.xlu0
      %v1232 = vpop.trf.xlu0
      %v1233 = vpop.trf.xlu0
      %v1234 = vpop.trf.xlu0
      %v1235 = vpop.trf.xlu0
      %v1236 = vpop.trf.xlu0
      %1237 = vxpose.xlu0.b32.start [1/16] %v1101, 128
      %1238 = vxpose.xlu0.b32.cont [2/16] %v1104, 128
      %1239 = vxpose.xlu0.b32.cont [3/16] %v1109, 128
      %1240 = vxpose.xlu0.b32.cont [4/16] %v1112, 128
      %1241 = vxpose.xlu0.b32.cont [5/16] 0.0, 128
      %1242 = vxpose.xlu0.b32.cont [6/16] 0.0, 128
      %1243 = vxpose.xlu0.b32.cont [7/16] 0.0, 128
      %1244 = vxpose.xlu0.b32.cont [8/16] 0.0, 128
      %1245 = vxpose.xlu0.b32.cont [9/16] 0.0, 128
      %1246 = vxpose.xlu0.b32.cont [10/16] 0.0, 128
      %1247 = vxpose.xlu0.b32.cont [11/16] 0.0, 128
      %1248 = vxpose.xlu0.b32.cont [12/16] 0.0, 128
      %1249 = vxpose.xlu0.b32.cont [13/16] 0.0, 128
      %1250 = vxpose.xlu0.b32.cont [14/16] 0.0, 128
      %1251 = vxpose.xlu0.b32.cont [15/16] 0.0, 128
      %1252 = vxpose.xlu0.b32.end [16/16] 0.0, 128
      %v1253 = vpop.trf.xlu0
      %v1254 = vpop.trf.xlu0
      %v1255 = vpop.trf.xlu0
      %v1256 = vpop.trf.xlu0
      %v1257 = vpop.trf.xlu0
      %v1258 = vpop.trf.xlu0
      %v1259 = vpop.trf.xlu0
      %v1260 = vpop.trf.xlu0
      %v1261 = vpop.trf.xlu0
      %v1262 = vpop.trf.xlu0
      %v1263 = vpop.trf.xlu0
      %v1264 = vpop.trf.xlu0
      %v1265 = vpop.trf.xlu0
      %v1266 = vpop.trf.xlu0
      %v1267 = vpop.trf.xlu0
      %v1268 = vpop.trf.xlu0
      %1269 = vxpose.xlu0.b32.start [1/16] %v1159, 128
      %1270 = vxpose.xlu0.b32.cont [2/16] %v1162, 128
      %1271 = vxpose.xlu0.b32.cont [3/16] %v1167, 128
      %1272 = vxpose.xlu0.b32.cont [4/16] %v1170, 128
      %1273 = vxpose.xlu0.b32.cont [5/16] 0.0, 128
      %1274 = vxpose.xlu0.b32.cont [6/16] 0.0, 128
      %1275 = vxpose.xlu0.b32.cont [7/16] 0.0, 128
      %1276 = vxpose.xlu0.b32.cont [8/16] 0.0, 128
      %1277 = vxpose.xlu0.b32.cont [9/16] 0.0, 128
      %1278 = vxpose.xlu0.b32.cont [10/16] 0.0, 128
      %1279 = vxpose.xlu0.b32.cont [11/16] 0.0, 128
      %1280 = vxpose.xlu0.b32.cont [12/16] 0.0, 128
      %1281 = vxpose.xlu0.b32.cont [13/16] 0.0, 128
      %1282 = vxpose.xlu0.b32.cont [14/16] 0.0, 128
      %1283 = vxpose.xlu0.b32.cont [15/16] 0.0, 128
      %1284 = vxpose.xlu0.b32.end [16/16] 0.0, 128
      %v1285 = vpop.trf.xlu0
      %v1286 = vpop.trf.xlu0
      %v1287 = vpop.trf.xlu0
      %v1288 = vpop.trf.xlu0
      %v1289 = vpop.trf.xlu0
      %v1290 = vpop.trf.xlu0
      %v1291 = vpop.trf.xlu0
      %v1292 = vpop.trf.xlu0
      %v1293 = vpop.trf.xlu0
      %v1294 = vpop.trf.xlu0
      %v1295 = vpop.trf.xlu0
      %v1296 = vpop.trf.xlu0
      %v1297 = vpop.trf.xlu0
      %v1298 = vpop.trf.xlu0
      %v1299 = vpop.trf.xlu0
      %v1300 = vpop.trf.xlu0
      %v1301 = vcombine.low %v1189, %v1253
      %v1302 = vcombine.high %v1189, %v1253
      %v1304 = vunpack.c.l.s4 1983009808
      %v1305 = vunpack.c.0.s8 %v1304
      %v1306 = vlaneseq
      %v1307 = vshrl.u32 %v1306, 7
      %v1308 = vsub.s32 %v1305, %v1307
      %v1309 = vrot.slane %v1301, %v1308
      %v1311 = vunpack.c.l.s4 1983009808
      %v1312 = vunpack.c.0.s8 %v1311
      %v1313 = vlaneseq
      %v1314 = vshrl.u32 %v1313, 7
      %v1315 = vsub.s32 %v1312, %v1314
      %v1316 = vrot.slane %v1302, %v1315
      %v1317 = vcombine.low %v1221, %v1285
      %v1318 = vcombine.high %v1221, %v1285
      %v1320 = vunpack.c.l.s4 1983009808
      %v1321 = vunpack.c.0.s8 %v1320
      %v1322 = vlaneseq
      %v1323 = vshrl.u32 %v1322, 7
      %v1324 = vsub.s32 %v1321, %v1323
      %v1325 = vrot.slane %v1317, %v1324
      %v1327 = vunpack.c.l.s4 1983009808
      %v1328 = vunpack.c.0.s8 %v1327
      %v1329 = vlaneseq
      %v1330 = vshrl.u32 %v1329, 7
      %v1331 = vsub.s32 %v1328, %v1330
      %v1332 = vrot.slane %v1318, %v1331
      %v1333 = vcombine.low %v1309, %v1325
      %v1334 = vcombine.high %v1309, %v1325
      %v1336 = vunpack.c.l.s4 1934713408
      %v1337 = vunpack.c.0.s8 %v1336
      %v1338 = vlaneseq
      %v1339 = vshrl.u32 %v1338, 7
      %v1340 = vsub.s32 %v1337, %v1339
      %v1341 = vrot.slane %v1333, %v1340
      %v1343 = vunpack.c.l.s4 1934713408
      %v1344 = vunpack.c.0.s8 %v1343
      %v1345 = vlaneseq
      %v1346 = vshrl.u32 %v1345, 7
      %v1347 = vsub.s32 %v1344, %v1346
      %v1348 = vrot.slane %v1334, %v1347
      %v1349 = vcombine.low %v1316, %v1332
      %v1350 = vcombine.high %v1316, %v1332
      %v1352 = vunpack.c.l.s4 1934713408
      %v1353 = vunpack.c.0.s8 %v1352
      %v1354 = vlaneseq
      %v1355 = vshrl.u32 %v1354, 7
      %v1356 = vsub.s32 %v1353, %v1355
      %v1357 = vrot.slane %v1349, %v1356
      %v1359 = vunpack.c.l.s4 1934713408
      %v1360 = vunpack.c.0.s8 %v1359
      %v1361 = vlaneseq
      %v1362 = vshrl.u32 %v1361, 7
      %v1363 = vsub.s32 %v1360, %v1362
      %v1364 = vrot.slane %v1350, %v1363
      %v1365 = vcombine.high %v1341, 0.0
      %v1366 = vcombine.high %v1348, 0.0
      %v1367 = vcombine.high %v1357, 0.0
      %v1368 = vcombine.high %v1364, 0.0
      %v1369 = vcombine.low %v1341, %v1348
      %v1371 = vunpack.c.l.s4 1983009808
      %v1372 = vunpack.c.0.s8 %v1371
      %v1373 = vlaneseq
      %v1374 = vshrl.u32 %v1373, 7
      %v1375 = vsub.s32 %v1372, %v1374
      %v1376 = vrot.slane %v1369, %v1375
      %v1377 = vcombine.low %v1365, %v1366
      %v1379 = vunpack.c.l.s4 1983009808
      %v1380 = vunpack.c.0.s8 %v1379
      %v1381 = vlaneseq
      %v1382 = vshrl.u32 %v1381, 7
      %v1383 = vsub.s32 %v1380, %v1382
      %v1384 = vrot.slane %v1377, %v1383
      %v1385 = vcombine.low %v1357, %v1364
      %v1387 = vunpack.c.l.s4 1983009808
      %v1388 = vunpack.c.0.s8 %v1387
      %v1389 = vlaneseq
      %v1390 = vshrl.u32 %v1389, 7
      %v1391 = vsub.s32 %v1388, %v1390
      %v1392 = vrot.slane %v1385, %v1391
      %v1393 = vcombine.low %v1367, %v1368
      %v1395 = vunpack.c.l.s4 1983009808
      %v1396 = vunpack.c.0.s8 %v1395
      %v1397 = vlaneseq
      %v1398 = vshrl.u32 %v1397, 7
      %v1399 = vsub.s32 %v1396, %v1398
      %v1400 = vrot.slane %v1393, %v1399
      %v1401 = vcombine.low %v1376, %v1384
      %v1402 = vcombine.high %v1376, %v1384
      %v1404 = vunpack.c.l.s4 1934713408
      %v1405 = vunpack.c.0.s8 %v1404
      %v1406 = vlaneseq
      %v1407 = vshrl.u32 %v1406, 7
      %v1408 = vsub.s32 %v1405, %v1407
      %v1409 = vrot.slane %v1401, %v1408
      %v1411 = vunpack.c.l.s4 1934713408
      %v1412 = vunpack.c.0.s8 %v1411
      %v1413 = vlaneseq
      %v1414 = vshrl.u32 %v1413, 7
      %v1415 = vsub.s32 %v1412, %v1414
      %v1416 = vrot.slane %v1402, %v1415
      %v1417 = vcombine.low %v1392, %v1400
      %v1418 = vcombine.high %v1392, %v1400
      %v1420 = vunpack.c.l.s4 1934713408
      %v1421 = vunpack.c.0.s8 %v1420
      %v1422 = vlaneseq
      %v1423 = vshrl.u32 %v1422, 7
      %v1424 = vsub.s32 %v1421, %v1423
      %v1425 = vrot.slane %v1417, %v1424
      %v1427 = vunpack.c.l.s4 1934713408
      %v1428 = vunpack.c.0.s8 %v1427
      %v1429 = vlaneseq
      %v1430 = vshrl.u32 %v1429, 7
      %v1431 = vsub.s32 %v1428, %v1430
      %v1432 = vrot.slane %v1418, %v1431
      %v1433 = vcombine.low %v1409, %v1425
      %v1434 = vcombine.high %v1409, %v1425
      %v1435 = vcombine.low %v1416, %v1432
      %v1436 = vcombine.high %v1416, %v1432
      %1438 = vrot.lane.b32.xlu0 %v1434, 32
      %v1439 = vpop.permute.xlu0 %1438
      %1442 = vrot.lane.b32.xlu0 %v1435, 64
      %v1443 = vpop.permute.xlu0 %1442
      %1446 = vrot.lane.b32.xlu0 %v1436, 96
      %v1447 = vpop.permute.xlu0 %1446
      %v1449 = vsel %vm655, %v1433, %v1439
      %vm1450 = vcmask 523264
      %v1451 = vsel %vm1450, %v1449, %v1443
      %vm1452 = vcmask 785408
      %v1453 = vsel %vm1452, %v1451, %v1447
      %1454 = vst [vmem:[%s294] sm:$0xff] %v1453
      %p1455 = scmp.lt.s32.totalorder %s21, 1
      %s1456 = scalar_select %p1455, %s21, 1
      %p1457 = scmp.lt.s32.totalorder %s22, 0
      %s1458 = scalar_select %p1457, %s22, 0
      %s1459 = sadd.s32 %s1458, %s1456
      %s1460 = smul.addr %s1459, 8
      %s1461 = scalar_lea.vmem %s6, %s1460
      // Predicated region
      $region45: #{decoder_layer.7} parent=43 // pred_check
        %p1462 = pneg %p187
      $region46: #{decoder_layer.7} parent=43 // pred_check_branch
        %1464 = sbr.rel (%p1462) target = $region48
      $region47: #{decoder_layer.7} parent=43 // pred_region
        _
      $region48: #{decoder_layer.7} parent=43 // pred_fallthru
        _
    $region44: #{decoder_layer.7} parent=5 // pred_fallthru
      _
    %p1465 = scmp.le.s32.totalorder 2, %s12
    // Predicated region
    $region49: #{decoder_layer.7} parent=5 // pred_check
      %p1466 = pneg %p1465
    $region50: #{decoder_layer.7} parent=5 // pred_check_branch
      %1468 = sbr.rel (%p1466) target = $region52
    $region51: #{decoder_layer.7} parent=5 // pred_region
      %s1469 = ssub.s32 %s12, 2
      // Predicated region
      $region53: #{decoder_layer.7} parent=51 // pred_check
        %p1470 = pneg %p193
      $region54: #{decoder_layer.7} parent=51 // pred_check_branch
        %1472 = sbr.rel (%p1470) target = $region56
      $region55: #{decoder_layer.7} parent=51 // pred_region
        %p1473 = scmp.lt.s32.totalorder %s23, 1
        %s1474 = scalar_select %p1473, %s23, 1
        %p1475 = scmp.lt.s32.totalorder %s24, 0
        %s1476 = scalar_select %p1475, %s24, 0
        %s1477 = sadd.s32 %s1476, %s1474
        %s1478 = smul.addr %s1477, 8
        %s1479 = scalar_lea.vmem %s6, %s1478
      $region56: #{decoder_layer.7} parent=51 // pred_fallthru
        _
    $region52: #{decoder_layer.7} parent=5 // pred_fallthru
      _
  $region6: #{decoder_layer.7} parent=0 // loop_footer
    %s16 = sadd.s32 1, %s12
  $region7: #{decoder_layer.7} parent=0 // loop_footer_branch
    %11 = sbr.rel target = $region3
  $region8: #{decoder_layer.7} parent=0 // loop_exit
    _

</llo_original>
